<compile_context>
chip_gen: v7x
topology: tpu7x:2x2x1
jax: 0.10.0
libtpu: 0.0.40
codegen_flags: <defaults>
</compile_context>

<pallas_src>
import functools

import numpy as np

import jax
import jax.numpy as jnp
from jax import lax
from jax.experimental import pallas as pl
from jax.experimental.pallas import tpu as pltpu


_PADH = 8  # row offset of the interior inside the H-padded scratches (aligned)


# ----------------------------------------------------------------------------
# Fused forward kernel.
# ----------------------------------------------------------------------------
def _cnn_kernel(x_ref,
                s1_ref, s2_ref, s3_ref, t_ref, wfc2_ref,
                b1_ref, b2_ref, b3_ref, bfc1_ref, bfc2_ref,
                o_ref,
                p1_ref, p2_ref, p3_ref,
                *, NB, H1, W1, C1, C2, C3, kh, kw):
    f32, bf16 = jnp.float32, jnp.bfloat16
    H2, W2 = H1 // 2, W1 // 2
    H3, W3 = H2 // 2, W2 // 2

    def store_padded(pad_ref, val, h, cols):
        # Interior at rows [_PADH, _PADH + h); zero ONLY the two border rows.
        pad_ref[:, _PADH - 1:_PADH, :] = jnp.zeros((NB, 1, cols), bf16)
        pad_ref[:, _PADH + h:_PADH + h + 1, :] = jnp.zeros((NB, 1, cols), bf16)
        pad_ref[:, _PADH:_PADH + h, :] = val.astype(bf16)

    def conv3x3(pad_ref, s_ref, h, k_cols, out_cols):
        # 3 dense bf16 MXU matmuls (one per vertical tap); horizontal taps,
        # zero W-padding and output channels live in the structured weight.
        acc = jnp.zeros((NB * h, out_cols), f32)
        for dy in range(3):
            xs = pad_ref[:, _PADH - 1 + dy:_PADH - 1 + dy + h, :]
            acc = acc + jnp.dot(xs.reshape(NB * h, k_cols), s_ref[dy],
                                preferred_element_type=f32)
        return acc

    def maxpool2(acc, h, half):
        # H: max over row pairs.  W: the weight layout routed even/odd output
        # columns to the two lane halves -> max of two 128-aligned lane slices.
        hp = acc.reshape(NB, h // 2, 2, 2 * half).max(axis=2)
        return jnp.maximum(hp[:, :, :half], hp[:, :, half:])

    # --- layer 1: conv(1->C1) -> maxpool2 -> +bias -> relu ------------------
    store_padded(p1_ref, x_ref[...], H1, W1)
    y = maxpool2(conv3x3(p1_ref, s1_ref, H1, W1, W1 * C1), H1, W2 * C1)
    y = jnp.maximum(y + b1_ref[...], 0.0)                   # (NB, H2, W2*C1)

    # --- layer 2: conv(C1->C2) -> maxpool2 -> +bias -> relu -----------------
    store_padded(p2_ref, y, H2, W2 * C1)
    y = maxpool2(conv3x3(p2_ref, s2_ref, H2, W2 * C1, W2 * C2), H2, W3 * C2)
    y = jnp.maximum(y + b2_ref[...], 0.0)                   # (NB, H3, W3*C2)

    # --- layer 3: conv(C2->C3) -> AdaptiveAvgPool2d((4,4)) -> +bias -> relu -
    store_padded(p3_ref, y, H3, W3 * C2)
    acc = conv3x3(p3_ref, s3_ref, H3, W3 * C2, W3 * C3)
    hsum = acc.reshape(NB, 4, kh, W3 * C3).sum(axis=2)      # avg pool, H part
    pooled = hsum[:, :, :4 * C3]
    for r in range(1, kw):                                   # avg pool, W part
        pooled = pooled + hsum[:, :, r * 4 * C3:(r + 1) * 4 * C3]
    pooled = pooled * (1.0 / (kh * kw)) + b3_ref[...]
    pooled = jnp.maximum(pooled, 0.0)                        # (NB, 4, 4*C3)

    # --- head: fc1 as 4 block matmuls (PyTorch CHW flatten pre-permuted) ----
    h = jnp.zeros((NB, 128), f32)
    for oh in range(4):
        h = h + jnp.dot(pooled[:, oh, :].astype(bf16), t_ref[oh],
                        preferred_element_type=f32)
    h = jnp.maximum(h + bfc1_ref[...], 0.0)
    out = jnp.dot(h.astype(bf16), wfc2_ref[...], preferred_element_type=f32)
    out = out + bfc2_ref[...]
    o_ref[...] = out[:, None, :].astype(o_ref.dtype)


# ----------------------------------------------------------------------------
# Wrapper: one pallas_call, batch-parallel grid.
# ----------------------------------------------------------------------------
def cnn_baseline_forward(x_nchw, params):
    N, cin, H1, W1 = x_nchw.shape
    assert cin == 1
    assert H1 % 16 == 0 and W1 % 16 == 0, "spatial dims must be multiples of 16"
    C1, C2, C3 = 16, 32, 64
    H2, W2, H3, W3 = H1 // 2, W1 // 2, H1 // 4, W1 // 4
    kh, kw = H3 // 4, W3 // 4

    x = x_nchw.reshape(N, H1, W1)          # single input channel: drop it (free)

    inputs = (x, params["S1"], params["S2"], params["S3"], params["T"],
              params["Wfc2"], params["b1t"], params["b2t"], params["b3t"],
              params["bfc1"], params["bfc2"])

    kern = functools.partial(_cnn_kernel, NB=1, H1=H1, W1=W1,
                             C1=C1, C2=C2, C3=C3, kh=kh, kw=kw)

    def resident(a):                       # whole array, constant index map
        nd = a.ndim
        return pl.BlockSpec(a.shape, lambda i, _n=nd: (0,) * _n)

    in_specs = ([pl.BlockSpec((1, H1, W1), lambda i: (i, 0, 0))]
                + [resident(a) for a in inputs[1:]])
    out_specs = pl.BlockSpec((1, 1, 16), lambda i: (i, 0, 0))

    scratch_defs = [((1, H1 + 16, W1), jnp.bfloat16),        # H-padded input
                    ((1, H2 + 16, W2 * C1), jnp.bfloat16),   # H-padded act 1
                    ((1, H3 + 16, W3 * C2), jnp.bfloat16)]   # H-padded act 2
    scratch_shapes = [pltpu.VMEM(s, d) for s, d in scratch_defs]

    def phys_bytes(shape, itemsize):       # generous (8,128)-tiled upper bound
        lead = 1
        for d in shape[:-2]:
            lead *= int(d)
        sub = ((int(shape[-2]) + 31) // 32) * 32
        lane = ((int(shape[-1]) + 127) // 128) * 128
        return lead * sub * lane * itemsize

    blocks = [((1, H1, W1), 4)] + [(a.shape, a.dtype.itemsize) for a in inputs[1:]]
    vmem_limit = int(2 * sum(phys_bytes(s, b) for s, b in blocks)
                     + 2 * phys_bytes((1, 1, 16), 4)
                     + sum(phys_bytes(s, 2) for s, _ in scratch_defs)
                     + 8 * 1024 * 1024)

    flops = 2 * N * (3 * (H1 * W1 * (W1 * C1)
                          + H2 * (W2 * C1) * (W2 * C2)
                          + H3 * (W3 * C2) * (W3 * C3))
                     + 16 * C3 * 128 + 128 * 16)
    bytes_accessed = (int(x_nchw.size) * 4 + N * 16 * 4
                      + sum(int(a.size) * a.dtype.itemsize for a in inputs[1:]))

    out = pl.pallas_call(
        kern,
        out_shape=jax.ShapeDtypeStruct((N, 1, 16), jnp.float32),
        grid=(N,),
        in_specs=in_specs,
        out_specs=out_specs,
        scratch_shapes=scratch_shapes,
        compiler_params=pltpu.CompilerParams(
            dimension_semantics=("parallel",),
            vmem_limit_bytes=vmem_limit),
        cost_estimate=pl.CostEstimate(flops=flops, transcendentals=0,
                                      bytes_accessed=bytes_accessed),
    )(*inputs)
    return out.reshape(N, 16)


# ----------------------------------------------------------------------------
# Host-side weight packing (structured conv weights, fc permutations).
# ----------------------------------------------------------------------------
def _make_conv_s(w_pt, w_in, pos_fn):
    """(3, w_in*cin, w_in*cout): horizontal taps + zero W-padding + output-
    column routing (pos_fn) folded into the columns; one matrix per dy."""
    w = np.asarray(w_pt).transpose(2, 3, 1, 0)                # (dy, dx, cin, cout)
    cin, cout = w.shape[2], w.shape[3]
    s = np.zeros((3, w_in * cin, w_in * cout), np.float32)
    for dy in range(3):
        for j in range(w_in):
            c0 = pos_fn(j) * cout
            for dx in range(3):
                xin = j + dx - 1
                if 0 <= xin < w_in:
                    s[dy, xin * cin:(xin + 1) * cin, c0:c0 + cout] += w[dy, dx]
    return s


def make_params(key, input_hw):
    H1, W1 = input_hw
    C1, C2, C3 = 16, 32, 64
    W2, W3 = W1 // 2, W1 // 4
    kw = W3 // 4

    ks = jax.random.split(key, 10)
    convs_pt = [
        (jax.random.normal(ks[0], (C1, 1, 3, 3), jnp.float32) * 0.30,
         jax.random.normal(ks[1], (C1,), jnp.float32) * 0.10),
        (jax.random.normal(ks[2], (C2, C1, 3, 3), jnp.float32) * 0.08,
         jax.random.normal(ks[3], (C2,), jnp.float32) * 0.10),
        (jax.random.normal(ks[4], (C3, C2, 3, 3), jnp.float32) * 0.06,
         jax.random.normal(ks[5], (C3,), jnp.float32) * 0.10),
    ]
    W1fc = jax.random.normal(ks[6], (128, C3 * 16), jnp.float32) * 0.04
    b1fc = jax.random.normal(ks[7], (128,), jnp.float32) * 0.10
    W2fc = jax.random.normal(ks[8], (16, 128), jnp.float32) * 0.10
    b2fc = jax.random.normal(ks[9], (16,), jnp.float32) * 0.10
    pt = {"convs": convs_pt, "W1": W1fc, "b1": b1fc, "W2": W2fc, "b2": b2fc}

    # pos maps: maxpool pairs go to the two lane halves; adaptive-pool windows
    # go to kw contiguous lane slices.
    pool2 = lambda w: (lambda j: (j % 2) * (w // 2) + (j // 2))
    pos3 = lambda j: (j % kw) * 4 + (j // kw)

    s1 = _make_conv_s(convs_pt[0][0], W1, pool2(W1))
    s2 = _make_conv_s(convs_pt[1][0], W2, pool2(W2))
    s3 = _make_conv_s(convs_pt[2][0], W3, pos3)

    # fc1: PyTorch flat index c*16 + oh*4 + ow -> in-kernel (oh block, ow*C3+c).
    w1r = np.asarray(W1fc).reshape(128, C3, 4, 4)             # (f, c, oh, ow)
    t = np.zeros((4, 4 * C3, 128), np.float32)
    for oh in range(4):
        for ow in range(4):
            t[oh, ow * C3:(ow + 1) * C3, :] = w1r[:, :, oh, ow].T

    def bias_tile(b, reps):
        return np.tile(np.asarray(b), reps)[None, :].astype(np.float32)

    params = {
        "S1": jnp.asarray(s1, jnp.bfloat16),
        "S2": jnp.asarray(s2, jnp.bfloat16),
        "S3": jnp.asarray(s3, jnp.bfloat16),
        "T": jnp.asarray(t, jnp.bfloat16),
        "Wfc2": jnp.asarray(np.asarray(W2fc).T, jnp.bfloat16),
        "b1t": jnp.asarray(bias_tile(convs_pt[0][1], W2)),
        "b2t": jnp.asarray(bias_tile(convs_pt[1][1], W3)),
        "b3t": jnp.asarray(bias_tile(convs_pt[2][1], 4)),
        "bfc1": jnp.asarray(np.asarray(b1fc)[None, :], jnp.float32),
        "bfc2": jnp.asarray(np.asarray(b2fc)[None, :], jnp.float32),
    }
    return params, pt


# ----------------------------------------------------------------------------
# Pure-JAX reference implementing the exact PyTorch semantics.
# ----------------------------------------------------------------------------
def reference_forward(x_nchw, pt):
    x = jnp.transpose(x_nchw, (0, 2, 3, 1))                   # NHWC
    for i, (w_pt, b) in enumerate(pt["convs"]):
        w_hwio = jnp.transpose(w_pt, (2, 3, 1, 0))
        x = lax.conv_general_dilated(
            x, w_hwio, (1, 1), "SAME",
            dimension_numbers=("NHWC", "HWIO", "NHWC"),
            precision=lax.Precision.HIGHEST) + b[None, None, None, :]
        n, h, w, c = x.shape
        if i < 2:
            x = x.reshape(n, h // 2, 2, w // 2, 2, c).max(axis=(2, 4))   # MaxPool2d(2)
        else:
            x = x.reshape(n, 4, h // 4, 4, w // 4, c).mean(axis=(2, 4))  # AdaptiveAvgPool2d((4,4))
        x = jax.nn.relu(x)
    n = x.shape[0]
    flat = jnp.transpose(x, (0, 3, 1, 2)).reshape(n, -1)                  # PyTorch CHW flatten
    h = jax.nn.relu(flat @ pt["W1"].T + pt["b1"])
    return h @ pt["W2"].T + pt["b2"]


if __name__ == "__main__":
    key = jax.random.PRNGKey(0)
    k_par, k_x = jax.random.split(key)

    H1, W1 = 128, 16                       # the module's default input_shape
    params, pt = make_params(k_par, (H1, W1))

    # PyTorch-style NCHW input: batch=2, channels=1, spatial 128x16.
    x = jax.random.normal(k_x, (2, 1, H1, W1), jnp.float32)

    out = jax.block_until_ready(cnn_baseline_forward(x, params))
    ref = reference_forward(x, pt)

    assert out.shape == (2, 16), out.shape
    assert bool(jnp.all(jnp.isfinite(out)))
    assert jnp.allclose(out, ref, rtol=2e-2, atol=2e-2), (
        float(jnp.max(jnp.abs(out - ref))))
    print("KERNEL_OK")
</pallas_src>

<mosaic_0001>
module attributes {stable_mosaic.version = 11 : i64} {
  func.func @_cnn_kernel(%arg0: i32, %arg1: memref<1x128x16xf32, #tpu.memory_space<vmem>>, %arg2: memref<3x16x256xbf16, #tpu.memory_space<vmem>>, %arg3: memref<3x128x256xbf16, #tpu.memory_space<vmem>>, %arg4: memref<3x128x256xbf16, #tpu.memory_space<vmem>>, %arg5: memref<4x256x128xbf16, #tpu.memory_space<vmem>>, %arg6: memref<128x16xbf16, #tpu.memory_space<vmem>>, %arg7: memref<1x128xf32, #tpu.memory_space<vmem>>, %arg8: memref<1x128xf32, #tpu.memory_space<vmem>>, %arg9: memref<1x256xf32, #tpu.memory_space<vmem>>, %arg10: memref<1x128xf32, #tpu.memory_space<vmem>>, %arg11: memref<1x16xf32, #tpu.memory_space<vmem>>, %arg12: memref<1x1x16xf32, #tpu.memory_space<vmem>>, %arg13: memref<1x144x16xbf16, #tpu.memory_space<vmem>>, %arg14: memref<1x80x128xbf16, #tpu.memory_space<vmem>>, %arg15: memref<1x48x128xbf16, #tpu.memory_space<vmem>>) attributes {dimension_semantics = [#tpu.dimension_semantics<parallel>], iteration_bounds = array<i64: 2>, scalar_prefetch = 0 : i64, scratch_operands = 3 : i64, tpu.core_type = #tpu.core_type<tc>, window_params = [{transform_indices = @transform_0, window_bounds = array<i64: 1, 128, 16>}, {pipeline_mode = #tpu.pipeline_mode<synchronous>, transform_indices = @transform_1, window_bounds = array<i64: 3, 16, 256>}, {pipeline_mode = #tpu.pipeline_mode<synchronous>, transform_indices = @transform_2, window_bounds = array<i64: 3, 128, 256>}, {pipeline_mode = #tpu.pipeline_mode<synchronous>, transform_indices = @transform_3, window_bounds = array<i64: 3, 128, 256>}, {pipeline_mode = #tpu.pipeline_mode<synchronous>, transform_indices = @transform_4, window_bounds = array<i64: 4, 256, 128>}, {pipeline_mode = #tpu.pipeline_mode<synchronous>, transform_indices = @transform_5, window_bounds = array<i64: 128, 16>}, {pipeline_mode = #tpu.pipeline_mode<synchronous>, transform_indices = @transform_6, window_bounds = array<i64: 1, 128>}, {pipeline_mode = #tpu.pipeline_mode<synchronous>, transform_indices = @transform_7, window_bounds = array<i64: 1, 128>}, {pipeline_mode = #tpu.pipeline_mode<synchronous>, transform_indices = @transform_8, window_bounds = array<i64: 1, 256>}, {pipeline_mode = #tpu.pipeline_mode<synchronous>, transform_indices = @transform_9, window_bounds = array<i64: 1, 128>}, {pipeline_mode = #tpu.pipeline_mode<synchronous>, transform_indices = @transform_10, window_bounds = array<i64: 1, 16>}, {transform_indices = @transform_11, window_bounds = array<i64: 1, 1, 16>}]} {
    %c0 = arith.constant 0 : index
    %c0_0 = arith.constant 0 : index
    %c0_1 = arith.constant 0 : index
    %0 = vector.load %arg1[%c0, %c0_0, %c0_1] : memref<1x128x16xf32, #tpu.memory_space<vmem>>, vector<1x128x16xf32>
    %cst = arith.constant 0.000000e+00 : bf16
    %1 = vector.broadcast %cst : bf16 to vector<1x1x16xbf16>
    %c0_2 = arith.constant 0 : index
    %c7 = arith.constant 7 : index
    %c0_3 = arith.constant 0 : index
    %2 = vector.load %arg13[%c0_2, %c7, %c0_3] : memref<1x144x16xbf16, #tpu.memory_space<vmem>>, vector<1x1x16xbf16>
    tpu.vector_store %arg13[%c0_2, %c7, %c0_3], %1 {strides = array<i32>} : memref<1x144x16xbf16, #tpu.memory_space<vmem>>, vector<1x1x16xbf16>,
    %cst_4 = arith.constant 0.000000e+00 : bf16
    %3 = vector.broadcast %cst_4 : bf16 to vector<1x1x16xbf16>
    %c0_5 = arith.constant 0 : index
    %c136 = arith.constant 136 : index
    %c0_6 = arith.constant 0 : index
    %4 = vector.load %arg13[%c0_5, %c136, %c0_6] : memref<1x144x16xbf16, #tpu.memory_space<vmem>>, vector<1x1x16xbf16>
    tpu.vector_store %arg13[%c0_5, %c136, %c0_6], %3 {strides = array<i32>} : memref<1x144x16xbf16, #tpu.memory_space<vmem>>, vector<1x1x16xbf16>,
    %5 = arith.truncf %0 : vector<1x128x16xf32> to vector<1x128x16xbf16>
    %c0_7 = arith.constant 0 : index
    %c8 = arith.constant 8 : index
    %c0_8 = arith.constant 0 : index
    %6 = vector.load %arg13[%c0_7, %c8, %c0_8] : memref<1x144x16xbf16, #tpu.memory_space<vmem>>, vector<1x128x16xbf16>
    tpu.vector_store %arg13[%c0_7, %c8, %c0_8], %5 {strides = array<i32>} : memref<1x144x16xbf16, #tpu.memory_space<vmem>>, vector<1x128x16xbf16>,
    %cst_9 = arith.constant 0.000000e+00 : f32
    %7 = vector.broadcast %cst_9 : f32 to vector<128x256xf32>
    %c0_10 = arith.constant 0 : index
    %c7_11 = arith.constant 7 : index
    %c0_12 = arith.constant 0 : index
    %8 = vector.load %arg13[%c0_10, %c7_11, %c0_12] : memref<1x144x16xbf16, #tpu.memory_space<vmem>>, vector<1x128x16xbf16>
    %9 = vector.shape_cast %8 : vector<1x128x16xbf16> to vector<128x16xbf16>
    %c0_13 = arith.constant 0 : index
    %c0_14 = arith.constant 0 : index
    %c0_15 = arith.constant 0 : index
    %10 = vector.load %arg2[%c0_13, %c0_14, %c0_15] : memref<3x16x256xbf16, #tpu.memory_space<vmem>>, vector<1x16x256xbf16>
    %11 = vector.shape_cast %10 : vector<1x16x256xbf16> to vector<16x256xbf16>
    %cst_16 = arith.constant dense<0.000000e+00> : vector<128x256xf32>
    %12 = tpu.matmul %9, %11, %cst_16 {dimension_numbers = #tpu.dot_dimension_numbers<[1], [0], [0], [1], [0, 0, 1, 1], [], []>} : vector<128x16xbf16>, vector<16x256xbf16>, vector<128x256xf32> -> vector<128x256xf32>
    %13 = arith.addf %7, %12 : vector<128x256xf32>
    %c0_17 = arith.constant 0 : index
    %c8_18 = arith.constant 8 : index
    %c0_19 = arith.constant 0 : index
    %14 = vector.load %arg13[%c0_17, %c8_18, %c0_19] : memref<1x144x16xbf16, #tpu.memory_space<vmem>>, vector<1x128x16xbf16>
    %15 = vector.shape_cast %14 : vector<1x128x16xbf16> to vector<128x16xbf16>
    %c1 = arith.constant 1 : index
    %c0_20 = arith.constant 0 : index
    %c0_21 = arith.constant 0 : index
    %16 = vector.load %arg2[%c1, %c0_20, %c0_21] : memref<3x16x256xbf16, #tpu.memory_space<vmem>>, vector<1x16x256xbf16>
    %17 = vector.shape_cast %16 : vector<1x16x256xbf16> to vector<16x256xbf16>
    %cst_22 = arith.constant dense<0.000000e+00> : vector<128x256xf32>
    %18 = tpu.matmul %15, %17, %cst_22 {dimension_numbers = #tpu.dot_dimension_numbers<[1], [0], [0], [1], [0, 0, 1, 1], [], []>} : vector<128x16xbf16>, vector<16x256xbf16>, vector<128x256xf32> -> vector<128x256xf32>
    %19 = arith.addf %13, %18 : vector<128x256xf32>
    %c0_23 = arith.constant 0 : index
    %c9 = arith.constant 9 : index
    %c0_24 = arith.constant 0 : index
    %20 = vector.load %arg13[%c0_23, %c9, %c0_24] : memref<1x144x16xbf16, #tpu.memory_space<vmem>>, vector<1x128x16xbf16>
    %21 = vector.shape_cast %20 : vector<1x128x16xbf16> to vector<128x16xbf16>
    %c2 = arith.constant 2 : index
    %c0_25 = arith.constant 0 : index
    %c0_26 = arith.constant 0 : index
    %22 = vector.load %arg2[%c2, %c0_25, %c0_26] : memref<3x16x256xbf16, #tpu.memory_space<vmem>>, vector<1x16x256xbf16>
    %23 = vector.shape_cast %22 : vector<1x16x256xbf16> to vector<16x256xbf16>
    %cst_27 = arith.constant dense<0.000000e+00> : vector<128x256xf32>
    %24 = tpu.matmul %21, %23, %cst_27 {dimension_numbers = #tpu.dot_dimension_numbers<[1], [0], [0], [1], [0, 0, 1, 1], [], []>} : vector<128x16xbf16>, vector<16x256xbf16>, vector<128x256xf32> -> vector<128x256xf32>
    %25 = arith.addf %19, %24 : vector<128x256xf32>
    %26 = vector.shape_cast %25 : vector<128x256xf32> to vector<1x64x2x256xf32>
    %cst_28 = arith.constant dense<0xFF800000> : vector<1x64x256xf32>
    %27 = vector.multi_reduction <maximumf>, %26, %cst_28 [2] : vector<1x64x2x256xf32> to vector<1x64x256xf32>
    %28 = vector.extract_strided_slice %27 {offsets = [0, 0, 0], sizes = [1, 64, 128], strides = [1, 1, 1]} : vector<1x64x256xf32> to vector<1x64x128xf32>
    %29 = vector.extract_strided_slice %27 {offsets = [0, 0, 128], sizes = [1, 64, 128], strides = [1, 1, 1]} : vector<1x64x256xf32> to vector<1x64x128xf32>
    %30 = arith.maximumf %28, %29 : vector<1x64x128xf32>
    %c0_29 = arith.constant 0 : index
    %c0_30 = arith.constant 0 : index
    %31 = vector.load %arg7[%c0_29, %c0_30] : memref<1x128xf32, #tpu.memory_space<vmem>>, vector<1x128xf32>
    %32 = vector.shape_cast %31 : vector<1x128xf32> to vector<1x1x128xf32>
    %33 = vector.broadcast %32 : vector<1x1x128xf32> to vector<1x64x128xf32>
    %34 = arith.addf %30, %33 : vector<1x64x128xf32>
    %cst_31 = arith.constant 0.000000e+00 : f32
    %35 = vector.broadcast %cst_31 : f32 to vector<1x64x128xf32>
    %36 = arith.maximumf %34, %35 : vector<1x64x128xf32>
    %cst_32 = arith.constant 0.000000e+00 : bf16
    %37 = vector.broadcast %cst_32 : bf16 to vector<1x1x128xbf16>
    %c0_33 = arith.constant 0 : index
    %c7_34 = arith.constant 7 : index
    %c0_35 = arith.constant 0 : index
    %38 = vector.load %arg14[%c0_33, %c7_34, %c0_35] : memref<1x80x128xbf16, #tpu.memory_space<vmem>>, vector<1x1x128xbf16>
    tpu.vector_store %arg14[%c0_33, %c7_34, %c0_35], %37 {strides = array<i32>} : memref<1x80x128xbf16, #tpu.memory_space<vmem>>, vector<1x1x128xbf16>,
    %cst_36 = arith.constant 0.000000e+00 : bf16
    %39 = vector.broadcast %cst_36 : bf16 to vector<1x1x128xbf16>
    %c0_37 = arith.constant 0 : index
    %c72 = arith.constant 72 : index
    %c0_38 = arith.constant 0 : index
    %40 = vector.load %arg14[%c0_37, %c72, %c0_38] : memref<1x80x128xbf16, #tpu.memory_space<vmem>>, vector<1x1x128xbf16>
    tpu.vector_store %arg14[%c0_37, %c72, %c0_38], %39 {strides = array<i32>} : memref<1x80x128xbf16, #tpu.memory_space<vmem>>, vector<1x1x128xbf16>,
    %41 = arith.truncf %36 : vector<1x64x128xf32> to vector<1x64x128xbf16>
    %c0_39 = arith.constant 0 : index
    %c8_40 = arith.constant 8 : index
    %c0_41 = arith.constant 0 : index
    %42 = vector.load %arg14[%c0_39, %c8_40, %c0_41] : memref<1x80x128xbf16, #tpu.memory_space<vmem>>, vector<1x64x128xbf16>
    tpu.vector_store %arg14[%c0_39, %c8_40, %c0_41], %41 {strides = array<i32>} : memref<1x80x128xbf16, #tpu.memory_space<vmem>>, vector<1x64x128xbf16>,
    %cst_42 = arith.constant 0.000000e+00 : f32
    %43 = vector.broadcast %cst_42 : f32 to vector<64x256xf32>
    %c0_43 = arith.constant 0 : index
    %c7_44 = arith.constant 7 : index
    %c0_45 = arith.constant 0 : index
    %44 = vector.load %arg14[%c0_43, %c7_44, %c0_45] : memref<1x80x128xbf16, #tpu.memory_space<vmem>>, vector<1x64x128xbf16>
    %45 = vector.shape_cast %44 : vector<1x64x128xbf16> to vector<64x128xbf16>
    %c0_46 = arith.constant 0 : index
    %c0_47 = arith.constant 0 : index
    %c0_48 = arith.constant 0 : index
    %46 = vector.load %arg3[%c0_46, %c0_47, %c0_48] : memref<3x128x256xbf16, #tpu.memory_space<vmem>>, vector<1x128x256xbf16>
    %47 = vector.shape_cast %46 : vector<1x128x256xbf16> to vector<128x256xbf16>
    %cst_49 = arith.constant dense<0.000000e+00> : vector<64x256xf32>
    %48 = tpu.matmul %45, %47, %cst_49 {dimension_numbers = #tpu.dot_dimension_numbers<[1], [0], [0], [1], [0, 0, 1, 1], [], []>} : vector<64x128xbf16>, vector<128x256xbf16>, vector<64x256xf32> -> vector<64x256xf32>
    %49 = arith.addf %43, %48 : vector<64x256xf32>
    %c0_50 = arith.constant 0 : index
    %c8_51 = arith.constant 8 : index
    %c0_52 = arith.constant 0 : index
    %50 = vector.load %arg14[%c0_50, %c8_51, %c0_52] : memref<1x80x128xbf16, #tpu.memory_space<vmem>>, vector<1x64x128xbf16>
    %51 = vector.shape_cast %50 : vector<1x64x128xbf16> to vector<64x128xbf16>
    %c1_53 = arith.constant 1 : index
    %c0_54 = arith.constant 0 : index
    %c0_55 = arith.constant 0 : index
    %52 = vector.load %arg3[%c1_53, %c0_54, %c0_55] : memref<3x128x256xbf16, #tpu.memory_space<vmem>>, vector<1x128x256xbf16>
    %53 = vector.shape_cast %52 : vector<1x128x256xbf16> to vector<128x256xbf16>
    %cst_56 = arith.constant dense<0.000000e+00> : vector<64x256xf32>
    %54 = tpu.matmul %51, %53, %cst_56 {dimension_numbers = #tpu.dot_dimension_numbers<[1], [0], [0], [1], [0, 0, 1, 1], [], []>} : vector<64x128xbf16>, vector<128x256xbf16>, vector<64x256xf32> -> vector<64x256xf32>
    %55 = arith.addf %49, %54 : vector<64x256xf32>
    %c0_57 = arith.constant 0 : index
    %c9_58 = arith.constant 9 : index
    %c0_59 = arith.constant 0 : index
    %56 = vector.load %arg14[%c0_57, %c9_58, %c0_59] : memref<1x80x128xbf16, #tpu.memory_space<vmem>>, vector<1x64x128xbf16>
    %57 = vector.shape_cast %56 : vector<1x64x128xbf16> to vector<64x128xbf16>
    %c2_60 = arith.constant 2 : index
    %c0_61 = arith.constant 0 : index
    %c0_62 = arith.constant 0 : index
    %58 = vector.load %arg3[%c2_60, %c0_61, %c0_62] : memref<3x128x256xbf16, #tpu.memory_space<vmem>>, vector<1x128x256xbf16>
    %59 = vector.shape_cast %58 : vector<1x128x256xbf16> to vector<128x256xbf16>
    %cst_63 = arith.constant dense<0.000000e+00> : vector<64x256xf32>
    %60 = tpu.matmul %57, %59, %cst_63 {dimension_numbers = #tpu.dot_dimension_numbers<[1], [0], [0], [1], [0, 0, 1, 1], [], []>} : vector<64x128xbf16>, vector<128x256xbf16>, vector<64x256xf32> -> vector<64x256xf32>
    %61 = arith.addf %55, %60 : vector<64x256xf32>
    %62 = vector.shape_cast %61 : vector<64x256xf32> to vector<1x32x2x256xf32>
    %cst_64 = arith.constant dense<0xFF800000> : vector<1x32x256xf32>
    %63 = vector.multi_reduction <maximumf>, %62, %cst_64 [2] : vector<1x32x2x256xf32> to vector<1x32x256xf32>
    %64 = vector.extract_strided_slice %63 {offsets = [0, 0, 0], sizes = [1, 32, 128], strides = [1, 1, 1]} : vector<1x32x256xf32> to vector<1x32x128xf32>
    %65 = vector.extract_strided_slice %63 {offsets = [0, 0, 128], sizes = [1, 32, 128], strides = [1, 1, 1]} : vector<1x32x256xf32> to vector<1x32x128xf32>
    %66 = arith.maximumf %64, %65 : vector<1x32x128xf32>
    %c0_65 = arith.constant 0 : index
    %c0_66 = arith.constant 0 : index
    %67 = vector.load %arg8[%c0_65, %c0_66] : memref<1x128xf32, #tpu.memory_space<vmem>>, vector<1x128xf32>
    %68 = vector.shape_cast %67 : vector<1x128xf32> to vector<1x1x128xf32>
    %69 = vector.broadcast %68 : vector<1x1x128xf32> to vector<1x32x128xf32>
    %70 = arith.addf %66, %69 : vector<1x32x128xf32>
    %cst_67 = arith.constant 0.000000e+00 : f32
    %71 = vector.broadcast %cst_67 : f32 to vector<1x32x128xf32>
    %72 = arith.maximumf %70, %71 : vector<1x32x128xf32>
    %cst_68 = arith.constant 0.000000e+00 : bf16
    %73 = vector.broadcast %cst_68 : bf16 to vector<1x1x128xbf16>
    %c0_69 = arith.constant 0 : index
    %c7_70 = arith.constant 7 : index
    %c0_71 = arith.constant 0 : index
    %74 = vector.load %arg15[%c0_69, %c7_70, %c0_71] : memref<1x48x128xbf16, #tpu.memory_space<vmem>>, vector<1x1x128xbf16>
    tpu.vector_store %arg15[%c0_69, %c7_70, %c0_71], %73 {strides = array<i32>} : memref<1x48x128xbf16, #tpu.memory_space<vmem>>, vector<1x1x128xbf16>,
    %cst_72 = arith.constant 0.000000e+00 : bf16
    %75 = vector.broadcast %cst_72 : bf16 to vector<1x1x128xbf16>
    %c0_73 = arith.constant 0 : index
    %c40 = arith.constant 40 : index
    %c0_74 = arith.constant 0 : index
    %76 = vector.load %arg15[%c0_73, %c40, %c0_74] : memref<1x48x128xbf16, #tpu.memory_space<vmem>>, vector<1x1x128xbf16>
    tpu.vector_store %arg15[%c0_73, %c40, %c0_74], %75 {strides = array<i32>} : memref<1x48x128xbf16, #tpu.memory_space<vmem>>, vector<1x1x128xbf16>,
    %77 = arith.truncf %72 : vector<1x32x128xf32> to vector<1x32x128xbf16>
    %c0_75 = arith.constant 0 : index
    %c8_76 = arith.constant 8 : index
    %c0_77 = arith.constant 0 : index
    %78 = vector.load %arg15[%c0_75, %c8_76, %c0_77] : memref<1x48x128xbf16, #tpu.memory_space<vmem>>, vector<1x32x128xbf16>
    tpu.vector_store %arg15[%c0_75, %c8_76, %c0_77], %77 {strides = array<i32>} : memref<1x48x128xbf16, #tpu.memory_space<vmem>>, vector<1x32x128xbf16>,
    %cst_78 = arith.constant 0.000000e+00 : f32
    %79 = vector.broadcast %cst_78 : f32 to vector<32x256xf32>
    %c0_79 = arith.constant 0 : index
    %c7_80 = arith.constant 7 : index
    %c0_81 = arith.constant 0 : index
    %80 = vector.load %arg15[%c0_79, %c7_80, %c0_81] : memref<1x48x128xbf16, #tpu.memory_space<vmem>>, vector<1x32x128xbf16>
    %81 = vector.shape_cast %80 : vector<1x32x128xbf16> to vector<32x128xbf16>
    %c0_82 = arith.constant 0 : index
    %c0_83 = arith.constant 0 : index
    %c0_84 = arith.constant 0 : index
    %82 = vector.load %arg4[%c0_82, %c0_83, %c0_84] : memref<3x128x256xbf16, #tpu.memory_space<vmem>>, vector<1x128x256xbf16>
    %83 = vector.shape_cast %82 : vector<1x128x256xbf16> to vector<128x256xbf16>
    %cst_85 = arith.constant dense<0.000000e+00> : vector<32x256xf32>
    %84 = tpu.matmul %81, %83, %cst_85 {dimension_numbers = #tpu.dot_dimension_numbers<[1], [0], [0], [1], [0, 0, 1, 1], [], []>} : vector<32x128xbf16>, vector<128x256xbf16>, vector<32x256xf32> -> vector<32x256xf32>
    %85 = arith.addf %79, %84 : vector<32x256xf32>
    %c0_86 = arith.constant 0 : index
    %c8_87 = arith.constant 8 : index
    %c0_88 = arith.constant 0 : index
    %86 = vector.load %arg15[%c0_86, %c8_87, %c0_88] : memref<1x48x128xbf16, #tpu.memory_space<vmem>>, vector<1x32x128xbf16>
    %87 = vector.shape_cast %86 : vector<1x32x128xbf16> to vector<32x128xbf16>
    %c1_89 = arith.constant 1 : index
    %c0_90 = arith.constant 0 : index
    %c0_91 = arith.constant 0 : index
    %88 = vector.load %arg4[%c1_89, %c0_90, %c0_91] : memref<3x128x256xbf16, #tpu.memory_space<vmem>>, vector<1x128x256xbf16>
    %89 = vector.shape_cast %88 : vector<1x128x256xbf16> to vector<128x256xbf16>
    %cst_92 = arith.constant dense<0.000000e+00> : vector<32x256xf32>
    %90 = tpu.matmul %87, %89, %cst_92 {dimension_numbers = #tpu.dot_dimension_numbers<[1], [0], [0], [1], [0, 0, 1, 1], [], []>} : vector<32x128xbf16>, vector<128x256xbf16>, vector<32x256xf32> -> vector<32x256xf32>
    %91 = arith.addf %85, %90 : vector<32x256xf32>
    %c0_93 = arith.constant 0 : index
    %c9_94 = arith.constant 9 : index
    %c0_95 = arith.constant 0 : index
    %92 = vector.load %arg15[%c0_93, %c9_94, %c0_95] : memref<1x48x128xbf16, #tpu.memory_space<vmem>>, vector<1x32x128xbf16>
    %93 = vector.shape_cast %92 : vector<1x32x128xbf16> to vector<32x128xbf16>
    %c2_96 = arith.constant 2 : index
    %c0_97 = arith.constant 0 : index
    %c0_98 = arith.constant 0 : index
    %94 = vector.load %arg4[%c2_96, %c0_97, %c0_98] : memref<3x128x256xbf16, #tpu.memory_space<vmem>>, vector<1x128x256xbf16>
    %95 = vector.shape_cast %94 : vector<1x128x256xbf16> to vector<128x256xbf16>
    %cst_99 = arith.constant dense<0.000000e+00> : vector<32x256xf32>
    %96 = tpu.matmul %93, %95, %cst_99 {dimension_numbers = #tpu.dot_dimension_numbers<[1], [0], [0], [1], [0, 0, 1, 1], [], []>} : vector<32x128xbf16>, vector<128x256xbf16>, vector<32x256xf32> -> vector<32x256xf32>
    %97 = arith.addf %91, %96 : vector<32x256xf32>
    %98 = vector.shape_cast %97 : vector<32x256xf32> to vector<1x4x8x256xf32>
    %cst_100 = arith.constant dense<0.000000e+00> : vector<1x4x256xf32>
    %99 = vector.multi_reduction <add>, %98, %cst_100 [2] : vector<1x4x8x256xf32> to vector<1x4x256xf32>
    %cst_101 = arith.constant 1.250000e-01 : f32
    %100 = vector.broadcast %cst_101 : f32 to vector<1x4x256xf32>
    %101 = arith.mulf %99, %100 : vector<1x4x256xf32>
    %c0_102 = arith.constant 0 : index
    %c0_103 = arith.constant 0 : index
    %102 = vector.load %arg9[%c0_102, %c0_103] : memref<1x256xf32, #tpu.memory_space<vmem>>, vector<1x256xf32>
    %103 = vector.shape_cast %102 : vector<1x256xf32> to vector<1x1x256xf32>
    %104 = vector.broadcast %103 : vector<1x1x256xf32> to vector<1x4x256xf32>
    %105 = arith.addf %101, %104 : vector<1x4x256xf32>
    %cst_104 = arith.constant 0.000000e+00 : f32
    %106 = vector.broadcast %cst_104 : f32 to vector<1x4x256xf32>
    %107 = arith.maximumf %105, %106 : vector<1x4x256xf32>
    %cst_105 = arith.constant 0.000000e+00 : f32
    %108 = vector.broadcast %cst_105 : f32 to vector<1x128xf32>
    %109 = vector.extract_strided_slice %107 {offsets = [0, 0, 0], sizes = [1, 1, 256], strides = [1, 1, 1]} : vector<1x4x256xf32> to vector<1x1x256xf32>
    %110 = vector.shape_cast %109 : vector<1x1x256xf32> to vector<1x256xf32>
    %111 = arith.truncf %110 : vector<1x256xf32> to vector<1x256xbf16>
    %c0_106 = arith.constant 0 : index
    %c0_107 = arith.constant 0 : index
    %c0_108 = arith.constant 0 : index
    %112 = vector.load %arg5[%c0_106, %c0_107, %c0_108] : memref<4x256x128xbf16, #tpu.memory_space<vmem>>, vector<1x256x128xbf16>
    %113 = vector.shape_cast %112 : vector<1x256x128xbf16> to vector<256x128xbf16>
    %cst_109 = arith.constant dense<0.000000e+00> : vector<1x128xf32>
    %114 = tpu.matmul %111, %113, %cst_109 {dimension_numbers = #tpu.dot_dimension_numbers<[1], [0], [0], [1], [0, 0, 1, 1], [], []>} : vector<1x256xbf16>, vector<256x128xbf16>, vector<1x128xf32> -> vector<1x128xf32>
    %115 = arith.addf %108, %114 : vector<1x128xf32>
    %116 = vector.extract_strided_slice %107 {offsets = [0, 1, 0], sizes = [1, 1, 256], strides = [1, 1, 1]} : vector<1x4x256xf32> to vector<1x1x256xf32>
    %117 = vector.shape_cast %116 : vector<1x1x256xf32> to vector<1x256xf32>
    %118 = arith.truncf %117 : vector<1x256xf32> to vector<1x256xbf16>
    %c1_110 = arith.constant 1 : index
    %c0_111 = arith.constant 0 : index
    %c0_112 = arith.constant 0 : index
    %119 = vector.load %arg5[%c1_110, %c0_111, %c0_112] : memref<4x256x128xbf16, #tpu.memory_space<vmem>>, vector<1x256x128xbf16>
    %120 = vector.shape_cast %119 : vector<1x256x128xbf16> to vector<256x128xbf16>
    %cst_113 = arith.constant dense<0.000000e+00> : vector<1x128xf32>
    %121 = tpu.matmul %118, %120, %cst_113 {dimension_numbers = #tpu.dot_dimension_numbers<[1], [0], [0], [1], [0, 0, 1, 1], [], []>} : vector<1x256xbf16>, vector<256x128xbf16>, vector<1x128xf32> -> vector<1x128xf32>
    %122 = arith.addf %115, %121 : vector<1x128xf32>
    %123 = vector.extract_strided_slice %107 {offsets = [0, 2, 0], sizes = [1, 1, 256], strides = [1, 1, 1]} : vector<1x4x256xf32> to vector<1x1x256xf32>
    %124 = vector.shape_cast %123 : vector<1x1x256xf32> to vector<1x256xf32>
    %125 = arith.truncf %124 : vector<1x256xf32> to vector<1x256xbf16>
    %c2_114 = arith.constant 2 : index
    %c0_115 = arith.constant 0 : index
    %c0_116 = arith.constant 0 : index
    %126 = vector.load %arg5[%c2_114, %c0_115, %c0_116] : memref<4x256x128xbf16, #tpu.memory_space<vmem>>, vector<1x256x128xbf16>
    %127 = vector.shape_cast %126 : vector<1x256x128xbf16> to vector<256x128xbf16>
    %cst_117 = arith.constant dense<0.000000e+00> : vector<1x128xf32>
    %128 = tpu.matmul %125, %127, %cst_117 {dimension_numbers = #tpu.dot_dimension_numbers<[1], [0], [0], [1], [0, 0, 1, 1], [], []>} : vector<1x256xbf16>, vector<256x128xbf16>, vector<1x128xf32> -> vector<1x128xf32>
    %129 = arith.addf %122, %128 : vector<1x128xf32>
    %130 = vector.extract_strided_slice %107 {offsets = [0, 3, 0], sizes = [1, 1, 256], strides = [1, 1, 1]} : vector<1x4x256xf32> to vector<1x1x256xf32>
    %131 = vector.shape_cast %130 : vector<1x1x256xf32> to vector<1x256xf32>
    %132 = arith.truncf %131 : vector<1x256xf32> to vector<1x256xbf16>
    %c3 = arith.constant 3 : index
    %c0_118 = arith.constant 0 : index
    %c0_119 = arith.constant 0 : index
    %133 = vector.load %arg5[%c3, %c0_118, %c0_119] : memref<4x256x128xbf16, #tpu.memory_space<vmem>>, vector<1x256x128xbf16>
    %134 = vector.shape_cast %133 : vector<1x256x128xbf16> to vector<256x128xbf16>
    %cst_120 = arith.constant dense<0.000000e+00> : vector<1x128xf32>
    %135 = tpu.matmul %132, %134, %cst_120 {dimension_numbers = #tpu.dot_dimension_numbers<[1], [0], [0], [1], [0, 0, 1, 1], [], []>} : vector<1x256xbf16>, vector<256x128xbf16>, vector<1x128xf32> -> vector<1x128xf32>
    %136 = arith.addf %129, %135 : vector<1x128xf32>
    %c0_121 = arith.constant 0 : index
    %c0_122 = arith.constant 0 : index
    %137 = vector.load %arg10[%c0_121, %c0_122] : memref<1x128xf32, #tpu.memory_space<vmem>>, vector<1x128xf32>
    %138 = arith.addf %136, %137 : vector<1x128xf32>
    %cst_123 = arith.constant 0.000000e+00 : f32
    %139 = vector.broadcast %cst_123 : f32 to vector<1x128xf32>
    %140 = arith.maximumf %138, %139 : vector<1x128xf32>
    %141 = arith.truncf %140 : vector<1x128xf32> to vector<1x128xbf16>
    %c0_124 = arith.constant 0 : index
    %c0_125 = arith.constant 0 : index
    %142 = vector.load %arg6[%c0_124, %c0_125] : memref<128x16xbf16, #tpu.memory_space<vmem>>, vector<128x16xbf16>
    %cst_126 = arith.constant dense<0.000000e+00> : vector<1x16xf32>
    %143 = tpu.matmul %141, %142, %cst_126 {dimension_numbers = #tpu.dot_dimension_numbers<[1], [0], [0], [1], [0, 0, 1, 1], [], []>} : vector<1x128xbf16>, vector<128x16xbf16>, vector<1x16xf32> -> vector<1x16xf32>
    %c0_127 = arith.constant 0 : index
    %c0_128 = arith.constant 0 : index
    %144 = vector.load %arg11[%c0_127, %c0_128] : memref<1x16xf32, #tpu.memory_space<vmem>>, vector<1x16xf32>
    %145 = arith.addf %143, %144 : vector<1x16xf32>
    %146 = vector.shape_cast %145 : vector<1x16xf32> to vector<1x1x16xf32>
    %c0_129 = arith.constant 0 : index
    %c0_130 = arith.constant 0 : index
    %c0_131 = arith.constant 0 : index
    %147 = vector.load %arg12[%c0_129, %c0_130, %c0_131] : memref<1x1x16xf32, #tpu.memory_space<vmem>>, vector<1x1x16xf32>
    tpu.vector_store %arg12[%c0_129, %c0_130, %c0_131], %146 {strides = array<i32>} : memref<1x1x16xf32, #tpu.memory_space<vmem>>, vector<1x1x16xf32>,
    return
  }
  func.func @transform_0(%arg0: i32) -> (i32, i32, i32) {
    %c0_i32 = arith.constant 0 : i32
    %c0_i32_0 = arith.constant 0 : i32
    %c0_i32_1 = arith.constant 0 : i32
    return %arg0, %c0_i32, %c0_i32_0 : i32, i32, i32
  }
  func.func @transform_1(%arg0: i32) -> (i32, i32, i32) {
    %c0_i32 = arith.constant 0 : i32
    %c0_i32_0 = arith.constant 0 : i32
    %c0_i32_1 = arith.constant 0 : i32
    %c0_i32_2 = arith.constant 0 : i32
    return %c0_i32, %c0_i32_0, %c0_i32_1 : i32, i32, i32
  }
  func.func @transform_2(%arg0: i32) -> (i32, i32, i32) {
    %c0_i32 = arith.constant 0 : i32
    %c0_i32_0 = arith.constant 0 : i32
    %c0_i32_1 = arith.constant 0 : i32
    %c0_i32_2 = arith.constant 0 : i32
    return %c0_i32, %c0_i32_0, %c0_i32_1 : i32, i32, i32
  }
  func.func @transform_3(%arg0: i32) -> (i32, i32, i32) {
    %c0_i32 = arith.constant 0 : i32
    %c0_i32_0 = arith.constant 0 : i32
    %c0_i32_1 = arith.constant 0 : i32
    %c0_i32_2 = arith.constant 0 : i32
    return %c0_i32, %c0_i32_0, %c0_i32_1 : i32, i32, i32
  }
  func.func @transform_4(%arg0: i32) -> (i32, i32, i32) {
    %c0_i32 = arith.constant 0 : i32
    %c0_i32_0 = arith.constant 0 : i32
    %c0_i32_1 = arith.constant 0 : i32
    %c0_i32_2 = arith.constant 0 : i32
    return %c0_i32, %c0_i32_0, %c0_i32_1 : i32, i32, i32
  }
  func.func @transform_5(%arg0: i32) -> (i32, i32) {
    %c0_i32 = arith.constant 0 : i32
    %c0_i32_0 = arith.constant 0 : i32
    %c0_i32_1 = arith.constant 0 : i32
    return %c0_i32, %c0_i32_0 : i32, i32
  }
  func.func @transform_6(%arg0: i32) -> (i32, i32) {
    %c0_i32 = arith.constant 0 : i32
    %c0_i32_0 = arith.constant 0 : i32
    %c0_i32_1 = arith.constant 0 : i32
    return %c0_i32, %c0_i32_0 : i32, i32
  }
  func.func @transform_7(%arg0: i32) -> (i32, i32) {
    %c0_i32 = arith.constant 0 : i32
    %c0_i32_0 = arith.constant 0 : i32
    %c0_i32_1 = arith.constant 0 : i32
    return %c0_i32, %c0_i32_0 : i32, i32
  }
  func.func @transform_8(%arg0: i32) -> (i32, i32) {
    %c0_i32 = arith.constant 0 : i32
    %c0_i32_0 = arith.constant 0 : i32
    %c0_i32_1 = arith.constant 0 : i32
    return %c0_i32, %c0_i32_0 : i32, i32
  }
  func.func @transform_9(%arg0: i32) -> (i32, i32) {
    %c0_i32 = arith.constant 0 : i32
    %c0_i32_0 = arith.constant 0 : i32
    %c0_i32_1 = arith.constant 0 : i32
    return %c0_i32, %c0_i32_0 : i32, i32
  }
  func.func @transform_10(%arg0: i32) -> (i32, i32) {
    %c0_i32 = arith.constant 0 : i32
    %c0_i32_0 = arith.constant 0 : i32
    %c0_i32_1 = arith.constant 0 : i32
    return %c0_i32, %c0_i32_0 : i32, i32
  }
  func.func @transform_11(%arg0: i32) -> (i32, i32, i32) {
    %c0_i32 = arith.constant 0 : i32
    %c0_i32_0 = arith.constant 0 : i32
    %c0_i32_1 = arith.constant 0 : i32
    return %arg0, %c0_i32, %c0_i32_0 : i32, i32, i32
  }
}

</mosaic_0001>

<llo_original>
// kernel: tpu_custom_call.1
$region0: #{tpu_custom_call.1}
  #allocation0 [shape = 'u32[]', space=smem, size = 0x4, offset = 0x4, fixed_abs, tag = 'smem constant byte address 0x4 - core index']
  #allocation1 [shape = 'u32[144,128]{1,0:T(1,128)}', space=vmem, size = 0x12000, scoped, tag = 'internal scratch']
  #allocation2 [shape = 'bf16[1,144,16]{2,1,0:T(16,128)(2,1)}', space=vmem, size = 0x9000, scoped, tag = 'scratch operand']
  #allocation3 [shape = 'bf16[1,80,128]{2,1,0:T(16,128)(2,1)}', space=vmem, size = 0x5000, scoped, tag = 'scratch operand']
  #allocation4 [shape = 'bf16[1,48,128]{2,1,0:T(16,128)(2,1)}', space=vmem, size = 0x3000, scoped, tag = 'scratch operand']
  %s0 = inlined_call_operand.vmem [shape: f32[2,128,16], index: 0, kind: input, shape index: {}]
  %s1 = inlined_call_operand.vmem [shape: bf16[3,16,256], index: 1, kind: input, shape index: {}]
  %s2 = inlined_call_operand.hbm [shape: bf16[3,128,256], index: 2, kind: input, shape index: {}]
  %s3 = inlined_call_operand.hbm [shape: bf16[3,128,256], index: 3, kind: input, shape index: {}]
  %s4 = inlined_call_operand.hbm [shape: bf16[4,256,128], index: 4, kind: input, shape index: {}]
  %s5 = inlined_call_operand.vmem [shape: bf16[128,16], index: 5, kind: input, shape index: {}]
  %s6 = inlined_call_operand.vmem [shape: f32[1,128], index: 6, kind: input, shape index: {}]
  %s7 = inlined_call_operand.vmem [shape: f32[1,128], index: 7, kind: input, shape index: {}]
  %s8 = inlined_call_operand.vmem [shape: f32[1,256], index: 8, kind: input, shape index: {}]
  %s9 = inlined_call_operand.vmem [shape: f32[1,128], index: 9, kind: input, shape index: {}]
  %s10 = inlined_call_operand.vmem [shape: f32[1,16], index: 10, kind: input, shape index: {}]
  %s11 = inlined_call_operand.hbm [shape: f32[2,1,16], index: 11, kind: output, shape index: {}]
  %s12 = sld [smem:[#allocation0]]
  $region89: #{tpu_custom_call.1} parent=0
    _
  %s14 = ssub.s32 1, %s12
  %s15 = scalar_select 0, %s14, %s12
  $region1: #{tpu_custom_call.1} parent=0
    #allocation5 [shape = 'u8[196608]{0}', space=vmem, size = 0x30000, scoped, tag = 'input window, operand 2, single buffered']
    #allocation6 [shape = 's32[2]{0}', space=sflag, size = 0x8, scoped, tag = 'scoped memory for tpu_custom_call.1']
    #allocation7 [shape = 's32[2]{0}', space=sflag, size = 0x8, scoped, tag = 'scoped memory for tpu_custom_call.1']
    #allocation8 [shape = 'u8[196608]{0}', space=vmem, size = 0x30000, scoped, tag = 'input window, operand 3, single buffered']
    #allocation9 [shape = 's32[1]{0}', space=sflag, size = 0x4, scoped, tag = 'scoped memory for tpu_custom_call.1']
    #allocation10 [shape = 'u8[262144]{0}', space=vmem, size = 0x40000, scoped, tag = 'input window, operand 4, single buffered']
    #allocation11 [shape = 'u8[1024]{0}', space=vmem, size = 0x400, scoped, tag = 'output window, operand 0']
    %16 = vsyncpa [#allocation6], 0
    %17 = vsyncpa [#allocation9], 0
    %18 = vsyncpa [#allocation7], 0
    %s19 = scalar_lea.sflag [#allocation7], 1
    %20 = vsyncpa %s19, 0
    loop: start=0, step=1, limit=4
    $region2: #{tpu_custom_call.1} parent=1 // loop_pre_header
      _
    $region3: #{tpu_custom_call.1} parent=1 // loop_header
      %s22 = sphi 0, %s26
      %p23 = scmp.ge.s32.totalorder %s22, 4
      %s32 = sphi 0, %s34
      %s35 = sphi 0, %s32
      %s36 = sphi 0, %s35
      %s52 = sphi 0, %s36
      %s56 = sphi 0, %s56
      %s58 = sphi 0, %s56
      %s59 = sphi 0, %s58
      %s73 = sphi 0, %s59
      %s77 = sphi 0, %s77
      %s79 = sphi 0, %s77
      %s80 = sphi 0, %s79
      %s94 = sphi 0, %s80
      %s98 = sphi 0, %s98
      %s100 = sphi 0, %s98
      %s101 = sphi 0, %s100
      %s115 = sphi 0, %s101
      %s119 = sphi 0, %s119
      %s121 = sphi 0, %s119
      %s122 = sphi 0, %s121
      %s136 = sphi 0, %s122
      %s140 = sphi 0, %s140
      %s142 = sphi 0, %s140
      %s143 = sphi 0, %s142
      %s157 = sphi 0, %s143
      %s161 = sphi 0, %s161
      %s163 = sphi 0, %s161
      %s164 = sphi 0, %s163
      %s178 = sphi 0, %s164
      %s182 = sphi 0, %s182
      %s184 = sphi 0, %s182
      %s185 = sphi 0, %s184
      %s199 = sphi 0, %s185
      %s203 = sphi 0, %s203
      %s205 = sphi 0, %s203
      %s206 = sphi 0, %s205
      %s220 = sphi 0, %s206
      %s224 = sphi 0, %s224
      %s226 = sphi 0, %s224
      %s227 = sphi 0, %s226
      %s241 = sphi 0, %s227
      %s245 = sphi 0, %s245
      %s247 = sphi 0, %s245
      %s248 = sphi 0, %s247
      %s262 = sphi 0, %s248
      %s268 = sphi 0, %s270
      %s271 = sphi 0, %s268
      %s272 = sphi 0, %s271
      %s288 = sphi 0, %s272
    $region4: #{tpu_custom_call.1} parent=1 // loop_header_branch
      %25 = sbr.rel (%p23) target = $region8
    $region5: #{tpu_custom_call.1} parent=1 // loop_body
      %s27 = ssub.s32 %s22, 1
      %s28 = ssub.s32 %s22, 2
      %s29 = sadd.s32 %s22, 1
      %s30 = ssub.s32 %s22, %s29
      %p31 = scmp.eq.s32.totalorder %s30, 0
      %s33 = sadd.s32 %s32, 1
      %s34 = scalar_select %p31, %s32, %s33
      %p37 = pneg %p31
      %p38 = scmp.eq.s32.totalorder %s22, 1
      %p39 = por %p37, %p38
      %p40 = scmp.ne.s32.totalorder %s32, %s35
      %p41 = scmp.eq.s32.totalorder %s22, 0
      %p42 = por %p40, %p41
      %p43 = scmp.ne.s32.totalorder %s32, %s35
      %p44 = scmp.eq.s32.totalorder %s27, 1
      %p45 = por %p43, %p44
      %p46 = scmp.ne.s32.totalorder %s35, %s36
      %p47 = scmp.eq.s32.totalorder %s27, 0
      %p48 = por %p46, %p47
      %p49 = scmp.ne.s32.totalorder %s35, %s36
      %p50 = scmp.eq.s32.totalorder %s28, 1
      %p51 = por %p49, %p50
      %p53 = scmp.ne.s32.totalorder %s36, %s52
      %p54 = scmp.eq.s32.totalorder %s28, 0
      %p55 = por %p53, %p54
      %s57 = sadd.s32 %s56, 1
      %p60 = scmp.eq.s32.totalorder %s22, 1
      %p61 = scmp.ne.s32.totalorder %s56, %s58
      %p62 = scmp.eq.s32.totalorder %s22, 0
      %p63 = por %p61, %p62
      %p64 = scmp.ne.s32.totalorder %s56, %s58
      %p65 = scmp.eq.s32.totalorder %s27, 1
      %p66 = por %p64, %p65
      %p67 = scmp.ne.s32.totalorder %s58, %s59
      %p68 = scmp.eq.s32.totalorder %s27, 0
      %p69 = por %p67, %p68
      %p70 = scmp.ne.s32.totalorder %s58, %s59
      %p71 = scmp.eq.s32.totalorder %s28, 1
      %p72 = por %p70, %p71
      %p74 = scmp.ne.s32.totalorder %s59, %s73
      %p75 = scmp.eq.s32.totalorder %s28, 0
      %p76 = por %p74, %p75
      %s78 = sadd.s32 %s77, 1
      %p81 = scmp.eq.s32.totalorder %s22, 1
      %p82 = scmp.ne.s32.totalorder %s77, %s79
      %p83 = scmp.eq.s32.totalorder %s22, 0
      %p84 = por %p82, %p83
      %p85 = scmp.ne.s32.totalorder %s77, %s79
      %p86 = scmp.eq.s32.totalorder %s27, 1
      %p87 = por %p85, %p86
      %p88 = scmp.ne.s32.totalorder %s79, %s80
      %p89 = scmp.eq.s32.totalorder %s27, 0
      %p90 = por %p88, %p89
      %p91 = scmp.ne.s32.totalorder %s79, %s80
      %p92 = scmp.eq.s32.totalorder %s28, 1
      %p93 = por %p91, %p92
      %p95 = scmp.ne.s32.totalorder %s80, %s94
      %p96 = scmp.eq.s32.totalorder %s28, 0
      %p97 = por %p95, %p96
      %s99 = sadd.s32 %s98, 1
      %p102 = scmp.eq.s32.totalorder %s22, 1
      %p103 = scmp.ne.s32.totalorder %s98, %s100
      %p104 = scmp.eq.s32.totalorder %s22, 0
      %p105 = por %p103, %p104
      %p106 = scmp.ne.s32.totalorder %s98, %s100
      %p107 = scmp.eq.s32.totalorder %s27, 1
      %p108 = por %p106, %p107
      %p109 = scmp.ne.s32.totalorder %s100, %s101
      %p110 = scmp.eq.s32.totalorder %s27, 0
      %p111 = por %p109, %p110
      %p112 = scmp.ne.s32.totalorder %s100, %s101
      %p113 = scmp.eq.s32.totalorder %s28, 1
      %p114 = por %p112, %p113
      %p116 = scmp.ne.s32.totalorder %s101, %s115
      %p117 = scmp.eq.s32.totalorder %s28, 0
      %p118 = por %p116, %p117
      %s120 = sadd.s32 %s119, 1
      %p123 = scmp.eq.s32.totalorder %s22, 1
      %p124 = scmp.ne.s32.totalorder %s119, %s121
      %p125 = scmp.eq.s32.totalorder %s22, 0
      %p126 = por %p124, %p125
      %p127 = scmp.ne.s32.totalorder %s119, %s121
      %p128 = scmp.eq.s32.totalorder %s27, 1
      %p129 = por %p127, %p128
      %p130 = scmp.ne.s32.totalorder %s121, %s122
      %p131 = scmp.eq.s32.totalorder %s27, 0
      %p132 = por %p130, %p131
      %p133 = scmp.ne.s32.totalorder %s121, %s122
      %p134 = scmp.eq.s32.totalorder %s28, 1
      %p135 = por %p133, %p134
      %p137 = scmp.ne.s32.totalorder %s122, %s136
      %p138 = scmp.eq.s32.totalorder %s28, 0
      %p139 = por %p137, %p138
      %s141 = sadd.s32 %s140, 1
      %p144 = scmp.eq.s32.totalorder %s22, 1
      %p145 = scmp.ne.s32.totalorder %s140, %s142
      %p146 = scmp.eq.s32.totalorder %s22, 0
      %p147 = por %p145, %p146
      %p148 = scmp.ne.s32.totalorder %s140, %s142
      %p149 = scmp.eq.s32.totalorder %s27, 1
      %p150 = por %p148, %p149
      %p151 = scmp.ne.s32.totalorder %s142, %s143
      %p152 = scmp.eq.s32.totalorder %s27, 0
      %p153 = por %p151, %p152
      %p154 = scmp.ne.s32.totalorder %s142, %s143
      %p155 = scmp.eq.s32.totalorder %s28, 1
      %p156 = por %p154, %p155
      %p158 = scmp.ne.s32.totalorder %s143, %s157
      %p159 = scmp.eq.s32.totalorder %s28, 0
      %p160 = por %p158, %p159
      %s162 = sadd.s32 %s161, 1
      %p165 = scmp.eq.s32.totalorder %s22, 1
      %p166 = scmp.ne.s32.totalorder %s161, %s163
      %p167 = scmp.eq.s32.totalorder %s22, 0
      %p168 = por %p166, %p167
      %p169 = scmp.ne.s32.totalorder %s161, %s163
      %p170 = scmp.eq.s32.totalorder %s27, 1
      %p171 = por %p169, %p170
      %p172 = scmp.ne.s32.totalorder %s163, %s164
      %p173 = scmp.eq.s32.totalorder %s27, 0
      %p174 = por %p172, %p173
      %p175 = scmp.ne.s32.totalorder %s163, %s164
      %p176 = scmp.eq.s32.totalorder %s28, 1
      %p177 = por %p175, %p176
      %p179 = scmp.ne.s32.totalorder %s164, %s178
      %p180 = scmp.eq.s32.totalorder %s28, 0
      %p181 = por %p179, %p180
      %s183 = sadd.s32 %s182, 1
      %p186 = scmp.eq.s32.totalorder %s22, 1
      %p187 = scmp.ne.s32.totalorder %s182, %s184
      %p188 = scmp.eq.s32.totalorder %s22, 0
      %p189 = por %p187, %p188
      %p190 = scmp.ne.s32.totalorder %s182, %s184
      %p191 = scmp.eq.s32.totalorder %s27, 1
      %p192 = por %p190, %p191
      %p193 = scmp.ne.s32.totalorder %s184, %s185
      %p194 = scmp.eq.s32.totalorder %s27, 0
      %p195 = por %p193, %p194
      %p196 = scmp.ne.s32.totalorder %s184, %s185
      %p197 = scmp.eq.s32.totalorder %s28, 1
      %p198 = por %p196, %p197
      %p200 = scmp.ne.s32.totalorder %s185, %s199
      %p201 = scmp.eq.s32.totalorder %s28, 0
      %p202 = por %p200, %p201
      %s204 = sadd.s32 %s203, 1
      %p207 = scmp.eq.s32.totalorder %s22, 1
      %p208 = scmp.ne.s32.totalorder %s203, %s205
      %p209 = scmp.eq.s32.totalorder %s22, 0
      %p210 = por %p208, %p209
      %p211 = scmp.ne.s32.totalorder %s203, %s205
      %p212 = scmp.eq.s32.totalorder %s27, 1
      %p213 = por %p211, %p212
      %p214 = scmp.ne.s32.totalorder %s205, %s206
      %p215 = scmp.eq.s32.totalorder %s27, 0
      %p216 = por %p214, %p215
      %p217 = scmp.ne.s32.totalorder %s205, %s206
      %p218 = scmp.eq.s32.totalorder %s28, 1
      %p219 = por %p217, %p218
      %p221 = scmp.ne.s32.totalorder %s206, %s220
      %p222 = scmp.eq.s32.totalorder %s28, 0
      %p223 = por %p221, %p222
      %s225 = sadd.s32 %s224, 1
      %p228 = scmp.eq.s32.totalorder %s22, 1
      %p229 = scmp.ne.s32.totalorder %s224, %s226
      %p230 = scmp.eq.s32.totalorder %s22, 0
      %p231 = por %p229, %p230
      %p232 = scmp.ne.s32.totalorder %s224, %s226
      %p233 = scmp.eq.s32.totalorder %s27, 1
      %p234 = por %p232, %p233
      %p235 = scmp.ne.s32.totalorder %s226, %s227
      %p236 = scmp.eq.s32.totalorder %s27, 0
      %p237 = por %p235, %p236
      %p238 = scmp.ne.s32.totalorder %s226, %s227
      %p239 = scmp.eq.s32.totalorder %s28, 1
      %p240 = por %p238, %p239
      %p242 = scmp.ne.s32.totalorder %s227, %s241
      %p243 = scmp.eq.s32.totalorder %s28, 0
      %p244 = por %p242, %p243
      %s246 = sadd.s32 %s245, 1
      %p249 = scmp.eq.s32.totalorder %s22, 1
      %p250 = scmp.ne.s32.totalorder %s245, %s247
      %p251 = scmp.eq.s32.totalorder %s22, 0
      %p252 = por %p250, %p251
      %p253 = scmp.ne.s32.totalorder %s245, %s247
      %p254 = scmp.eq.s32.totalorder %s27, 1
      %p255 = por %p253, %p254
      %p256 = scmp.ne.s32.totalorder %s247, %s248
      %p257 = scmp.eq.s32.totalorder %s27, 0
      %p258 = por %p256, %p257
      %p259 = scmp.ne.s32.totalorder %s247, %s248
      %p260 = scmp.eq.s32.totalorder %s28, 1
      %p261 = por %p259, %p260
      %p263 = scmp.ne.s32.totalorder %s248, %s262
      %p264 = scmp.eq.s32.totalorder %s28, 0
      %p265 = por %p263, %p264
      %s266 = ssub.s32 %s22, %s29
      %p267 = scmp.eq.s32.totalorder %s266, 0
      %s269 = sadd.s32 %s268, 1
      %s270 = scalar_select %p267, %s268, %s269
      %p273 = pneg %p267
      %p274 = scmp.eq.s32.totalorder %s22, 1
      %p275 = por %p273, %p274
      %p276 = scmp.ne.s32.totalorder %s268, %s271
      %p277 = scmp.eq.s32.totalorder %s22, 0
      %p278 = por %p276, %p277
      %p279 = scmp.ne.s32.totalorder %s268, %s271
      %p280 = scmp.eq.s32.totalorder %s27, 1
      %p281 = por %p279, %p280
      %p282 = scmp.ne.s32.totalorder %s271, %s272
      %p283 = scmp.eq.s32.totalorder %s27, 0
      %p284 = por %p282, %p283
      %p285 = scmp.ne.s32.totalorder %s271, %s272
      %p286 = scmp.eq.s32.totalorder %s28, 1
      %p287 = por %p285, %p286
      %p289 = scmp.ne.s32.totalorder %s272, %s288
      %p290 = scmp.eq.s32.totalorder %s28, 0
      %p291 = por %p289, %p290
      %p292 = scmp.le.s32.totalorder 1, %s22
      %p293 = scmp.lt.s32.totalorder %s22, 3
      %p294 = pnand %p292, %p293
      %p295 = pneg %p294
      // Predicated region
      $region9: #{tpu_custom_call.1} parent=5 // pred_check
        _
      $region10: #{tpu_custom_call.1} parent=5 // pred_check_branch
        %297 = sbr.rel (%p294) target = $region12
      $region11: #{tpu_custom_call.1} parent=5 // pred_region
        %s298 = ssub.s32 %s22, 1
        // Predicated region
        $region13: #{tpu_custom_call.1} parent=11 // pred_check
          %p299 = pneg %p69
        $region14: #{tpu_custom_call.1} parent=11 // pred_check_branch
          %301 = sbr.rel (%p299) target = $region16
        $region15: #{tpu_custom_call.1} parent=11 // pred_region
          _
        $region16: #{tpu_custom_call.1} parent=11 // pred_fallthru
          _
        // Predicated region
        $region17: #{tpu_custom_call.1} parent=11 // pred_check
          %p302 = pneg %p90
        $region18: #{tpu_custom_call.1} parent=11 // pred_check_branch
          %304 = sbr.rel (%p302) target = $region20
        $region19: #{tpu_custom_call.1} parent=11 // pred_region
          %s306 = ssub.s32 6144, 6144
          %307 = vsyncadd [#allocation6], %s306
          %s308 = sshll.u32 [#allocation5], 4
          %s309 = int_to_ptr.vmem [resolvable:$true] %s308
          %314 = dma.hbm_to_vmem [thread:$0]  %s2, 6144, %s309, [#allocation6], 128, 128, 8
        $region20: #{tpu_custom_call.1} parent=11 // pred_fallthru
          _
        // Predicated region
        $region21: #{tpu_custom_call.1} parent=11 // pred_check
          %p315 = pneg %p111
        $region22: #{tpu_custom_call.1} parent=11 // pred_check_branch
          %317 = sbr.rel (%p315) target = $region24
        $region23: #{tpu_custom_call.1} parent=11 // pred_region
          %s319 = ssub.s32 6144, 6144
          %320 = vsyncadd [#allocation9], %s319
          %s321 = sshll.u32 [#allocation8], 4
          %s322 = int_to_ptr.vmem [resolvable:$true] %s321
          %327 = dma.hbm_to_vmem [thread:$0]  %s3, 6144, %s322, [#allocation9], 128, 128, 8
        $region24: #{tpu_custom_call.1} parent=11 // pred_fallthru
          _
        // Predicated region
        $region25: #{tpu_custom_call.1} parent=11 // pred_check
          %p328 = pneg %p132
        $region26: #{tpu_custom_call.1} parent=11 // pred_check_branch
          %330 = sbr.rel (%p328) target = $region28
        $region27: #{tpu_custom_call.1} parent=11 // pred_region
          %s332 = ssub.s32 8192, 8192
          %333 = vsyncadd [#allocation9], %s332
          %s334 = sshll.u32 [#allocation10], 4
          %s335 = int_to_ptr.vmem [resolvable:$true] %s334
          %340 = dma.hbm_to_vmem [thread:$0]  %s4, 8192, %s335, [#allocation9], 64, 64, 4
        $region28: #{tpu_custom_call.1} parent=11 // pred_fallthru
          _
        // Predicated region
        $region29: #{tpu_custom_call.1} parent=11 // pred_check
          %p341 = pneg %p153
        $region30: #{tpu_custom_call.1} parent=11 // pred_check_branch
          %343 = sbr.rel (%p341) target = $region32
        $region31: #{tpu_custom_call.1} parent=11 // pred_region
          _
        $region32: #{tpu_custom_call.1} parent=11 // pred_fallthru
          _
        // Predicated region
        $region33: #{tpu_custom_call.1} parent=11 // pred_check
          %p344 = pneg %p174
        $region34: #{tpu_custom_call.1} parent=11 // pred_check_branch
          %346 = sbr.rel (%p344) target = $region36
        $region35: #{tpu_custom_call.1} parent=11 // pred_region
          _
        $region36: #{tpu_custom_call.1} parent=11 // pred_fallthru
          _
        // Predicated region
        $region37: #{tpu_custom_call.1} parent=11 // pred_check
          %p347 = pneg %p195
        $region38: #{tpu_custom_call.1} parent=11 // pred_check_branch
          %349 = sbr.rel (%p347) target = $region40
        $region39: #{tpu_custom_call.1} parent=11 // pred_region
          _
        $region40: #{tpu_custom_call.1} parent=11 // pred_fallthru
          _
        // Predicated region
        $region41: #{tpu_custom_call.1} parent=11 // pred_check
          %p350 = pneg %p216
        $region42: #{tpu_custom_call.1} parent=11 // pred_check_branch
          %352 = sbr.rel (%p350) target = $region44
        $region43: #{tpu_custom_call.1} parent=11 // pred_region
          _
        $region44: #{tpu_custom_call.1} parent=11 // pred_fallthru
          _
        // Predicated region
        $region45: #{tpu_custom_call.1} parent=11 // pred_check
          %p353 = pneg %p237
        $region46: #{tpu_custom_call.1} parent=11 // pred_check_branch
          %355 = sbr.rel (%p353) target = $region48
        $region47: #{tpu_custom_call.1} parent=11 // pred_region
          _
        $region48: #{tpu_custom_call.1} parent=11 // pred_fallthru
          _
        // Predicated region
        $region49: #{tpu_custom_call.1} parent=11 // pred_check
          %p356 = pneg %p258
        $region50: #{tpu_custom_call.1} parent=11 // pred_check_branch
          %358 = sbr.rel (%p356) target = $region52
        $region51: #{tpu_custom_call.1} parent=11 // pred_region
          _
        $region52: #{tpu_custom_call.1} parent=11 // pred_fallthru
          _
      $region12: #{tpu_custom_call.1} parent=5 // pred_fallthru
        _
      %p359 = scmp.lt.s32.totalorder %s22, 2
      // Predicated region
      $region53: #{tpu_custom_call.1} parent=5 // pred_check
        %p360 = pneg %p359
      $region54: #{tpu_custom_call.1} parent=5 // pred_check_branch
        %362 = sbr.rel (%p360) target = $region56
      $region55: #{tpu_custom_call.1} parent=5 // pred_region
        // Predicated region
        $region57: #{tpu_custom_call.1} parent=55 // pred_check
          %p363 = pneg %p42
        $region58: #{tpu_custom_call.1} parent=55 // pred_check_branch
          %365 = sbr.rel (%p363) target = $region60
        $region59: #{tpu_custom_call.1} parent=55 // pred_region
          %p366 = scmp.lt.s32.totalorder %s22, 1
          %s367 = scalar_select %p366, %s22, 1
          %s368 = smul.addr %s367, 16
          %s369 = smul.addr %s368, 8
          %s370 = scalar_lea.vmem %s0, %s369
        $region60: #{tpu_custom_call.1} parent=55 // pred_fallthru
          _
      $region56: #{tpu_custom_call.1} parent=5 // pred_fallthru
        _
      %p371 = scmp.le.s32.totalorder 1, %s22
      %p372 = scmp.lt.s32.totalorder %s22, 3
      %p373 = pnand %p371, %p372
      %p374 = pneg %p373
      // Predicated region
      $region61: #{tpu_custom_call.1} parent=5 // pred_check
        _
      $region62: #{tpu_custom_call.1} parent=5 // pred_check_branch
        %376 = sbr.rel (%p373) target = $region64
      $region63: #{tpu_custom_call.1} parent=5 // pred_region
        %s377 = ssub.s32 %s22, 1
        // Predicated region
        $region65: #{tpu_custom_call.1} parent=63 // pred_check
          %p378 = pneg %p90
        $region66: #{tpu_custom_call.1} parent=63 // pred_check_branch
          %380 = sbr.rel (%p378) target = $region68
        $region67: #{tpu_custom_call.1} parent=63 // pred_region
          %381 = dma.done [#allocation6], 6144
        $region68: #{tpu_custom_call.1} parent=63 // pred_fallthru
          _
        // Predicated region
        $region69: #{tpu_custom_call.1} parent=63 // pred_check
          %p382 = pneg %p111
        $region70: #{tpu_custom_call.1} parent=63 // pred_check_branch
          %384 = sbr.rel (%p382) target = $region72
        $region71: #{tpu_custom_call.1} parent=63 // pred_region
          %385 = dma.done [#allocation9], 6144
        $region72: #{tpu_custom_call.1} parent=63 // pred_fallthru
          _
        // Predicated region
        $region73: #{tpu_custom_call.1} parent=63 // pred_check
          %p386 = pneg %p132
        $region74: #{tpu_custom_call.1} parent=63 // pred_check_branch
          %388 = sbr.rel (%p386) target = $region76
        $region75: #{tpu_custom_call.1} parent=63 // pred_region
          %389 = dma.done [#allocation9], 8192
        $region76: #{tpu_custom_call.1} parent=63 // pred_fallthru
          _
        %p390 = scmp.lt.s32.totalorder %s27, 1
        %s391 = scalar_select %p390, %s27, 1
        %s392 = smul.addr %s391, 16
        %s393 = smul.addr %s392, 8
        %s394 = scalar_lea.vmem %s0, %s393
        %p395 = pneg %p48
        %p396 = pneg %p45
        %p397 = pneg %p69
        %p398 = pneg %p66
        %p399 = pneg %p90
        %p400 = pneg %p87
        %p401 = pneg %p111
        %p402 = pneg %p108
        %p403 = pneg %p132
        %p404 = pneg %p129
        %p405 = pneg %p153
        %p406 = pneg %p150
        %p407 = pneg %p174
        %p408 = pneg %p171
        %p409 = pneg %p195
        %p410 = pneg %p192
        %p411 = pneg %p216
        %p412 = pneg %p213
        %p413 = pneg %p237
        %p414 = pneg %p234
        %p415 = pneg %p258
        %p416 = pneg %p255
        %p417 = pneg %p284
        %p418 = pneg %p281
        %s419 = sand.u32 %s271, 1
        %s420 = scalar_lea.sflag [#allocation7], %s419
        %s421 = sand.u32 %s271, 1
        %s422 = scalar_lea.vmem [#allocation11], %s421
        %p423 = scmp.lt.s32.totalorder %s27, 1
        %s424 = scalar_select %p423, %s27, 1
        %s425 = smul.addr %s424, 16
        %s426 = smul.addr %s425, 8
        %s427 = scalar_lea.vmem %s0, %s426
        %v429 = vld [vmem:[%s427] sm:$0xff]
        %v430 = vld [vmem:[%s427 + $0x8] sm:$0xff]
        %v431 = vld [vmem:[%s427 + $0x10] sm:$0xff]
        %v432 = vld [vmem:[%s427 + $0x18] sm:$0xff]
        %v433 = vld [vmem:[%s427 + $0x20] sm:$0xff]
        %v434 = vld [vmem:[%s427 + $0x28] sm:$0xff]
        %v435 = vld [vmem:[%s427 + $0x30] sm:$0xff]
        %v436 = vld [vmem:[%s427 + $0x38] sm:$0xff]
        %v437 = vld [vmem:[%s427 + $0x40] sm:$0xff]
        %v438 = vld [vmem:[%s427 + $0x48] sm:$0xff]
        %v439 = vld [vmem:[%s427 + $0x50] sm:$0xff]
        %v440 = vld [vmem:[%s427 + $0x58] sm:$0xff]
        %v441 = vld [vmem:[%s427 + $0x60] sm:$0xff]
        %v442 = vld [vmem:[%s427 + $0x68] sm:$0xff]
        %v443 = vld [vmem:[%s427 + $0x70] sm:$0xff]
        %v444 = vld [vmem:[%s427 + $0x78] sm:$0xff]
        %vm445 = vcmask 125955
        %vm446 = vsmask.f32 7950
        %vm447 = vmand %vm445, %vm446
        %v448 = vld [vmem:[#allocation2] sm:$0x8]
        %v449 = vsel %vm447, 0, %v448
        %450 = vst [vmem:[#allocation2] sm:$0x8] %v449
        %vm451 = vcmask 126980
        %vm452 = vsmask.f32 4352
        %vm453 = vmand %vm451, %vm452
        %v454 = vld [vmem:[#allocation2 + $0x40] sm:$0x10]
        %v455 = vsel %vm453, 0, %v454
        %456 = vst [vmem:[#allocation2 + $0x40] sm:$0x10] %v455
        %v457 = vpack.c.bf16 %v430, %v429
        %v458 = vpack.c.bf16 %v432, %v431
        %v459 = vpack.c.bf16 %v434, %v433
        %v460 = vpack.c.bf16 %v436, %v435
        %v461 = vpack.c.bf16 %v438, %v437
        %v462 = vpack.c.bf16 %v440, %v439
        %v463 = vpack.c.bf16 %v442, %v441
        %v464 = vpack.c.bf16 %v444, %v443
        %vm473 = vcmask 1043456
        %v474 = vrot.slane %v457, 4
        %v475 = vrot.slane %v458, 4
        %v476 = vsel %vm473, %v474, %v475
        %v477 = vrot.slane %v459, 4
        %v478 = vsel %vm473, %v475, %v477
        %v479 = vrot.slane %v460, 4
        %v480 = vsel %vm473, %v477, %v479
        %v481 = vrot.slane %v461, 4
        %v482 = vsel %vm473, %v479, %v481
        %v483 = vrot.slane %v462, 4
        %v484 = vsel %vm473, %v481, %v483
        %v485 = vrot.slane %v463, 4
        %v486 = vsel %vm473, %v483, %v485
        %v487 = vrot.slane %v464, 4
        %v488 = vsel %vm473, %v485, %v487
        %vm498 = vcmask 130052
        %499 = vst.msk [vmem:[#allocation2] sm:$0xf0] %vm498, %v474
        %vm500 = vcmask 130048
        %501 = vst.msk [vmem:[#allocation2 + $0x8] sm:$0xff] %vm500, %v476
        %502 = vst.msk [vmem:[#allocation2 + $0x10] sm:$0xff] %vm500, %v478
        %503 = vst.msk [vmem:[#allocation2 + $0x18] sm:$0xff] %vm500, %v480
        %504 = vst.msk [vmem:[#allocation2 + $0x20] sm:$0xff] %vm500, %v482
        %505 = vst.msk [vmem:[#allocation2 + $0x28] sm:$0xff] %vm500, %v484
        %506 = vst.msk [vmem:[#allocation2 + $0x30] sm:$0xff] %vm500, %v486
        %507 = vst.msk [vmem:[#allocation2 + $0x38] sm:$0xff] %vm500, %v488
        %vm508 = vcmask 125952
        %509 = vst.msk [vmem:[#allocation2 + $0x40] sm:$0xf] %vm508, %v487
        %v510 = vld [vmem:[#allocation2] sm:$0xf8]
        %v511 = vld [vmem:[#allocation2 + $0x8] sm:$0xff]
        %v512 = vld [vmem:[#allocation2 + $0x10] sm:$0xff]
        %v513 = vld [vmem:[#allocation2 + $0x18] sm:$0xff]
        %v514 = vld [vmem:[#allocation2 + $0x20] sm:$0xff]
        %v515 = vld [vmem:[#allocation2 + $0x28] sm:$0xff]
        %v516 = vld [vmem:[#allocation2 + $0x30] sm:$0xff]
        %v517 = vld [vmem:[#allocation2 + $0x38] sm:$0xff]
        %v518 = vld [vmem:[#allocation2 + $0x40] sm:$0xf]
        %v519 = vld [vmem:[%s1] sm:$0xff]
        %v520 = vld [vmem:[%s1 + $0x8] sm:$0xff]
        %v521 = vld [vmem:[#allocation2] sm:$0xf0]
        %s522 = scalar_lea.vmem %s1, 16
        %v523 = vld [vmem:[%s522] sm:$0xff]
        %v524 = vld [vmem:[%s522 + $0x8] sm:$0xff]
        %v534 = vrot.slane %v521, 4
        %v535 = vrot.slane %v511, 4
        %v536 = vsel %vm473, %v534, %v535
        %v537 = vrot.slane %v512, 4
        %v538 = vsel %vm473, %v535, %v537
        %v539 = vrot.slane %v513, 4
        %v540 = vsel %vm473, %v537, %v539
        %v541 = vrot.slane %v514, 4
        %v542 = vsel %vm473, %v539, %v541
        %v543 = vrot.slane %v515, 4
        %v544 = vsel %vm473, %v541, %v543
        %v545 = vrot.slane %v516, 4
        %v546 = vsel %vm473, %v543, %v545
        %v547 = vrot.slane %v517, 4
        %v548 = vsel %vm473, %v545, %v547
        %v549 = vrot.slane %v518, 4
        %v550 = vsel %vm473, %v547, %v549
        %v553 = vunpack.c.l.b16 %v523
        %v554 = vunpack.c.h.b16 %v523
        %v555 = vunpack.c.l.b16 %v524
        %v556 = vunpack.c.h.b16 %v524
        %v557 = vpack.c.b16 %v555, %v553
        %v558 = vpack.c.b16 %v556, %v554
        %v562 = vsel %vm500, %v536, 0
        %v565 = vsel %vm500, %v538, 0
        %v568 = vsel %vm500, %v540, 0
        %v571 = vsel %vm500, %v542, 0
        %v574 = vsel %vm500, %v544, 0
        %v577 = vsel %vm500, %v546, 0
        %v580 = vsel %vm500, %v548, 0
        %v583 = vsel %vm500, %v550, 0
        %585 = vmatprep.subr.bf16.mxu0 %v558
        %586 = vmatpush1.bf16.msra.mxu0 %v557
        %587 = vmatprep.subr.bf16.mxu0 0
        %588 = vmatpush1.bf16.msra.mxu0 0
        %589 = vmatprep.subr.bf16.mxu0 0
        %590 = vmatpush1.bf16.msra.mxu0 0
        %591 = vmatprep.subr.bf16.mxu0 0
        %592 = vmatpush1.bf16.msra.mxu0 0
        %593 = vmatprep.subr.bf16.mxu0 0
        %594 = vmatpush1.bf16.msra.mxu0 0
        %595 = vmatprep.subr.bf16.mxu0 0
        %596 = vmatpush1.bf16.msra.mxu0 0
        %597 = vmatprep.subr.bf16.mxu0 0
        %598 = vmatpush1.bf16.msra.mxu0 0
        %599 = vmatprep.subr.bf16.mxu0 0
        %600 = vmatpush1.bf16.msra.mxu0 0
        %601 = vmatprep.subr.bf16.mxu0 0
        %602 = vmatpush1.bf16.msra.mxu0 0
        %603 = vmatprep.subr.bf16.mxu0 0
        %604 = vmatpush1.bf16.msra.mxu0 0
        %605 = vmatprep.subr.bf16.mxu0 0
        %606 = vmatpush1.bf16.msra.mxu0 0
        %607 = vmatprep.subr.bf16.mxu0 0
        %608 = vmatpush1.bf16.msra.mxu0 0
        %609 = vmatprep.subr.bf16.mxu0 0
        %610 = vmatpush1.bf16.msra.mxu0 0
        %611 = vmatprep.subr.bf16.mxu0 0
        %612 = vmatpush1.bf16.msra.mxu0 0
        %613 = vmatprep.subr.bf16.mxu0 0
        %614 = vmatpush1.bf16.msra.mxu0 0
        %615 = vmatprep.subr.bf16.mxu0 0
        %616 = vmatpush1.bf16.msra.mxu0 0
        %617 = vmatprep.mubr.bf16.mxu0 0
        %618 = vmatmul.mubr.bf16.gmra.mrb[0].mxu0 %v562
        %v619 = vpop.f32.mrb[0].mxu0
        %v620 = vadd.f32 0.0, %v619
        %v621 = vpop.f32.mrb[0].mxu0
        %v622 = vadd.f32 0.0, %v621
        %v623 = vpop.f32.mrb[0].mxu0
        %v624 = vadd.f32 0.0, %v623
        %v625 = vpop.f32.mrb[0].mxu0
        %v626 = vadd.f32 0.0, %v625
        %627 = vmatprep.mubr.bf16.mxu0 0
        %628 = vmatmul.mubr.bf16.gmra.mrb[0].mxu0 %v565
        %v629 = vpop.f32.mrb[0].mxu0
        %v630 = vadd.f32 0.0, %v629
        %v631 = vpop.f32.mrb[0].mxu0
        %v632 = vadd.f32 0.0, %v631
        %v633 = vpop.f32.mrb[0].mxu0
        %v634 = vadd.f32 0.0, %v633
        %v635 = vpop.f32.mrb[0].mxu0
        %v636 = vadd.f32 0.0, %v635
        %637 = vmatprep.mubr.bf16.mxu0 0
        %638 = vmatmul.mubr.bf16.gmra.mrb[0].mxu0 %v568
        %v639 = vpop.f32.mrb[0].mxu0
        %v640 = vadd.f32 0.0, %v639
        %v641 = vpop.f32.mrb[0].mxu0
        %v642 = vadd.f32 0.0, %v641
        %v643 = vpop.f32.mrb[0].mxu0
        %v644 = vadd.f32 0.0, %v643
        %v645 = vpop.f32.mrb[0].mxu0
        %v646 = vadd.f32 0.0, %v645
        %647 = vmatprep.mubr.bf16.mxu0 0
        %648 = vmatmul.mubr.bf16.gmra.mrb[0].mxu0 %v571
        %v649 = vpop.f32.mrb[0].mxu0
        %v650 = vadd.f32 0.0, %v649
        %v651 = vpop.f32.mrb[0].mxu0
        %v652 = vadd.f32 0.0, %v651
        %v653 = vpop.f32.mrb[0].mxu0
        %v654 = vadd.f32 0.0, %v653
        %v655 = vpop.f32.mrb[0].mxu0
        %v656 = vadd.f32 0.0, %v655
        %657 = vmatprep.mubr.bf16.mxu0 0
        %658 = vmatmul.mubr.bf16.gmra.mrb[0].mxu0 %v574
        %v659 = vpop.f32.mrb[0].mxu0
        %v660 = vadd.f32 0.0, %v659
        %v661 = vpop.f32.mrb[0].mxu0
        %v662 = vadd.f32 0.0, %v661
        %v663 = vpop.f32.mrb[0].mxu0
        %v664 = vadd.f32 0.0, %v663
        %v665 = vpop.f32.mrb[0].mxu0
        %v666 = vadd.f32 0.0, %v665
        %667 = vmatprep.mubr.bf16.mxu0 0
        %668 = vmatmul.mubr.bf16.gmra.mrb[0].mxu0 %v577
        %v669 = vpop.f32.mrb[0].mxu0
        %v670 = vadd.f32 0.0, %v669
        %v671 = vpop.f32.mrb[0].mxu0
        %v672 = vadd.f32 0.0, %v671
        %v673 = vpop.f32.mrb[0].mxu0
        %v674 = vadd.f32 0.0, %v673
        %v675 = vpop.f32.mrb[0].mxu0
        %v676 = vadd.f32 0.0, %v675
        %677 = vmatprep.mubr.bf16.mxu0 0
        %678 = vmatmul.mubr.bf16.gmra.mrb[0].mxu0 %v580
        %v679 = vpop.f32.mrb[0].mxu0
        %v680 = vadd.f32 0.0, %v679
        %v681 = vpop.f32.mrb[0].mxu0
        %v682 = vadd.f32 0.0, %v681
        %v683 = vpop.f32.mrb[0].mxu0
        %v684 = vadd.f32 0.0, %v683
        %v685 = vpop.f32.mrb[0].mxu0
        %v686 = vadd.f32 0.0, %v685
        %687 = vmatprep.mubr.bf16.mxu0 0
        %688 = vmatmul.mubr.bf16.gmra.mrb[0].mxu0 %v583
        %v689 = vpop.f32.mrb[0].mxu0
        %v690 = vadd.f32 0.0, %v689
        %v691 = vpop.f32.mrb[0].mxu0
        %v692 = vadd.f32 0.0, %v691
        %v693 = vpop.f32.mrb[0].mxu0
        %v694 = vadd.f32 0.0, %v693
        %v695 = vpop.f32.mrb[0].mxu0
        %v696 = vadd.f32 0.0, %v695
        %697 = vdwg.mxu0
        %v699 = vshrl.u32 %v510, 16
        %v701 = vrot.slane %v699, 3
        %v702 = vshll.u32 %v510, 16
        %v704 = vrot.slane %v702, 4
        %v705 = vor.u32 %v701, %v704
        %v707 = vshrl.u32 %v511, 16
        %v709 = vrot.slane %v707, 3
        %v710 = vshll.u32 %v511, 16
        %v712 = vrot.slane %v710, 4
        %v713 = vor.u32 %v709, %v712
        %v714 = vsel %vm452, %v705, %v713
        %v716 = vshrl.u32 %v512, 16
        %v718 = vrot.slane %v716, 3
        %v719 = vshll.u32 %v512, 16
        %v721 = vrot.slane %v719, 4
        %v722 = vor.u32 %v718, %v721
        %v723 = vsel %vm452, %v713, %v722
        %v725 = vshrl.u32 %v513, 16
        %v727 = vrot.slane %v725, 3
        %v728 = vshll.u32 %v513, 16
        %v730 = vrot.slane %v728, 4
        %v731 = vor.u32 %v727, %v730
        %v732 = vsel %vm452, %v722, %v731
        %v734 = vshrl.u32 %v514, 16
        %v736 = vrot.slane %v734, 3
        %v737 = vshll.u32 %v514, 16
        %v739 = vrot.slane %v737, 4
        %v740 = vor.u32 %v736, %v739
        %v741 = vsel %vm452, %v731, %v740
        %v743 = vshrl.u32 %v515, 16
        %v745 = vrot.slane %v743, 3
        %v746 = vshll.u32 %v515, 16
        %v748 = vrot.slane %v746, 4
        %v749 = vor.u32 %v745, %v748
        %v750 = vsel %vm452, %v740, %v749
        %v752 = vshrl.u32 %v516, 16
        %v754 = vrot.slane %v752, 3
        %v755 = vshll.u32 %v516, 16
        %v757 = vrot.slane %v755, 4
        %v758 = vor.u32 %v754, %v757
        %v759 = vsel %vm452, %v749, %v758
        %v761 = vshrl.u32 %v517, 16
        %v763 = vrot.slane %v761, 3
        %v764 = vshll.u32 %v517, 16
        %v766 = vrot.slane %v764, 4
        %v767 = vor.u32 %v763, %v766
        %v768 = vsel %vm452, %v758, %v767
        %v770 = vshrl.u32 %v518, 16
        %v772 = vrot.slane %v770, 3
        %v773 = vshll.u32 %v518, 16
        %v775 = vrot.slane %v773, 4
        %v776 = vor.u32 %v772, %v775
        %v777 = vsel %vm452, %v767, %v776
        %v780 = vunpack.c.l.b16 %v519
        %v781 = vunpack.c.h.b16 %v519
        %v782 = vunpack.c.l.b16 %v520
        %v783 = vunpack.c.h.b16 %v520
        %v784 = vpack.c.b16 %v782, %v780
        %v785 = vpack.c.b16 %v783, %v781
        %v789 = vsel %vm500, %v714, 0
        %v792 = vsel %vm500, %v723, 0
        %v795 = vsel %vm500, %v732, 0
        %v798 = vsel %vm500, %v741, 0
        %v801 = vsel %vm500, %v750, 0
        %v804 = vsel %vm500, %v759, 0
        %v807 = vsel %vm500, %v768, 0
        %v810 = vsel %vm500, %v777, 0
        %812 = vmatprep.subr.bf16.mxu0 %v785
        %813 = vmatpush1.bf16.msra.mxu0 %v784
        %814 = vmatprep.subr.bf16.mxu0 0
        %815 = vmatpush1.bf16.msra.mxu0 0
        %816 = vmatprep.subr.bf16.mxu0 0
        %817 = vmatpush1.bf16.msra.mxu0 0
        %818 = vmatprep.subr.bf16.mxu0 0
        %819 = vmatpush1.bf16.msra.mxu0 0
        %820 = vmatprep.subr.bf16.mxu0 0
        %821 = vmatpush1.bf16.msra.mxu0 0
        %822 = vmatprep.subr.bf16.mxu0 0
        %823 = vmatpush1.bf16.msra.mxu0 0
        %824 = vmatprep.subr.bf16.mxu0 0
        %825 = vmatpush1.bf16.msra.mxu0 0
        %826 = vmatprep.subr.bf16.mxu0 0
        %827 = vmatpush1.bf16.msra.mxu0 0
        %828 = vmatprep.subr.bf16.mxu0 0
        %829 = vmatpush1.bf16.msra.mxu0 0
        %830 = vmatprep.subr.bf16.mxu0 0
        %831 = vmatpush1.bf16.msra.mxu0 0
        %832 = vmatprep.subr.bf16.mxu0 0
        %833 = vmatpush1.bf16.msra.mxu0 0
        %834 = vmatprep.subr.bf16.mxu0 0
        %835 = vmatpush1.bf16.msra.mxu0 0
        %836 = vmatprep.subr.bf16.mxu0 0
        %837 = vmatpush1.bf16.msra.mxu0 0
        %838 = vmatprep.subr.bf16.mxu0 0
        %839 = vmatpush1.bf16.msra.mxu0 0
        %840 = vmatprep.subr.bf16.mxu0 0
        %841 = vmatpush1.bf16.msra.mxu0 0
        %842 = vmatprep.subr.bf16.mxu0 0
        %843 = vmatpush1.bf16.msra.mxu0 0
        %844 = vmatprep.mubr.bf16.mxu0 0
        %845 = vmatmul.mubr.bf16.gmra.mrb[0].mxu0 %v789
        %v846 = vpop.f32.mrb[0].mxu0
        %v847 = vadd.f32 %v620, %v846
        %v848 = vpop.f32.mrb[0].mxu0
        %v849 = vadd.f32 %v622, %v848
        %v850 = vpop.f32.mrb[0].mxu0
        %v851 = vadd.f32 %v624, %v850
        %v852 = vpop.f32.mrb[0].mxu0
        %v853 = vadd.f32 %v626, %v852
        %854 = vmatprep.mubr.bf16.mxu0 0
        %855 = vmatmul.mubr.bf16.gmra.mrb[0].mxu0 %v792
        %v856 = vpop.f32.mrb[0].mxu0
        %v857 = vadd.f32 %v630, %v856
        %v858 = vpop.f32.mrb[0].mxu0
        %v859 = vadd.f32 %v632, %v858
        %v860 = vpop.f32.mrb[0].mxu0
        %v861 = vadd.f32 %v634, %v860
        %v862 = vpop.f32.mrb[0].mxu0
        %v863 = vadd.f32 %v636, %v862
        %864 = vmatprep.mubr.bf16.mxu0 0
        %865 = vmatmul.mubr.bf16.gmra.mrb[0].mxu0 %v795
        %v866 = vpop.f32.mrb[0].mxu0
        %v867 = vadd.f32 %v640, %v866
        %v868 = vpop.f32.mrb[0].mxu0
        %v869 = vadd.f32 %v642, %v868
        %v870 = vpop.f32.mrb[0].mxu0
        %v871 = vadd.f32 %v644, %v870
        %v872 = vpop.f32.mrb[0].mxu0
        %v873 = vadd.f32 %v646, %v872
        %874 = vmatprep.mubr.bf16.mxu0 0
        %875 = vmatmul.mubr.bf16.gmra.mrb[0].mxu0 %v798
        %v876 = vpop.f32.mrb[0].mxu0
        %v877 = vadd.f32 %v650, %v876
        %v878 = vpop.f32.mrb[0].mxu0
        %v879 = vadd.f32 %v652, %v878
        %v880 = vpop.f32.mrb[0].mxu0
        %v881 = vadd.f32 %v654, %v880
        %v882 = vpop.f32.mrb[0].mxu0
        %v883 = vadd.f32 %v656, %v882
        %884 = vmatprep.mubr.bf16.mxu0 0
        %885 = vmatmul.mubr.bf16.gmra.mrb[0].mxu0 %v801
        %v886 = vpop.f32.mrb[0].mxu0
        %v887 = vadd.f32 %v660, %v886
        %v888 = vpop.f32.mrb[0].mxu0
        %v889 = vadd.f32 %v662, %v888
        %v890 = vpop.f32.mrb[0].mxu0
        %v891 = vadd.f32 %v664, %v890
        %v892 = vpop.f32.mrb[0].mxu0
        %v893 = vadd.f32 %v666, %v892
        %894 = vmatprep.mubr.bf16.mxu0 0
        %895 = vmatmul.mubr.bf16.gmra.mrb[0].mxu0 %v804
        %v896 = vpop.f32.mrb[0].mxu0
        %v897 = vadd.f32 %v670, %v896
        %v898 = vpop.f32.mrb[0].mxu0
        %v899 = vadd.f32 %v672, %v898
        %v900 = vpop.f32.mrb[0].mxu0
        %v901 = vadd.f32 %v674, %v900
        %v902 = vpop.f32.mrb[0].mxu0
        %v903 = vadd.f32 %v676, %v902
        %904 = vmatprep.mubr.bf16.mxu0 0
        %905 = vmatmul.mubr.bf16.gmra.mrb[0].mxu0 %v807
        %v906 = vpop.f32.mrb[0].mxu0
        %v907 = vadd.f32 %v680, %v906
        %v908 = vpop.f32.mrb[0].mxu0
        %v909 = vadd.f32 %v682, %v908
        %v910 = vpop.f32.mrb[0].mxu0
        %v911 = vadd.f32 %v684, %v910
        %v912 = vpop.f32.mrb[0].mxu0
        %v913 = vadd.f32 %v686, %v912
        %914 = vmatprep.mubr.bf16.mxu0 0
        %915 = vmatmul.mubr.bf16.gmra.mrb[0].mxu0 %v810
        %v916 = vpop.f32.mrb[0].mxu0
        %v917 = vadd.f32 %v690, %v916
        %v918 = vpop.f32.mrb[0].mxu0
        %v919 = vadd.f32 %v692, %v918
        %v920 = vpop.f32.mrb[0].mxu0
        %v921 = vadd.f32 %v694, %v920
        %v922 = vpop.f32.mrb[0].mxu0
        %v923 = vadd.f32 %v696, %v922
        %924 = vdwg.mxu0
        %v925 = vld [vmem:[#allocation2 + $0x40] sm:$0x1f]
        %s926 = scalar_lea.vmem %s1, 32
        %v927 = vld [vmem:[%s926] sm:$0xff]
        %v928 = vld [vmem:[%s926 + $0x8] sm:$0xff]
        %vm929 = vsmask.f32 3328
        %v931 = vshrl.u32 %v521, 16
        %v933 = vrot.slane %v931, 4
        %v934 = vshll.u32 %v521, 16
        %v936 = vrot.slane %v934, 5
        %v937 = vor.u32 %v933, %v936
        %v938 = vrot.slane %v707, 4
        %v939 = vrot.slane %v710, 5
        %v940 = vor.u32 %v938, %v939
        %v941 = vsel %vm929, %v937, %v940
        %v942 = vrot.slane %v716, 4
        %v943 = vrot.slane %v719, 5
        %v944 = vor.u32 %v942, %v943
        %v945 = vsel %vm929, %v940, %v944
        %v946 = vrot.slane %v725, 4
        %v947 = vrot.slane %v728, 5
        %v948 = vor.u32 %v946, %v947
        %v949 = vsel %vm929, %v944, %v948
        %v950 = vrot.slane %v734, 4
        %v951 = vrot.slane %v737, 5
        %v952 = vor.u32 %v950, %v951
        %v953 = vsel %vm929, %v948, %v952
        %v954 = vrot.slane %v743, 4
        %v955 = vrot.slane %v746, 5
        %v956 = vor.u32 %v954, %v955
        %v957 = vsel %vm929, %v952, %v956
        %v958 = vrot.slane %v752, 4
        %v959 = vrot.slane %v755, 5
        %v960 = vor.u32 %v958, %v959
        %v961 = vsel %vm929, %v956, %v960
        %v962 = vrot.slane %v761, 4
        %v963 = vrot.slane %v764, 5
        %v964 = vor.u32 %v962, %v963
        %v965 = vsel %vm929, %v960, %v964
        %v967 = vshrl.u32 %v925, 16
        %v969 = vrot.slane %v967, 4
        %v970 = vshll.u32 %v925, 16
        %v972 = vrot.slane %v970, 5
        %v973 = vor.u32 %v969, %v972
        %v974 = vsel %vm929, %v964, %v973
        %v977 = vunpack.c.l.b16 %v927
        %v978 = vunpack.c.h.b16 %v927
        %v979 = vunpack.c.l.b16 %v928
        %v980 = vunpack.c.h.b16 %v928
        %v981 = vpack.c.b16 %v979, %v977
        %v982 = vpack.c.b16 %v980, %v978
        %v986 = vsel %vm500, %v941, 0
        %v989 = vsel %vm500, %v945, 0
        %v992 = vsel %vm500, %v949, 0
        %v995 = vsel %vm500, %v953, 0
        %v998 = vsel %vm500, %v957, 0
        %v1001 = vsel %vm500, %v961, 0
        %v1004 = vsel %vm500, %v965, 0
        %v1007 = vsel %vm500, %v974, 0
        %1009 = vmatprep.subr.bf16.mxu0 %v982
        %1010 = vmatpush1.bf16.msra.mxu0 %v981
        %1011 = vmatprep.subr.bf16.mxu0 0
        %1012 = vmatpush1.bf16.msra.mxu0 0
        %1013 = vmatprep.subr.bf16.mxu0 0
        %1014 = vmatpush1.bf16.msra.mxu0 0
        %1015 = vmatprep.subr.bf16.mxu0 0
        %1016 = vmatpush1.bf16.msra.mxu0 0
        %1017 = vmatprep.subr.bf16.mxu0 0
        %1018 = vmatpush1.bf16.msra.mxu0 0
        %1019 = vmatprep.subr.bf16.mxu0 0
        %1020 = vmatpush1.bf16.msra.mxu0 0
        %1021 = vmatprep.subr.bf16.mxu0 0
        %1022 = vmatpush1.bf16.msra.mxu0 0
        %1023 = vmatprep.subr.bf16.mxu0 0
        %1024 = vmatpush1.bf16.msra.mxu0 0
        %1025 = vmatprep.subr.bf16.mxu0 0
        %1026 = vmatpush1.bf16.msra.mxu0 0
        %1027 = vmatprep.subr.bf16.mxu0 0
        %1028 = vmatpush1.bf16.msra.mxu0 0
        %1029 = vmatprep.subr.bf16.mxu0 0
        %1030 = vmatpush1.bf16.msra.mxu0 0
        %1031 = vmatprep.subr.bf16.mxu0 0
        %1032 = vmatpush1.bf16.msra.mxu0 0
        %1033 = vmatprep.subr.bf16.mxu0 0
        %1034 = vmatpush1.bf16.msra.mxu0 0
        %1035 = vmatprep.subr.bf16.mxu0 0
        %1036 = vmatpush1.bf16.msra.mxu0 0
        %1037 = vmatprep.subr.bf16.mxu0 0
        %1038 = vmatpush1.bf16.msra.mxu0 0
        %1039 = vmatprep.subr.bf16.mxu0 0
        %1040 = vmatpush1.bf16.msra.mxu0 0
        %1041 = vmatprep.mubr.bf16.mxu0 0
        %1042 = vmatmul.mubr.bf16.gmra.mrb[0].mxu0 %v986
        %v1043 = vpop.f32.mrb[0].mxu0
        %v1044 = vadd.f32 0.0, %v1043
        %v1045 = vpop.f32.mrb[0].mxu0
        %v1046 = vadd.f32 0.0, %v1045
        %v1047 = vpop.f32.mrb[0].mxu0
        %v1048 = vadd.f32 0.0, %v1047
        %v1049 = vpop.f32.mrb[0].mxu0
        %v1050 = vadd.f32 0.0, %v1049
        %1051 = vmatprep.mubr.bf16.mxu0 0
        %1052 = vmatmul.mubr.bf16.gmra.mrb[0].mxu0 %v989
        %v1053 = vpop.f32.mrb[0].mxu0
        %v1054 = vadd.f32 0.0, %v1053
        %v1055 = vpop.f32.mrb[0].mxu0
        %v1056 = vadd.f32 0.0, %v1055
        %v1057 = vpop.f32.mrb[0].mxu0
        %v1058 = vadd.f32 0.0, %v1057
        %v1059 = vpop.f32.mrb[0].mxu0
        %v1060 = vadd.f32 0.0, %v1059
        %1061 = vmatprep.mubr.bf16.mxu0 0
        %1062 = vmatmul.mubr.bf16.gmra.mrb[0].mxu0 %v992
        %v1063 = vpop.f32.mrb[0].mxu0
        %v1064 = vadd.f32 0.0, %v1063
        %v1065 = vpop.f32.mrb[0].mxu0
        %v1066 = vadd.f32 0.0, %v1065
        %v1067 = vpop.f32.mrb[0].mxu0
        %v1068 = vadd.f32 0.0, %v1067
        %v1069 = vpop.f32.mrb[0].mxu0
        %v1070 = vadd.f32 0.0, %v1069
        %1071 = vmatprep.mubr.bf16.mxu0 0
        %1072 = vmatmul.mubr.bf16.gmra.mrb[0].mxu0 %v995
        %v1073 = vpop.f32.mrb[0].mxu0
        %v1074 = vadd.f32 0.0, %v1073
        %v1075 = vpop.f32.mrb[0].mxu0
        %v1076 = vadd.f32 0.0, %v1075
        %v1077 = vpop.f32.mrb[0].mxu0
        %v1078 = vadd.f32 0.0, %v1077
        %v1079 = vpop.f32.mrb[0].mxu0
        %v1080 = vadd.f32 0.0, %v1079
        %1081 = vmatprep.mubr.bf16.mxu0 0
        %1082 = vmatmul.mubr.bf16.gmra.mrb[0].mxu0 %v998
        %v1083 = vpop.f32.mrb[0].mxu0
        %v1084 = vadd.f32 0.0, %v1083
        %v1085 = vpop.f32.mrb[0].mxu0
        %v1086 = vadd.f32 0.0, %v1085
        %v1087 = vpop.f32.mrb[0].mxu0
        %v1088 = vadd.f32 0.0, %v1087
        %v1089 = vpop.f32.mrb[0].mxu0
        %v1090 = vadd.f32 0.0, %v1089
        %1091 = vmatprep.mubr.bf16.mxu0 0
        %1092 = vmatmul.mubr.bf16.gmra.mrb[0].mxu0 %v1001
        %v1093 = vpop.f32.mrb[0].mxu0
        %v1094 = vadd.f32 0.0, %v1093
        %v1095 = vpop.f32.mrb[0].mxu0
        %v1096 = vadd.f32 0.0, %v1095
        %v1097 = vpop.f32.mrb[0].mxu0
        %v1098 = vadd.f32 0.0, %v1097
        %v1099 = vpop.f32.mrb[0].mxu0
        %v1100 = vadd.f32 0.0, %v1099
        %1101 = vmatprep.mubr.bf16.mxu0 0
        %1102 = vmatmul.mubr.bf16.gmra.mrb[0].mxu0 %v1004
        %v1103 = vpop.f32.mrb[0].mxu0
        %v1104 = vadd.f32 0.0, %v1103
        %v1105 = vpop.f32.mrb[0].mxu0
        %v1106 = vadd.f32 0.0, %v1105
        %v1107 = vpop.f32.mrb[0].mxu0
        %v1108 = vadd.f32 0.0, %v1107
        %v1109 = vpop.f32.mrb[0].mxu0
        %v1110 = vadd.f32 0.0, %v1109
        %1111 = vmatprep.mubr.bf16.mxu0 0
        %1112 = vmatmul.mubr.bf16.gmra.mrb[0].mxu0 %v1007
        %v1113 = vpop.f32.mrb[0].mxu0
        %v1114 = vadd.f32 0.0, %v1113
        %v1115 = vpop.f32.mrb[0].mxu0
        %v1116 = vadd.f32 0.0, %v1115
        %v1117 = vpop.f32.mrb[0].mxu0
        %v1118 = vadd.f32 0.0, %v1117
        %v1119 = vpop.f32.mrb[0].mxu0
        %v1120 = vadd.f32 0.0, %v1119
        %1121 = vdwg.mxu0
        %v1122 = vadd.f32 %v847, %v1044
        %v1123 = vadd.f32 %v849, %v1046
        %v1124 = vadd.f32 %v851, %v1048
        %v1125 = vadd.f32 %v853, %v1050
        %v1126 = vadd.f32 %v857, %v1054
        %v1127 = vadd.f32 %v859, %v1056
        %v1128 = vadd.f32 %v861, %v1058
        %v1129 = vadd.f32 %v863, %v1060
        %v1130 = vadd.f32 %v867, %v1064
        %v1131 = vadd.f32 %v869, %v1066
        %v1132 = vadd.f32 %v871, %v1068
        %v1133 = vadd.f32 %v873, %v1070
        %v1134 = vadd.f32 %v877, %v1074
        %v1135 = vadd.f32 %v879, %v1076
        %v1136 = vadd.f32 %v881, %v1078
        %v1137 = vadd.f32 %v883, %v1080
        %v1138 = vadd.f32 %v887, %v1084
        %v1139 = vadd.f32 %v889, %v1086
        %v1140 = vadd.f32 %v891, %v1088
        %v1141 = vadd.f32 %v893, %v1090
        %v1142 = vadd.f32 %v897, %v1094
        %v1143 = vadd.f32 %v899, %v1096
        %v1144 = vadd.f32 %v901, %v1098
        %v1145 = vadd.f32 %v903, %v1100
        %v1146 = vadd.f32 %v907, %v1104
        %v1147 = vadd.f32 %v909, %v1106
        %v1148 = vadd.f32 %v911, %v1108
        %v1149 = vadd.f32 %v913, %v1110
        %v1150 = vadd.f32 %v917, %v1114
        %v1151 = vadd.f32 %v919, %v1116
        %v1152 = vadd.f32 %v921, %v1118
        %v1153 = vadd.f32 %v923, %v1120
        %v1186 = vcombine.low %v1122, %v1123
        %v1187 = vcombine.high %v1122, %v1123
        %v1189 = vunpack.c.l.s4 1983009808
        %v1190 = vunpack.c.0.s8 %v1189
        %v1191 = vlaneseq
        %v1192 = vshrl.u32 %v1191, 7
        %v1193 = vsub.s32 %v1190, %v1192
        %v1194 = vrot.slane %v1186, %v1193
        %v1196 = vunpack.c.l.s4 1983009808
        %v1197 = vunpack.c.0.s8 %v1196
        %v1198 = vlaneseq
        %v1199 = vshrl.u32 %v1198, 7
        %v1200 = vsub.s32 %v1197, %v1199
        %v1201 = vrot.slane %v1187, %v1200
        %v1202 = vcombine.high %v1194, %v1194
        %v1203 = vcombine.high %v1201, %v1201
        %v1204 = vcombine.low %v1124, %v1125
        %v1205 = vcombine.high %v1124, %v1125
        %v1207 = vunpack.c.l.s4 1983009808
        %v1208 = vunpack.c.0.s8 %v1207
        %v1209 = vlaneseq
        %v1210 = vshrl.u32 %v1209, 7
        %v1211 = vsub.s32 %v1208, %v1210
        %v1212 = vrot.slane %v1204, %v1211
        %v1214 = vunpack.c.l.s4 1983009808
        %v1215 = vunpack.c.0.s8 %v1214
        %v1216 = vlaneseq
        %v1217 = vshrl.u32 %v1216, 7
        %v1218 = vsub.s32 %v1215, %v1217
        %v1219 = vrot.slane %v1205, %v1218
        %v1220 = vcombine.high %v1212, %v1212
        %v1221 = vcombine.high %v1219, %v1219
        %v1222 = vcombine.low %v1126, %v1127
        %v1223 = vcombine.high %v1126, %v1127
        %v1225 = vunpack.c.l.s4 1983009808
        %v1226 = vunpack.c.0.s8 %v1225
        %v1227 = vlaneseq
        %v1228 = vshrl.u32 %v1227, 7
        %v1229 = vsub.s32 %v1226, %v1228
        %v1230 = vrot.slane %v1222, %v1229
        %v1232 = vunpack.c.l.s4 1983009808
        %v1233 = vunpack.c.0.s8 %v1232
        %v1234 = vlaneseq
        %v1235 = vshrl.u32 %v1234, 7
        %v1236 = vsub.s32 %v1233, %v1235
        %v1237 = vrot.slane %v1223, %v1236
        %v1238 = vcombine.high %v1230, %v1230
        %v1239 = vcombine.high %v1237, %v1237
        %v1240 = vcombine.low %v1128, %v1129
        %v1241 = vcombine.high %v1128, %v1129
        %v1243 = vunpack.c.l.s4 1983009808
        %v1244 = vunpack.c.0.s8 %v1243
        %v1245 = vlaneseq
        %v1246 = vshrl.u32 %v1245, 7
        %v1247 = vsub.s32 %v1244, %v1246
        %v1248 = vrot.slane %v1240, %v1247
        %v1250 = vunpack.c.l.s4 1983009808
        %v1251 = vunpack.c.0.s8 %v1250
        %v1252 = vlaneseq
        %v1253 = vshrl.u32 %v1252, 7
        %v1254 = vsub.s32 %v1251, %v1253
        %v1255 = vrot.slane %v1241, %v1254
        %v1256 = vcombine.high %v1248, %v1248
        %v1257 = vcombine.high %v1255, %v1255
        %v1258 = vcombine.low %v1130, %v1131
        %v1259 = vcombine.high %v1130, %v1131
        %v1261 = vunpack.c.l.s4 1983009808
        %v1262 = vunpack.c.0.s8 %v1261
        %v1263 = vlaneseq
        %v1264 = vshrl.u32 %v1263, 7
        %v1265 = vsub.s32 %v1262, %v1264
        %v1266 = vrot.slane %v1258, %v1265
        %v1268 = vunpack.c.l.s4 1983009808
        %v1269 = vunpack.c.0.s8 %v1268
        %v1270 = vlaneseq
        %v1271 = vshrl.u32 %v1270, 7
        %v1272 = vsub.s32 %v1269, %v1271
        %v1273 = vrot.slane %v1259, %v1272
        %v1274 = vcombine.high %v1266, %v1266
        %v1275 = vcombine.high %v1273, %v1273
        %v1276 = vcombine.low %v1132, %v1133
        %v1277 = vcombine.high %v1132, %v1133
        %v1279 = vunpack.c.l.s4 1983009808
        %v1280 = vunpack.c.0.s8 %v1279
        %v1281 = vlaneseq
        %v1282 = vshrl.u32 %v1281, 7
        %v1283 = vsub.s32 %v1280, %v1282
        %v1284 = vrot.slane %v1276, %v1283
        %v1286 = vunpack.c.l.s4 1983009808
        %v1287 = vunpack.c.0.s8 %v1286
        %v1288 = vlaneseq
        %v1289 = vshrl.u32 %v1288, 7
        %v1290 = vsub.s32 %v1287, %v1289
        %v1291 = vrot.slane %v1277, %v1290
        %v1292 = vcombine.high %v1284, %v1284
        %v1293 = vcombine.high %v1291, %v1291
        %v1294 = vcombine.low %v1134, %v1135
        %v1295 = vcombine.high %v1134, %v1135
        %v1297 = vunpack.c.l.s4 1983009808
        %v1298 = vunpack.c.0.s8 %v1297
        %v1299 = vlaneseq
        %v1300 = vshrl.u32 %v1299, 7
        %v1301 = vsub.s32 %v1298, %v1300
        %v1302 = vrot.slane %v1294, %v1301
        %v1304 = vunpack.c.l.s4 1983009808
        %v1305 = vunpack.c.0.s8 %v1304
        %v1306 = vlaneseq
        %v1307 = vshrl.u32 %v1306, 7
        %v1308 = vsub.s32 %v1305, %v1307
        %v1309 = vrot.slane %v1295, %v1308
        %v1310 = vcombine.high %v1302, %v1302
        %v1311 = vcombine.high %v1309, %v1309
        %v1312 = vcombine.low %v1136, %v1137
        %v1313 = vcombine.high %v1136, %v1137
        %v1315 = vunpack.c.l.s4 1983009808
        %v1316 = vunpack.c.0.s8 %v1315
        %v1317 = vlaneseq
        %v1318 = vshrl.u32 %v1317, 7
        %v1319 = vsub.s32 %v1316, %v1318
        %v1320 = vrot.slane %v1312, %v1319
        %v1322 = vunpack.c.l.s4 1983009808
        %v1323 = vunpack.c.0.s8 %v1322
        %v1324 = vlaneseq
        %v1325 = vshrl.u32 %v1324, 7
        %v1326 = vsub.s32 %v1323, %v1325
        %v1327 = vrot.slane %v1313, %v1326
        %v1328 = vcombine.high %v1320, %v1320
        %v1329 = vcombine.high %v1327, %v1327
        %v1330 = vcombine.low %v1138, %v1139
        %v1331 = vcombine.high %v1138, %v1139
        %v1333 = vunpack.c.l.s4 1983009808
        %v1334 = vunpack.c.0.s8 %v1333
        %v1335 = vlaneseq
        %v1336 = vshrl.u32 %v1335, 7
        %v1337 = vsub.s32 %v1334, %v1336
        %v1338 = vrot.slane %v1330, %v1337
        %v1340 = vunpack.c.l.s4 1983009808
        %v1341 = vunpack.c.0.s8 %v1340
        %v1342 = vlaneseq
        %v1343 = vshrl.u32 %v1342, 7
        %v1344 = vsub.s32 %v1341, %v1343
        %v1345 = vrot.slane %v1331, %v1344
        %v1346 = vcombine.high %v1338, %v1338
        %v1347 = vcombine.high %v1345, %v1345
        %v1348 = vcombine.low %v1140, %v1141
        %v1349 = vcombine.high %v1140, %v1141
        %v1351 = vunpack.c.l.s4 1983009808
        %v1352 = vunpack.c.0.s8 %v1351
        %v1353 = vlaneseq
        %v1354 = vshrl.u32 %v1353, 7
        %v1355 = vsub.s32 %v1352, %v1354
        %v1356 = vrot.slane %v1348, %v1355
        %v1358 = vunpack.c.l.s4 1983009808
        %v1359 = vunpack.c.0.s8 %v1358
        %v1360 = vlaneseq
        %v1361 = vshrl.u32 %v1360, 7
        %v1362 = vsub.s32 %v1359, %v1361
        %v1363 = vrot.slane %v1349, %v1362
        %v1364 = vcombine.high %v1356, %v1356
        %v1365 = vcombine.high %v1363, %v1363
        %v1366 = vcombine.low %v1142, %v1143
        %v1367 = vcombine.high %v1142, %v1143
        %v1369 = vunpack.c.l.s4 1983009808
        %v1370 = vunpack.c.0.s8 %v1369
        %v1371 = vlaneseq
        %v1372 = vshrl.u32 %v1371, 7
        %v1373 = vsub.s32 %v1370, %v1372
        %v1374 = vrot.slane %v1366, %v1373
        %v1376 = vunpack.c.l.s4 1983009808
        %v1377 = vunpack.c.0.s8 %v1376
        %v1378 = vlaneseq
        %v1379 = vshrl.u32 %v1378, 7
        %v1380 = vsub.s32 %v1377, %v1379
        %v1381 = vrot.slane %v1367, %v1380
        %v1382 = vcombine.high %v1374, %v1374
        %v1383 = vcombine.high %v1381, %v1381
        %v1384 = vcombine.low %v1144, %v1145
        %v1385 = vcombine.high %v1144, %v1145
        %v1387 = vunpack.c.l.s4 1983009808
        %v1388 = vunpack.c.0.s8 %v1387
        %v1389 = vlaneseq
        %v1390 = vshrl.u32 %v1389, 7
        %v1391 = vsub.s32 %v1388, %v1390
        %v1392 = vrot.slane %v1384, %v1391
        %v1394 = vunpack.c.l.s4 1983009808
        %v1395 = vunpack.c.0.s8 %v1394
        %v1396 = vlaneseq
        %v1397 = vshrl.u32 %v1396, 7
        %v1398 = vsub.s32 %v1395, %v1397
        %v1399 = vrot.slane %v1385, %v1398
        %v1400 = vcombine.high %v1392, %v1392
        %v1401 = vcombine.high %v1399, %v1399
        %v1402 = vcombine.low %v1146, %v1147
        %v1403 = vcombine.high %v1146, %v1147
        %v1405 = vunpack.c.l.s4 1983009808
        %v1406 = vunpack.c.0.s8 %v1405
        %v1407 = vlaneseq
        %v1408 = vshrl.u32 %v1407, 7
        %v1409 = vsub.s32 %v1406, %v1408
        %v1410 = vrot.slane %v1402, %v1409
        %v1412 = vunpack.c.l.s4 1983009808
        %v1413 = vunpack.c.0.s8 %v1412
        %v1414 = vlaneseq
        %v1415 = vshrl.u32 %v1414, 7
        %v1416 = vsub.s32 %v1413, %v1415
        %v1417 = vrot.slane %v1403, %v1416
        %v1418 = vcombine.high %v1410, %v1410
        %v1419 = vcombine.high %v1417, %v1417
        %v1420 = vcombine.low %v1148, %v1149
        %v1421 = vcombine.high %v1148, %v1149
        %v1423 = vunpack.c.l.s4 1983009808
        %v1424 = vunpack.c.0.s8 %v1423
        %v1425 = vlaneseq
        %v1426 = vshrl.u32 %v1425, 7
        %v1427 = vsub.s32 %v1424, %v1426
        %v1428 = vrot.slane %v1420, %v1427
        %v1430 = vunpack.c.l.s4 1983009808
        %v1431 = vunpack.c.0.s8 %v1430
        %v1432 = vlaneseq
        %v1433 = vshrl.u32 %v1432, 7
        %v1434 = vsub.s32 %v1431, %v1433
        %v1435 = vrot.slane %v1421, %v1434
        %v1436 = vcombine.high %v1428, %v1428
        %v1437 = vcombine.high %v1435, %v1435
        %v1438 = vcombine.low %v1150, %v1151
        %v1439 = vcombine.high %v1150, %v1151
        %v1441 = vunpack.c.l.s4 1983009808
        %v1442 = vunpack.c.0.s8 %v1441
        %v1443 = vlaneseq
        %v1444 = vshrl.u32 %v1443, 7
        %v1445 = vsub.s32 %v1442, %v1444
        %v1446 = vrot.slane %v1438, %v1445
        %v1448 = vunpack.c.l.s4 1983009808
        %v1449 = vunpack.c.0.s8 %v1448
        %v1450 = vlaneseq
        %v1451 = vshrl.u32 %v1450, 7
        %v1452 = vsub.s32 %v1449, %v1451
        %v1453 = vrot.slane %v1439, %v1452
        %v1454 = vcombine.high %v1446, %v1446
        %v1455 = vcombine.high %v1453, %v1453
        %v1456 = vcombine.low %v1152, %v1153
        %v1457 = vcombine.high %v1152, %v1153
        %v1459 = vunpack.c.l.s4 1983009808
        %v1460 = vunpack.c.0.s8 %v1459
        %v1461 = vlaneseq
        %v1462 = vshrl.u32 %v1461, 7
        %v1463 = vsub.s32 %v1460, %v1462
        %v1464 = vrot.slane %v1456, %v1463
        %v1466 = vunpack.c.l.s4 1983009808
        %v1467 = vunpack.c.0.s8 %v1466
        %v1468 = vlaneseq
        %v1469 = vshrl.u32 %v1468, 7
        %v1470 = vsub.s32 %v1467, %v1469
        %v1471 = vrot.slane %v1457, %v1470
        %v1472 = vcombine.high %v1464, %v1464
        %v1473 = vcombine.high %v1471, %v1471
        %v1475 = vunpack.c.l.s4 1983009808
        %v1476 = vunpack.c.0.s8 %v1475
        %v1477 = vlaneseq
        %v1478 = vshrl.u32 %v1477, 7
        %v1479 = vsub.s32 %v1476, %v1478
        %v1480 = vrot.slane %v1194, %v1479
        %v1481 = vcombine.high %v1480, %v1480
        %v1483 = vunpack.c.l.s4 1983009808
        %v1484 = vunpack.c.0.s8 %v1483
        %v1485 = vlaneseq
        %v1486 = vshrl.u32 %v1485, 7
        %v1487 = vsub.s32 %v1484, %v1486
        %v1488 = vrot.slane %v1202, %v1487
        %v1489 = vcombine.high %v1488, %v1488
        %v1491 = vunpack.c.l.s4 1983009808
        %v1492 = vunpack.c.0.s8 %v1491
        %v1493 = vlaneseq
        %v1494 = vshrl.u32 %v1493, 7
        %v1495 = vsub.s32 %v1492, %v1494
        %v1496 = vrot.slane %v1201, %v1495
        %v1497 = vcombine.high %v1496, %v1496
        %v1499 = vunpack.c.l.s4 1983009808
        %v1500 = vunpack.c.0.s8 %v1499
        %v1501 = vlaneseq
        %v1502 = vshrl.u32 %v1501, 7
        %v1503 = vsub.s32 %v1500, %v1502
        %v1504 = vrot.slane %v1203, %v1503
        %v1505 = vcombine.high %v1504, %v1504
        %v1507 = vunpack.c.l.s4 1983009808
        %v1508 = vunpack.c.0.s8 %v1507
        %v1509 = vlaneseq
        %v1510 = vshrl.u32 %v1509, 7
        %v1511 = vsub.s32 %v1508, %v1510
        %v1512 = vrot.slane %v1212, %v1511
        %v1513 = vcombine.high %v1512, %v1512
        %v1515 = vunpack.c.l.s4 1983009808
        %v1516 = vunpack.c.0.s8 %v1515
        %v1517 = vlaneseq
        %v1518 = vshrl.u32 %v1517, 7
        %v1519 = vsub.s32 %v1516, %v1518
        %v1520 = vrot.slane %v1220, %v1519
        %v1521 = vcombine.high %v1520, %v1520
        %v1523 = vunpack.c.l.s4 1983009808
        %v1524 = vunpack.c.0.s8 %v1523
        %v1525 = vlaneseq
        %v1526 = vshrl.u32 %v1525, 7
        %v1527 = vsub.s32 %v1524, %v1526
        %v1528 = vrot.slane %v1219, %v1527
        %v1529 = vcombine.high %v1528, %v1528
        %v1531 = vunpack.c.l.s4 1983009808
        %v1532 = vunpack.c.0.s8 %v1531
        %v1533 = vlaneseq
        %v1534 = vshrl.u32 %v1533, 7
        %v1535 = vsub.s32 %v1532, %v1534
        %v1536 = vrot.slane %v1221, %v1535
        %v1537 = vcombine.high %v1536, %v1536
        %v1539 = vunpack.c.l.s4 1983009808
        %v1540 = vunpack.c.0.s8 %v1539
        %v1541 = vlaneseq
        %v1542 = vshrl.u32 %v1541, 7
        %v1543 = vsub.s32 %v1540, %v1542
        %v1544 = vrot.slane %v1230, %v1543
        %v1545 = vcombine.high %v1544, %v1544
        %v1547 = vunpack.c.l.s4 1983009808
        %v1548 = vunpack.c.0.s8 %v1547
        %v1549 = vlaneseq
        %v1550 = vshrl.u32 %v1549, 7
        %v1551 = vsub.s32 %v1548, %v1550
        %v1552 = vrot.slane %v1238, %v1551
        %v1553 = vcombine.high %v1552, %v1552
        %v1555 = vunpack.c.l.s4 1983009808
        %v1556 = vunpack.c.0.s8 %v1555
        %v1557 = vlaneseq
        %v1558 = vshrl.u32 %v1557, 7
        %v1559 = vsub.s32 %v1556, %v1558
        %v1560 = vrot.slane %v1237, %v1559
        %v1561 = vcombine.high %v1560, %v1560
        %v1563 = vunpack.c.l.s4 1983009808
        %v1564 = vunpack.c.0.s8 %v1563
        %v1565 = vlaneseq
        %v1566 = vshrl.u32 %v1565, 7
        %v1567 = vsub.s32 %v1564, %v1566
        %v1568 = vrot.slane %v1239, %v1567
        %v1569 = vcombine.high %v1568, %v1568
        %v1571 = vunpack.c.l.s4 1983009808
        %v1572 = vunpack.c.0.s8 %v1571
        %v1573 = vlaneseq
        %v1574 = vshrl.u32 %v1573, 7
        %v1575 = vsub.s32 %v1572, %v1574
        %v1576 = vrot.slane %v1248, %v1575
        %v1577 = vcombine.high %v1576, %v1576
        %v1579 = vunpack.c.l.s4 1983009808
        %v1580 = vunpack.c.0.s8 %v1579
        %v1581 = vlaneseq
        %v1582 = vshrl.u32 %v1581, 7
        %v1583 = vsub.s32 %v1580, %v1582
        %v1584 = vrot.slane %v1256, %v1583
        %v1585 = vcombine.high %v1584, %v1584
        %v1587 = vunpack.c.l.s4 1983009808
        %v1588 = vunpack.c.0.s8 %v1587
        %v1589 = vlaneseq
        %v1590 = vshrl.u32 %v1589, 7
        %v1591 = vsub.s32 %v1588, %v1590
        %v1592 = vrot.slane %v1255, %v1591
        %v1593 = vcombine.high %v1592, %v1592
        %v1595 = vunpack.c.l.s4 1983009808
        %v1596 = vunpack.c.0.s8 %v1595
        %v1597 = vlaneseq
        %v1598 = vshrl.u32 %v1597, 7
        %v1599 = vsub.s32 %v1596, %v1598
        %v1600 = vrot.slane %v1257, %v1599
        %v1601 = vcombine.high %v1600, %v1600
        %v1603 = vunpack.c.l.s4 1983009808
        %v1604 = vunpack.c.0.s8 %v1603
        %v1605 = vlaneseq
        %v1606 = vshrl.u32 %v1605, 7
        %v1607 = vsub.s32 %v1604, %v1606
        %v1608 = vrot.slane %v1266, %v1607
        %v1609 = vcombine.high %v1608, %v1608
        %v1611 = vunpack.c.l.s4 1983009808
        %v1612 = vunpack.c.0.s8 %v1611
        %v1613 = vlaneseq
        %v1614 = vshrl.u32 %v1613, 7
        %v1615 = vsub.s32 %v1612, %v1614
        %v1616 = vrot.slane %v1274, %v1615
        %v1617 = vcombine.high %v1616, %v1616
        %v1619 = vunpack.c.l.s4 1983009808
        %v1620 = vunpack.c.0.s8 %v1619
        %v1621 = vlaneseq
        %v1622 = vshrl.u32 %v1621, 7
        %v1623 = vsub.s32 %v1620, %v1622
        %v1624 = vrot.slane %v1273, %v1623
        %v1625 = vcombine.high %v1624, %v1624
        %v1627 = vunpack.c.l.s4 1983009808
        %v1628 = vunpack.c.0.s8 %v1627
        %v1629 = vlaneseq
        %v1630 = vshrl.u32 %v1629, 7
        %v1631 = vsub.s32 %v1628, %v1630
        %v1632 = vrot.slane %v1275, %v1631
        %v1633 = vcombine.high %v1632, %v1632
        %v1635 = vunpack.c.l.s4 1983009808
        %v1636 = vunpack.c.0.s8 %v1635
        %v1637 = vlaneseq
        %v1638 = vshrl.u32 %v1637, 7
        %v1639 = vsub.s32 %v1636, %v1638
        %v1640 = vrot.slane %v1284, %v1639
        %v1641 = vcombine.high %v1640, %v1640
        %v1643 = vunpack.c.l.s4 1983009808
        %v1644 = vunpack.c.0.s8 %v1643
        %v1645 = vlaneseq
        %v1646 = vshrl.u32 %v1645, 7
        %v1647 = vsub.s32 %v1644, %v1646
        %v1648 = vrot.slane %v1292, %v1647
        %v1649 = vcombine.high %v1648, %v1648
        %v1651 = vunpack.c.l.s4 1983009808
        %v1652 = vunpack.c.0.s8 %v1651
        %v1653 = vlaneseq
        %v1654 = vshrl.u32 %v1653, 7
        %v1655 = vsub.s32 %v1652, %v1654
        %v1656 = vrot.slane %v1291, %v1655
        %v1657 = vcombine.high %v1656, %v1656
        %v1659 = vunpack.c.l.s4 1983009808
        %v1660 = vunpack.c.0.s8 %v1659
        %v1661 = vlaneseq
        %v1662 = vshrl.u32 %v1661, 7
        %v1663 = vsub.s32 %v1660, %v1662
        %v1664 = vrot.slane %v1293, %v1663
        %v1665 = vcombine.high %v1664, %v1664
        %v1667 = vunpack.c.l.s4 1983009808
        %v1668 = vunpack.c.0.s8 %v1667
        %v1669 = vlaneseq
        %v1670 = vshrl.u32 %v1669, 7
        %v1671 = vsub.s32 %v1668, %v1670
        %v1672 = vrot.slane %v1302, %v1671
        %v1673 = vcombine.high %v1672, %v1672
        %v1675 = vunpack.c.l.s4 1983009808
        %v1676 = vunpack.c.0.s8 %v1675
        %v1677 = vlaneseq
        %v1678 = vshrl.u32 %v1677, 7
        %v1679 = vsub.s32 %v1676, %v1678
        %v1680 = vrot.slane %v1310, %v1679
        %v1681 = vcombine.high %v1680, %v1680
        %v1683 = vunpack.c.l.s4 1983009808
        %v1684 = vunpack.c.0.s8 %v1683
        %v1685 = vlaneseq
        %v1686 = vshrl.u32 %v1685, 7
        %v1687 = vsub.s32 %v1684, %v1686
        %v1688 = vrot.slane %v1309, %v1687
        %v1689 = vcombine.high %v1688, %v1688
        %v1691 = vunpack.c.l.s4 1983009808
        %v1692 = vunpack.c.0.s8 %v1691
        %v1693 = vlaneseq
        %v1694 = vshrl.u32 %v1693, 7
        %v1695 = vsub.s32 %v1692, %v1694
        %v1696 = vrot.slane %v1311, %v1695
        %v1697 = vcombine.high %v1696, %v1696
        %v1699 = vunpack.c.l.s4 1983009808
        %v1700 = vunpack.c.0.s8 %v1699
        %v1701 = vlaneseq
        %v1702 = vshrl.u32 %v1701, 7
        %v1703 = vsub.s32 %v1700, %v1702
        %v1704 = vrot.slane %v1320, %v1703
        %v1705 = vcombine.high %v1704, %v1704
        %v1707 = vunpack.c.l.s4 1983009808
        %v1708 = vunpack.c.0.s8 %v1707
        %v1709 = vlaneseq
        %v1710 = vshrl.u32 %v1709, 7
        %v1711 = vsub.s32 %v1708, %v1710
        %v1712 = vrot.slane %v1328, %v1711
        %v1713 = vcombine.high %v1712, %v1712
        %v1715 = vunpack.c.l.s4 1983009808
        %v1716 = vunpack.c.0.s8 %v1715
        %v1717 = vlaneseq
        %v1718 = vshrl.u32 %v1717, 7
        %v1719 = vsub.s32 %v1716, %v1718
        %v1720 = vrot.slane %v1327, %v1719
        %v1721 = vcombine.high %v1720, %v1720
        %v1723 = vunpack.c.l.s4 1983009808
        %v1724 = vunpack.c.0.s8 %v1723
        %v1725 = vlaneseq
        %v1726 = vshrl.u32 %v1725, 7
        %v1727 = vsub.s32 %v1724, %v1726
        %v1728 = vrot.slane %v1329, %v1727
        %v1729 = vcombine.high %v1728, %v1728
        %v1731 = vunpack.c.l.s4 1983009808
        %v1732 = vunpack.c.0.s8 %v1731
        %v1733 = vlaneseq
        %v1734 = vshrl.u32 %v1733, 7
        %v1735 = vsub.s32 %v1732, %v1734
        %v1736 = vrot.slane %v1338, %v1735
        %v1737 = vcombine.high %v1736, %v1736
        %v1739 = vunpack.c.l.s4 1983009808
        %v1740 = vunpack.c.0.s8 %v1739
        %v1741 = vlaneseq
        %v1742 = vshrl.u32 %v1741, 7
        %v1743 = vsub.s32 %v1740, %v1742
        %v1744 = vrot.slane %v1346, %v1743
        %v1745 = vcombine.high %v1744, %v1744
        %v1747 = vunpack.c.l.s4 1983009808
        %v1748 = vunpack.c.0.s8 %v1747
        %v1749 = vlaneseq
        %v1750 = vshrl.u32 %v1749, 7
        %v1751 = vsub.s32 %v1748, %v1750
        %v1752 = vrot.slane %v1345, %v1751
        %v1753 = vcombine.high %v1752, %v1752
        %v1755 = vunpack.c.l.s4 1983009808
        %v1756 = vunpack.c.0.s8 %v1755
        %v1757 = vlaneseq
        %v1758 = vshrl.u32 %v1757, 7
        %v1759 = vsub.s32 %v1756, %v1758
        %v1760 = vrot.slane %v1347, %v1759
        %v1761 = vcombine.high %v1760, %v1760
        %v1763 = vunpack.c.l.s4 1983009808
        %v1764 = vunpack.c.0.s8 %v1763
        %v1765 = vlaneseq
        %v1766 = vshrl.u32 %v1765, 7
        %v1767 = vsub.s32 %v1764, %v1766
        %v1768 = vrot.slane %v1356, %v1767
        %v1769 = vcombine.high %v1768, %v1768
        %v1771 = vunpack.c.l.s4 1983009808
        %v1772 = vunpack.c.0.s8 %v1771
        %v1773 = vlaneseq
        %v1774 = vshrl.u32 %v1773, 7
        %v1775 = vsub.s32 %v1772, %v1774
        %v1776 = vrot.slane %v1364, %v1775
        %v1777 = vcombine.high %v1776, %v1776
        %v1779 = vunpack.c.l.s4 1983009808
        %v1780 = vunpack.c.0.s8 %v1779
        %v1781 = vlaneseq
        %v1782 = vshrl.u32 %v1781, 7
        %v1783 = vsub.s32 %v1780, %v1782
        %v1784 = vrot.slane %v1363, %v1783
        %v1785 = vcombine.high %v1784, %v1784
        %v1787 = vunpack.c.l.s4 1983009808
        %v1788 = vunpack.c.0.s8 %v1787
        %v1789 = vlaneseq
        %v1790 = vshrl.u32 %v1789, 7
        %v1791 = vsub.s32 %v1788, %v1790
        %v1792 = vrot.slane %v1365, %v1791
        %v1793 = vcombine.high %v1792, %v1792
        %v1795 = vunpack.c.l.s4 1983009808
        %v1796 = vunpack.c.0.s8 %v1795
        %v1797 = vlaneseq
        %v1798 = vshrl.u32 %v1797, 7
        %v1799 = vsub.s32 %v1796, %v1798
        %v1800 = vrot.slane %v1374, %v1799
        %v1801 = vcombine.high %v1800, %v1800
        %v1803 = vunpack.c.l.s4 1983009808
        %v1804 = vunpack.c.0.s8 %v1803
        %v1805 = vlaneseq
        %v1806 = vshrl.u32 %v1805, 7
        %v1807 = vsub.s32 %v1804, %v1806
        %v1808 = vrot.slane %v1382, %v1807
        %v1809 = vcombine.high %v1808, %v1808
        %v1811 = vunpack.c.l.s4 1983009808
        %v1812 = vunpack.c.0.s8 %v1811
        %v1813 = vlaneseq
        %v1814 = vshrl.u32 %v1813, 7
        %v1815 = vsub.s32 %v1812, %v1814
        %v1816 = vrot.slane %v1381, %v1815
        %v1817 = vcombine.high %v1816, %v1816
        %v1819 = vunpack.c.l.s4 1983009808
        %v1820 = vunpack.c.0.s8 %v1819
        %v1821 = vlaneseq
        %v1822 = vshrl.u32 %v1821, 7
        %v1823 = vsub.s32 %v1820, %v1822
        %v1824 = vrot.slane %v1383, %v1823
        %v1825 = vcombine.high %v1824, %v1824
        %v1827 = vunpack.c.l.s4 1983009808
        %v1828 = vunpack.c.0.s8 %v1827
        %v1829 = vlaneseq
        %v1830 = vshrl.u32 %v1829, 7
        %v1831 = vsub.s32 %v1828, %v1830
        %v1832 = vrot.slane %v1392, %v1831
        %v1833 = vcombine.high %v1832, %v1832
        %v1835 = vunpack.c.l.s4 1983009808
        %v1836 = vunpack.c.0.s8 %v1835
        %v1837 = vlaneseq
        %v1838 = vshrl.u32 %v1837, 7
        %v1839 = vsub.s32 %v1836, %v1838
        %v1840 = vrot.slane %v1400, %v1839
        %v1841 = vcombine.high %v1840, %v1840
        %v1843 = vunpack.c.l.s4 1983009808
        %v1844 = vunpack.c.0.s8 %v1843
        %v1845 = vlaneseq
        %v1846 = vshrl.u32 %v1845, 7
        %v1847 = vsub.s32 %v1844, %v1846
        %v1848 = vrot.slane %v1399, %v1847
        %v1849 = vcombine.high %v1848, %v1848
        %v1851 = vunpack.c.l.s4 1983009808
        %v1852 = vunpack.c.0.s8 %v1851
        %v1853 = vlaneseq
        %v1854 = vshrl.u32 %v1853, 7
        %v1855 = vsub.s32 %v1852, %v1854
        %v1856 = vrot.slane %v1401, %v1855
        %v1857 = vcombine.high %v1856, %v1856
        %v1859 = vunpack.c.l.s4 1983009808
        %v1860 = vunpack.c.0.s8 %v1859
        %v1861 = vlaneseq
        %v1862 = vshrl.u32 %v1861, 7
        %v1863 = vsub.s32 %v1860, %v1862
        %v1864 = vrot.slane %v1410, %v1863
        %v1865 = vcombine.high %v1864, %v1864
        %v1867 = vunpack.c.l.s4 1983009808
        %v1868 = vunpack.c.0.s8 %v1867
        %v1869 = vlaneseq
        %v1870 = vshrl.u32 %v1869, 7
        %v1871 = vsub.s32 %v1868, %v1870
        %v1872 = vrot.slane %v1418, %v1871
        %v1873 = vcombine.high %v1872, %v1872
        %v1875 = vunpack.c.l.s4 1983009808
        %v1876 = vunpack.c.0.s8 %v1875
        %v1877 = vlaneseq
        %v1878 = vshrl.u32 %v1877, 7
        %v1879 = vsub.s32 %v1876, %v1878
        %v1880 = vrot.slane %v1417, %v1879
        %v1881 = vcombine.high %v1880, %v1880
        %v1883 = vunpack.c.l.s4 1983009808
        %v1884 = vunpack.c.0.s8 %v1883
        %v1885 = vlaneseq
        %v1886 = vshrl.u32 %v1885, 7
        %v1887 = vsub.s32 %v1884, %v1886
        %v1888 = vrot.slane %v1419, %v1887
        %v1889 = vcombine.high %v1888, %v1888
        %v1891 = vunpack.c.l.s4 1983009808
        %v1892 = vunpack.c.0.s8 %v1891
        %v1893 = vlaneseq
        %v1894 = vshrl.u32 %v1893, 7
        %v1895 = vsub.s32 %v1892, %v1894
        %v1896 = vrot.slane %v1428, %v1895
        %v1897 = vcombine.high %v1896, %v1896
        %v1899 = vunpack.c.l.s4 1983009808
        %v1900 = vunpack.c.0.s8 %v1899
        %v1901 = vlaneseq
        %v1902 = vshrl.u32 %v1901, 7
        %v1903 = vsub.s32 %v1900, %v1902
        %v1904 = vrot.slane %v1436, %v1903
        %v1905 = vcombine.high %v1904, %v1904
        %v1907 = vunpack.c.l.s4 1983009808
        %v1908 = vunpack.c.0.s8 %v1907
        %v1909 = vlaneseq
        %v1910 = vshrl.u32 %v1909, 7
        %v1911 = vsub.s32 %v1908, %v1910
        %v1912 = vrot.slane %v1435, %v1911
        %v1913 = vcombine.high %v1912, %v1912
        %v1915 = vunpack.c.l.s4 1983009808
        %v1916 = vunpack.c.0.s8 %v1915
        %v1917 = vlaneseq
        %v1918 = vshrl.u32 %v1917, 7
        %v1919 = vsub.s32 %v1916, %v1918
        %v1920 = vrot.slane %v1437, %v1919
        %v1921 = vcombine.high %v1920, %v1920
        %v1923 = vunpack.c.l.s4 1983009808
        %v1924 = vunpack.c.0.s8 %v1923
        %v1925 = vlaneseq
        %v1926 = vshrl.u32 %v1925, 7
        %v1927 = vsub.s32 %v1924, %v1926
        %v1928 = vrot.slane %v1446, %v1927
        %v1929 = vcombine.high %v1928, %v1928
        %v1931 = vunpack.c.l.s4 1983009808
        %v1932 = vunpack.c.0.s8 %v1931
        %v1933 = vlaneseq
        %v1934 = vshrl.u32 %v1933, 7
        %v1935 = vsub.s32 %v1932, %v1934
        %v1936 = vrot.slane %v1454, %v1935
        %v1937 = vcombine.high %v1936, %v1936
        %v1939 = vunpack.c.l.s4 1983009808
        %v1940 = vunpack.c.0.s8 %v1939
        %v1941 = vlaneseq
        %v1942 = vshrl.u32 %v1941, 7
        %v1943 = vsub.s32 %v1940, %v1942
        %v1944 = vrot.slane %v1453, %v1943
        %v1945 = vcombine.high %v1944, %v1944
        %v1947 = vunpack.c.l.s4 1983009808
        %v1948 = vunpack.c.0.s8 %v1947
        %v1949 = vlaneseq
        %v1950 = vshrl.u32 %v1949, 7
        %v1951 = vsub.s32 %v1948, %v1950
        %v1952 = vrot.slane %v1455, %v1951
        %v1953 = vcombine.high %v1952, %v1952
        %v1955 = vunpack.c.l.s4 1983009808
        %v1956 = vunpack.c.0.s8 %v1955
        %v1957 = vlaneseq
        %v1958 = vshrl.u32 %v1957, 7
        %v1959 = vsub.s32 %v1956, %v1958
        %v1960 = vrot.slane %v1464, %v1959
        %v1961 = vcombine.high %v1960, %v1960
        %v1963 = vunpack.c.l.s4 1983009808
        %v1964 = vunpack.c.0.s8 %v1963
        %v1965 = vlaneseq
        %v1966 = vshrl.u32 %v1965, 7
        %v1967 = vsub.s32 %v1964, %v1966
        %v1968 = vrot.slane %v1472, %v1967
        %v1969 = vcombine.high %v1968, %v1968
        %v1971 = vunpack.c.l.s4 1983009808
        %v1972 = vunpack.c.0.s8 %v1971
        %v1973 = vlaneseq
        %v1974 = vshrl.u32 %v1973, 7
        %v1975 = vsub.s32 %v1972, %v1974
        %v1976 = vrot.slane %v1471, %v1975
        %v1977 = vcombine.high %v1976, %v1976
        %v1979 = vunpack.c.l.s4 1983009808
        %v1980 = vunpack.c.0.s8 %v1979
        %v1981 = vlaneseq
        %v1982 = vshrl.u32 %v1981, 7
        %v1983 = vsub.s32 %v1980, %v1982
        %v1984 = vrot.slane %v1473, %v1983
        %v1985 = vcombine.high %v1984, %v1984
        %vm2114 = vcmask 1041408
        %v2115 = vsel %vm2114, %v1480, -inf
        %v2116 = vrot.slane %v2115, 4
        %v2117 = vmax.f32 %v2115, %v2116
        %v2118 = vrot.slane %v2117, 2
        %v2119 = vmax.f32 %v2117, %v2118
        %v2120 = vrot.slane %v2119, 1
        %v2121 = vmax.f32 %v2119, %v2120
        %v2122 = vsel %vm2114, %v1481, -inf
        %v2123 = vrot.slane %v2122, 4
        %v2124 = vmax.f32 %v2122, %v2123
        %v2125 = vrot.slane %v2124, 2
        %v2126 = vmax.f32 %v2124, %v2125
        %v2127 = vrot.slane %v2126, 1
        %v2128 = vmax.f32 %v2126, %v2127
        %v2129 = vsel %vm2114, %v1488, -inf
        %v2130 = vrot.slane %v2129, 4
        %v2131 = vmax.f32 %v2129, %v2130
        %v2132 = vrot.slane %v2131, 2
        %v2133 = vmax.f32 %v2131, %v2132
        %v2134 = vrot.slane %v2133, 1
        %v2135 = vmax.f32 %v2133, %v2134
        %v2136 = vsel %vm2114, %v1489, -inf
        %v2137 = vrot.slane %v2136, 4
        %v2138 = vmax.f32 %v2136, %v2137
        %v2139 = vrot.slane %v2138, 2
        %v2140 = vmax.f32 %v2138, %v2139
        %v2141 = vrot.slane %v2140, 1
        %v2142 = vmax.f32 %v2140, %v2141
        %v2143 = vsel %vm2114, %v1496, -inf
        %v2144 = vrot.slane %v2143, 4
        %v2145 = vmax.f32 %v2143, %v2144
        %v2146 = vrot.slane %v2145, 2
        %v2147 = vmax.f32 %v2145, %v2146
        %v2148 = vrot.slane %v2147, 1
        %v2149 = vmax.f32 %v2147, %v2148
        %v2150 = vsel %vm2114, %v1497, -inf
        %v2151 = vrot.slane %v2150, 4
        %v2152 = vmax.f32 %v2150, %v2151
        %v2153 = vrot.slane %v2152, 2
        %v2154 = vmax.f32 %v2152, %v2153
        %v2155 = vrot.slane %v2154, 1
        %v2156 = vmax.f32 %v2154, %v2155
        %v2157 = vsel %vm2114, %v1504, -inf
        %v2158 = vrot.slane %v2157, 4
        %v2159 = vmax.f32 %v2157, %v2158
        %v2160 = vrot.slane %v2159, 2
        %v2161 = vmax.f32 %v2159, %v2160
        %v2162 = vrot.slane %v2161, 1
        %v2163 = vmax.f32 %v2161, %v2162
        %v2164 = vsel %vm2114, %v1505, -inf
        %v2165 = vrot.slane %v2164, 4
        %v2166 = vmax.f32 %v2164, %v2165
        %v2167 = vrot.slane %v2166, 2
        %v2168 = vmax.f32 %v2166, %v2167
        %v2169 = vrot.slane %v2168, 1
        %v2170 = vmax.f32 %v2168, %v2169
        %v2171 = vsel %vm2114, %v1512, -inf
        %v2172 = vrot.slane %v2171, 4
        %v2173 = vmax.f32 %v2171, %v2172
        %v2174 = vrot.slane %v2173, 2
        %v2175 = vmax.f32 %v2173, %v2174
        %v2176 = vrot.slane %v2175, 1
        %v2177 = vmax.f32 %v2175, %v2176
        %v2178 = vsel %vm2114, %v1513, -inf
        %v2179 = vrot.slane %v2178, 4
        %v2180 = vmax.f32 %v2178, %v2179
        %v2181 = vrot.slane %v2180, 2
        %v2182 = vmax.f32 %v2180, %v2181
        %v2183 = vrot.slane %v2182, 1
        %v2184 = vmax.f32 %v2182, %v2183
        %v2185 = vsel %vm2114, %v1520, -inf
        %v2186 = vrot.slane %v2185, 4
        %v2187 = vmax.f32 %v2185, %v2186
        %v2188 = vrot.slane %v2187, 2
        %v2189 = vmax.f32 %v2187, %v2188
        %v2190 = vrot.slane %v2189, 1
        %v2191 = vmax.f32 %v2189, %v2190
        %v2192 = vsel %vm2114, %v1521, -inf
        %v2193 = vrot.slane %v2192, 4
        %v2194 = vmax.f32 %v2192, %v2193
        %v2195 = vrot.slane %v2194, 2
        %v2196 = vmax.f32 %v2194, %v2195
        %v2197 = vrot.slane %v2196, 1
        %v2198 = vmax.f32 %v2196, %v2197
        %v2199 = vsel %vm2114, %v1528, -inf
        %v2200 = vrot.slane %v2199, 4
        %v2201 = vmax.f32 %v2199, %v2200
        %v2202 = vrot.slane %v2201, 2
        %v2203 = vmax.f32 %v2201, %v2202
        %v2204 = vrot.slane %v2203, 1
        %v2205 = vmax.f32 %v2203, %v2204
        %v2206 = vsel %vm2114, %v1529, -inf
        %v2207 = vrot.slane %v2206, 4
        %v2208 = vmax.f32 %v2206, %v2207
        %v2209 = vrot.slane %v2208, 2
        %v2210 = vmax.f32 %v2208, %v2209
        %v2211 = vrot.slane %v2210, 1
        %v2212 = vmax.f32 %v2210, %v2211
        %v2213 = vsel %vm2114, %v1536, -inf
        %v2214 = vrot.slane %v2213, 4
        %v2215 = vmax.f32 %v2213, %v2214
        %v2216 = vrot.slane %v2215, 2
        %v2217 = vmax.f32 %v2215, %v2216
        %v2218 = vrot.slane %v2217, 1
        %v2219 = vmax.f32 %v2217, %v2218
        %v2220 = vsel %vm2114, %v1537, -inf
        %v2221 = vrot.slane %v2220, 4
        %v2222 = vmax.f32 %v2220, %v2221
        %v2223 = vrot.slane %v2222, 2
        %v2224 = vmax.f32 %v2222, %v2223
        %v2225 = vrot.slane %v2224, 1
        %v2226 = vmax.f32 %v2224, %v2225
        %v2227 = vsel %vm2114, %v1544, -inf
        %v2228 = vrot.slane %v2227, 4
        %v2229 = vmax.f32 %v2227, %v2228
        %v2230 = vrot.slane %v2229, 2
        %v2231 = vmax.f32 %v2229, %v2230
        %v2232 = vrot.slane %v2231, 1
        %v2233 = vmax.f32 %v2231, %v2232
        %v2234 = vsel %vm2114, %v1545, -inf
        %v2235 = vrot.slane %v2234, 4
        %v2236 = vmax.f32 %v2234, %v2235
        %v2237 = vrot.slane %v2236, 2
        %v2238 = vmax.f32 %v2236, %v2237
        %v2239 = vrot.slane %v2238, 1
        %v2240 = vmax.f32 %v2238, %v2239
        %v2241 = vsel %vm2114, %v1552, -inf
        %v2242 = vrot.slane %v2241, 4
        %v2243 = vmax.f32 %v2241, %v2242
        %v2244 = vrot.slane %v2243, 2
        %v2245 = vmax.f32 %v2243, %v2244
        %v2246 = vrot.slane %v2245, 1
        %v2247 = vmax.f32 %v2245, %v2246
        %v2248 = vsel %vm2114, %v1553, -inf
        %v2249 = vrot.slane %v2248, 4
        %v2250 = vmax.f32 %v2248, %v2249
        %v2251 = vrot.slane %v2250, 2
        %v2252 = vmax.f32 %v2250, %v2251
        %v2253 = vrot.slane %v2252, 1
        %v2254 = vmax.f32 %v2252, %v2253
        %v2255 = vsel %vm2114, %v1560, -inf
        %v2256 = vrot.slane %v2255, 4
        %v2257 = vmax.f32 %v2255, %v2256
        %v2258 = vrot.slane %v2257, 2
        %v2259 = vmax.f32 %v2257, %v2258
        %v2260 = vrot.slane %v2259, 1
        %v2261 = vmax.f32 %v2259, %v2260
        %v2262 = vsel %vm2114, %v1561, -inf
        %v2263 = vrot.slane %v2262, 4
        %v2264 = vmax.f32 %v2262, %v2263
        %v2265 = vrot.slane %v2264, 2
        %v2266 = vmax.f32 %v2264, %v2265
        %v2267 = vrot.slane %v2266, 1
        %v2268 = vmax.f32 %v2266, %v2267
        %v2269 = vsel %vm2114, %v1568, -inf
        %v2270 = vrot.slane %v2269, 4
        %v2271 = vmax.f32 %v2269, %v2270
        %v2272 = vrot.slane %v2271, 2
        %v2273 = vmax.f32 %v2271, %v2272
        %v2274 = vrot.slane %v2273, 1
        %v2275 = vmax.f32 %v2273, %v2274
        %v2276 = vsel %vm2114, %v1569, -inf
        %v2277 = vrot.slane %v2276, 4
        %v2278 = vmax.f32 %v2276, %v2277
        %v2279 = vrot.slane %v2278, 2
        %v2280 = vmax.f32 %v2278, %v2279
        %v2281 = vrot.slane %v2280, 1
        %v2282 = vmax.f32 %v2280, %v2281
        %v2283 = vsel %vm2114, %v1576, -inf
        %v2284 = vrot.slane %v2283, 4
        %v2285 = vmax.f32 %v2283, %v2284
        %v2286 = vrot.slane %v2285, 2
        %v2287 = vmax.f32 %v2285, %v2286
        %v2288 = vrot.slane %v2287, 1
        %v2289 = vmax.f32 %v2287, %v2288
        %v2290 = vsel %vm2114, %v1577, -inf
        %v2291 = vrot.slane %v2290, 4
        %v2292 = vmax.f32 %v2290, %v2291
        %v2293 = vrot.slane %v2292, 2
        %v2294 = vmax.f32 %v2292, %v2293
        %v2295 = vrot.slane %v2294, 1
        %v2296 = vmax.f32 %v2294, %v2295
        %v2297 = vsel %vm2114, %v1584, -inf
        %v2298 = vrot.slane %v2297, 4
        %v2299 = vmax.f32 %v2297, %v2298
        %v2300 = vrot.slane %v2299, 2
        %v2301 = vmax.f32 %v2299, %v2300
        %v2302 = vrot.slane %v2301, 1
        %v2303 = vmax.f32 %v2301, %v2302
        %v2304 = vsel %vm2114, %v1585, -inf
        %v2305 = vrot.slane %v2304, 4
        %v2306 = vmax.f32 %v2304, %v2305
        %v2307 = vrot.slane %v2306, 2
        %v2308 = vmax.f32 %v2306, %v2307
        %v2309 = vrot.slane %v2308, 1
        %v2310 = vmax.f32 %v2308, %v2309
        %v2311 = vsel %vm2114, %v1592, -inf
        %v2312 = vrot.slane %v2311, 4
        %v2313 = vmax.f32 %v2311, %v2312
        %v2314 = vrot.slane %v2313, 2
        %v2315 = vmax.f32 %v2313, %v2314
        %v2316 = vrot.slane %v2315, 1
        %v2317 = vmax.f32 %v2315, %v2316
        %v2318 = vsel %vm2114, %v1593, -inf
        %v2319 = vrot.slane %v2318, 4
        %v2320 = vmax.f32 %v2318, %v2319
        %v2321 = vrot.slane %v2320, 2
        %v2322 = vmax.f32 %v2320, %v2321
        %v2323 = vrot.slane %v2322, 1
        %v2324 = vmax.f32 %v2322, %v2323
        %v2325 = vsel %vm2114, %v1600, -inf
        %v2326 = vrot.slane %v2325, 4
        %v2327 = vmax.f32 %v2325, %v2326
        %v2328 = vrot.slane %v2327, 2
        %v2329 = vmax.f32 %v2327, %v2328
        %v2330 = vrot.slane %v2329, 1
        %v2331 = vmax.f32 %v2329, %v2330
        %v2332 = vsel %vm2114, %v1601, -inf
        %v2333 = vrot.slane %v2332, 4
        %v2334 = vmax.f32 %v2332, %v2333
        %v2335 = vrot.slane %v2334, 2
        %v2336 = vmax.f32 %v2334, %v2335
        %v2337 = vrot.slane %v2336, 1
        %v2338 = vmax.f32 %v2336, %v2337
        %v2339 = vsel %vm2114, %v1608, -inf
        %v2340 = vrot.slane %v2339, 4
        %v2341 = vmax.f32 %v2339, %v2340
        %v2342 = vrot.slane %v2341, 2
        %v2343 = vmax.f32 %v2341, %v2342
        %v2344 = vrot.slane %v2343, 1
        %v2345 = vmax.f32 %v2343, %v2344
        %v2346 = vsel %vm2114, %v1609, -inf
        %v2347 = vrot.slane %v2346, 4
        %v2348 = vmax.f32 %v2346, %v2347
        %v2349 = vrot.slane %v2348, 2
        %v2350 = vmax.f32 %v2348, %v2349
        %v2351 = vrot.slane %v2350, 1
        %v2352 = vmax.f32 %v2350, %v2351
        %v2353 = vsel %vm2114, %v1616, -inf
        %v2354 = vrot.slane %v2353, 4
        %v2355 = vmax.f32 %v2353, %v2354
        %v2356 = vrot.slane %v2355, 2
        %v2357 = vmax.f32 %v2355, %v2356
        %v2358 = vrot.slane %v2357, 1
        %v2359 = vmax.f32 %v2357, %v2358
        %v2360 = vsel %vm2114, %v1617, -inf
        %v2361 = vrot.slane %v2360, 4
        %v2362 = vmax.f32 %v2360, %v2361
        %v2363 = vrot.slane %v2362, 2
        %v2364 = vmax.f32 %v2362, %v2363
        %v2365 = vrot.slane %v2364, 1
        %v2366 = vmax.f32 %v2364, %v2365
        %v2367 = vsel %vm2114, %v1624, -inf
        %v2368 = vrot.slane %v2367, 4
        %v2369 = vmax.f32 %v2367, %v2368
        %v2370 = vrot.slane %v2369, 2
        %v2371 = vmax.f32 %v2369, %v2370
        %v2372 = vrot.slane %v2371, 1
        %v2373 = vmax.f32 %v2371, %v2372
        %v2374 = vsel %vm2114, %v1625, -inf
        %v2375 = vrot.slane %v2374, 4
        %v2376 = vmax.f32 %v2374, %v2375
        %v2377 = vrot.slane %v2376, 2
        %v2378 = vmax.f32 %v2376, %v2377
        %v2379 = vrot.slane %v2378, 1
        %v2380 = vmax.f32 %v2378, %v2379
        %v2381 = vsel %vm2114, %v1632, -inf
        %v2382 = vrot.slane %v2381, 4
        %v2383 = vmax.f32 %v2381, %v2382
        %v2384 = vrot.slane %v2383, 2
        %v2385 = vmax.f32 %v2383, %v2384
        %v2386 = vrot.slane %v2385, 1
        %v2387 = vmax.f32 %v2385, %v2386
        %v2388 = vsel %vm2114, %v1633, -inf
        %v2389 = vrot.slane %v2388, 4
        %v2390 = vmax.f32 %v2388, %v2389
        %v2391 = vrot.slane %v2390, 2
        %v2392 = vmax.f32 %v2390, %v2391
        %v2393 = vrot.slane %v2392, 1
        %v2394 = vmax.f32 %v2392, %v2393
        %v2395 = vsel %vm2114, %v1640, -inf
        %v2396 = vrot.slane %v2395, 4
        %v2397 = vmax.f32 %v2395, %v2396
        %v2398 = vrot.slane %v2397, 2
        %v2399 = vmax.f32 %v2397, %v2398
        %v2400 = vrot.slane %v2399, 1
        %v2401 = vmax.f32 %v2399, %v2400
        %v2402 = vsel %vm2114, %v1641, -inf
        %v2403 = vrot.slane %v2402, 4
        %v2404 = vmax.f32 %v2402, %v2403
        %v2405 = vrot.slane %v2404, 2
        %v2406 = vmax.f32 %v2404, %v2405
        %v2407 = vrot.slane %v2406, 1
        %v2408 = vmax.f32 %v2406, %v2407
        %v2409 = vsel %vm2114, %v1648, -inf
        %v2410 = vrot.slane %v2409, 4
        %v2411 = vmax.f32 %v2409, %v2410
        %v2412 = vrot.slane %v2411, 2
        %v2413 = vmax.f32 %v2411, %v2412
        %v2414 = vrot.slane %v2413, 1
        %v2415 = vmax.f32 %v2413, %v2414
        %v2416 = vsel %vm2114, %v1649, -inf
        %v2417 = vrot.slane %v2416, 4
        %v2418 = vmax.f32 %v2416, %v2417
        %v2419 = vrot.slane %v2418, 2
        %v2420 = vmax.f32 %v2418, %v2419
        %v2421 = vrot.slane %v2420, 1
        %v2422 = vmax.f32 %v2420, %v2421
        %v2423 = vsel %vm2114, %v1656, -inf
        %v2424 = vrot.slane %v2423, 4
        %v2425 = vmax.f32 %v2423, %v2424
        %v2426 = vrot.slane %v2425, 2
        %v2427 = vmax.f32 %v2425, %v2426
        %v2428 = vrot.slane %v2427, 1
        %v2429 = vmax.f32 %v2427, %v2428
        %v2430 = vsel %vm2114, %v1657, -inf
        %v2431 = vrot.slane %v2430, 4
        %v2432 = vmax.f32 %v2430, %v2431
        %v2433 = vrot.slane %v2432, 2
        %v2434 = vmax.f32 %v2432, %v2433
        %v2435 = vrot.slane %v2434, 1
        %v2436 = vmax.f32 %v2434, %v2435
        %v2437 = vsel %vm2114, %v1664, -inf
        %v2438 = vrot.slane %v2437, 4
        %v2439 = vmax.f32 %v2437, %v2438
        %v2440 = vrot.slane %v2439, 2
        %v2441 = vmax.f32 %v2439, %v2440
        %v2442 = vrot.slane %v2441, 1
        %v2443 = vmax.f32 %v2441, %v2442
        %v2444 = vsel %vm2114, %v1665, -inf
        %v2445 = vrot.slane %v2444, 4
        %v2446 = vmax.f32 %v2444, %v2445
        %v2447 = vrot.slane %v2446, 2
        %v2448 = vmax.f32 %v2446, %v2447
        %v2449 = vrot.slane %v2448, 1
        %v2450 = vmax.f32 %v2448, %v2449
        %v2451 = vsel %vm2114, %v1672, -inf
        %v2452 = vrot.slane %v2451, 4
        %v2453 = vmax.f32 %v2451, %v2452
        %v2454 = vrot.slane %v2453, 2
        %v2455 = vmax.f32 %v2453, %v2454
        %v2456 = vrot.slane %v2455, 1
        %v2457 = vmax.f32 %v2455, %v2456
        %v2458 = vsel %vm2114, %v1673, -inf
        %v2459 = vrot.slane %v2458, 4
        %v2460 = vmax.f32 %v2458, %v2459
        %v2461 = vrot.slane %v2460, 2
        %v2462 = vmax.f32 %v2460, %v2461
        %v2463 = vrot.slane %v2462, 1
        %v2464 = vmax.f32 %v2462, %v2463
        %v2465 = vsel %vm2114, %v1680, -inf
        %v2466 = vrot.slane %v2465, 4
        %v2467 = vmax.f32 %v2465, %v2466
        %v2468 = vrot.slane %v2467, 2
        %v2469 = vmax.f32 %v2467, %v2468
        %v2470 = vrot.slane %v2469, 1
        %v2471 = vmax.f32 %v2469, %v2470
        %v2472 = vsel %vm2114, %v1681, -inf
        %v2473 = vrot.slane %v2472, 4
        %v2474 = vmax.f32 %v2472, %v2473
        %v2475 = vrot.slane %v2474, 2
        %v2476 = vmax.f32 %v2474, %v2475
        %v2477 = vrot.slane %v2476, 1
        %v2478 = vmax.f32 %v2476, %v2477
        %v2479 = vsel %vm2114, %v1688, -inf
        %v2480 = vrot.slane %v2479, 4
        %v2481 = vmax.f32 %v2479, %v2480
        %v2482 = vrot.slane %v2481, 2
        %v2483 = vmax.f32 %v2481, %v2482
        %v2484 = vrot.slane %v2483, 1
        %v2485 = vmax.f32 %v2483, %v2484
        %v2486 = vsel %vm2114, %v1689, -inf
        %v2487 = vrot.slane %v2486, 4
        %v2488 = vmax.f32 %v2486, %v2487
        %v2489 = vrot.slane %v2488, 2
        %v2490 = vmax.f32 %v2488, %v2489
        %v2491 = vrot.slane %v2490, 1
        %v2492 = vmax.f32 %v2490, %v2491
        %v2493 = vsel %vm2114, %v1696, -inf
        %v2494 = vrot.slane %v2493, 4
        %v2495 = vmax.f32 %v2493, %v2494
        %v2496 = vrot.slane %v2495, 2
        %v2497 = vmax.f32 %v2495, %v2496
        %v2498 = vrot.slane %v2497, 1
        %v2499 = vmax.f32 %v2497, %v2498
        %v2500 = vsel %vm2114, %v1697, -inf
        %v2501 = vrot.slane %v2500, 4
        %v2502 = vmax.f32 %v2500, %v2501
        %v2503 = vrot.slane %v2502, 2
        %v2504 = vmax.f32 %v2502, %v2503
        %v2505 = vrot.slane %v2504, 1
        %v2506 = vmax.f32 %v2504, %v2505
        %v2507 = vsel %vm2114, %v1704, -inf
        %v2508 = vrot.slane %v2507, 4
        %v2509 = vmax.f32 %v2507, %v2508
        %v2510 = vrot.slane %v2509, 2
        %v2511 = vmax.f32 %v2509, %v2510
        %v2512 = vrot.slane %v2511, 1
        %v2513 = vmax.f32 %v2511, %v2512
        %v2514 = vsel %vm2114, %v1705, -inf
        %v2515 = vrot.slane %v2514, 4
        %v2516 = vmax.f32 %v2514, %v2515
        %v2517 = vrot.slane %v2516, 2
        %v2518 = vmax.f32 %v2516, %v2517
        %v2519 = vrot.slane %v2518, 1
        %v2520 = vmax.f32 %v2518, %v2519
        %v2521 = vsel %vm2114, %v1712, -inf
        %v2522 = vrot.slane %v2521, 4
        %v2523 = vmax.f32 %v2521, %v2522
        %v2524 = vrot.slane %v2523, 2
        %v2525 = vmax.f32 %v2523, %v2524
        %v2526 = vrot.slane %v2525, 1
        %v2527 = vmax.f32 %v2525, %v2526
        %v2528 = vsel %vm2114, %v1713, -inf
        %v2529 = vrot.slane %v2528, 4
        %v2530 = vmax.f32 %v2528, %v2529
        %v2531 = vrot.slane %v2530, 2
        %v2532 = vmax.f32 %v2530, %v2531
        %v2533 = vrot.slane %v2532, 1
        %v2534 = vmax.f32 %v2532, %v2533
        %v2535 = vsel %vm2114, %v1720, -inf
        %v2536 = vrot.slane %v2535, 4
        %v2537 = vmax.f32 %v2535, %v2536
        %v2538 = vrot.slane %v2537, 2
        %v2539 = vmax.f32 %v2537, %v2538
        %v2540 = vrot.slane %v2539, 1
        %v2541 = vmax.f32 %v2539, %v2540
        %v2542 = vsel %vm2114, %v1721, -inf
        %v2543 = vrot.slane %v2542, 4
        %v2544 = vmax.f32 %v2542, %v2543
        %v2545 = vrot.slane %v2544, 2
        %v2546 = vmax.f32 %v2544, %v2545
        %v2547 = vrot.slane %v2546, 1
        %v2548 = vmax.f32 %v2546, %v2547
        %v2549 = vsel %vm2114, %v1728, -inf
        %v2550 = vrot.slane %v2549, 4
        %v2551 = vmax.f32 %v2549, %v2550
        %v2552 = vrot.slane %v2551, 2
        %v2553 = vmax.f32 %v2551, %v2552
        %v2554 = vrot.slane %v2553, 1
        %v2555 = vmax.f32 %v2553, %v2554
        %v2556 = vsel %vm2114, %v1729, -inf
        %v2557 = vrot.slane %v2556, 4
        %v2558 = vmax.f32 %v2556, %v2557
        %v2559 = vrot.slane %v2558, 2
        %v2560 = vmax.f32 %v2558, %v2559
        %v2561 = vrot.slane %v2560, 1
        %v2562 = vmax.f32 %v2560, %v2561
        %v2563 = vsel %vm2114, %v1736, -inf
        %v2564 = vrot.slane %v2563, 4
        %v2565 = vmax.f32 %v2563, %v2564
        %v2566 = vrot.slane %v2565, 2
        %v2567 = vmax.f32 %v2565, %v2566
        %v2568 = vrot.slane %v2567, 1
        %v2569 = vmax.f32 %v2567, %v2568
        %v2570 = vsel %vm2114, %v1737, -inf
        %v2571 = vrot.slane %v2570, 4
        %v2572 = vmax.f32 %v2570, %v2571
        %v2573 = vrot.slane %v2572, 2
        %v2574 = vmax.f32 %v2572, %v2573
        %v2575 = vrot.slane %v2574, 1
        %v2576 = vmax.f32 %v2574, %v2575
        %v2577 = vsel %vm2114, %v1744, -inf
        %v2578 = vrot.slane %v2577, 4
        %v2579 = vmax.f32 %v2577, %v2578
        %v2580 = vrot.slane %v2579, 2
        %v2581 = vmax.f32 %v2579, %v2580
        %v2582 = vrot.slane %v2581, 1
        %v2583 = vmax.f32 %v2581, %v2582
        %v2584 = vsel %vm2114, %v1745, -inf
        %v2585 = vrot.slane %v2584, 4
        %v2586 = vmax.f32 %v2584, %v2585
        %v2587 = vrot.slane %v2586, 2
        %v2588 = vmax.f32 %v2586, %v2587
        %v2589 = vrot.slane %v2588, 1
        %v2590 = vmax.f32 %v2588, %v2589
        %v2591 = vsel %vm2114, %v1752, -inf
        %v2592 = vrot.slane %v2591, 4
        %v2593 = vmax.f32 %v2591, %v2592
        %v2594 = vrot.slane %v2593, 2
        %v2595 = vmax.f32 %v2593, %v2594
        %v2596 = vrot.slane %v2595, 1
        %v2597 = vmax.f32 %v2595, %v2596
        %v2598 = vsel %vm2114, %v1753, -inf
        %v2599 = vrot.slane %v2598, 4
        %v2600 = vmax.f32 %v2598, %v2599
        %v2601 = vrot.slane %v2600, 2
        %v2602 = vmax.f32 %v2600, %v2601
        %v2603 = vrot.slane %v2602, 1
        %v2604 = vmax.f32 %v2602, %v2603
        %v2605 = vsel %vm2114, %v1760, -inf
        %v2606 = vrot.slane %v2605, 4
        %v2607 = vmax.f32 %v2605, %v2606
        %v2608 = vrot.slane %v2607, 2
        %v2609 = vmax.f32 %v2607, %v2608
        %v2610 = vrot.slane %v2609, 1
        %v2611 = vmax.f32 %v2609, %v2610
        %v2612 = vsel %vm2114, %v1761, -inf
        %v2613 = vrot.slane %v2612, 4
        %v2614 = vmax.f32 %v2612, %v2613
        %v2615 = vrot.slane %v2614, 2
        %v2616 = vmax.f32 %v2614, %v2615
        %v2617 = vrot.slane %v2616, 1
        %v2618 = vmax.f32 %v2616, %v2617
        %v2619 = vsel %vm2114, %v1768, -inf
        %v2620 = vrot.slane %v2619, 4
        %v2621 = vmax.f32 %v2619, %v2620
        %v2622 = vrot.slane %v2621, 2
        %v2623 = vmax.f32 %v2621, %v2622
        %v2624 = vrot.slane %v2623, 1
        %v2625 = vmax.f32 %v2623, %v2624
        %v2626 = vsel %vm2114, %v1769, -inf
        %v2627 = vrot.slane %v2626, 4
        %v2628 = vmax.f32 %v2626, %v2627
        %v2629 = vrot.slane %v2628, 2
        %v2630 = vmax.f32 %v2628, %v2629
        %v2631 = vrot.slane %v2630, 1
        %v2632 = vmax.f32 %v2630, %v2631
        %v2633 = vsel %vm2114, %v1776, -inf
        %v2634 = vrot.slane %v2633, 4
        %v2635 = vmax.f32 %v2633, %v2634
        %v2636 = vrot.slane %v2635, 2
        %v2637 = vmax.f32 %v2635, %v2636
        %v2638 = vrot.slane %v2637, 1
        %v2639 = vmax.f32 %v2637, %v2638
        %v2640 = vsel %vm2114, %v1777, -inf
        %v2641 = vrot.slane %v2640, 4
        %v2642 = vmax.f32 %v2640, %v2641
        %v2643 = vrot.slane %v2642, 2
        %v2644 = vmax.f32 %v2642, %v2643
        %v2645 = vrot.slane %v2644, 1
        %v2646 = vmax.f32 %v2644, %v2645
        %v2647 = vsel %vm2114, %v1784, -inf
        %v2648 = vrot.slane %v2647, 4
        %v2649 = vmax.f32 %v2647, %v2648
        %v2650 = vrot.slane %v2649, 2
        %v2651 = vmax.f32 %v2649, %v2650
        %v2652 = vrot.slane %v2651, 1
        %v2653 = vmax.f32 %v2651, %v2652
        %v2654 = vsel %vm2114, %v1785, -inf
        %v2655 = vrot.slane %v2654, 4
        %v2656 = vmax.f32 %v2654, %v2655
        %v2657 = vrot.slane %v2656, 2
        %v2658 = vmax.f32 %v2656, %v2657
        %v2659 = vrot.slane %v2658, 1
        %v2660 = vmax.f32 %v2658, %v2659
        %v2661 = vsel %vm2114, %v1792, -inf
        %v2662 = vrot.slane %v2661, 4
        %v2663 = vmax.f32 %v2661, %v2662
        %v2664 = vrot.slane %v2663, 2
        %v2665 = vmax.f32 %v2663, %v2664
        %v2666 = vrot.slane %v2665, 1
        %v2667 = vmax.f32 %v2665, %v2666
        %v2668 = vsel %vm2114, %v1793, -inf
        %v2669 = vrot.slane %v2668, 4
        %v2670 = vmax.f32 %v2668, %v2669
        %v2671 = vrot.slane %v2670, 2
        %v2672 = vmax.f32 %v2670, %v2671
        %v2673 = vrot.slane %v2672, 1
        %v2674 = vmax.f32 %v2672, %v2673
        %v2675 = vsel %vm2114, %v1800, -inf
        %v2676 = vrot.slane %v2675, 4
        %v2677 = vmax.f32 %v2675, %v2676
        %v2678 = vrot.slane %v2677, 2
        %v2679 = vmax.f32 %v2677, %v2678
        %v2680 = vrot.slane %v2679, 1
        %v2681 = vmax.f32 %v2679, %v2680
        %v2682 = vsel %vm2114, %v1801, -inf
        %v2683 = vrot.slane %v2682, 4
        %v2684 = vmax.f32 %v2682, %v2683
        %v2685 = vrot.slane %v2684, 2
        %v2686 = vmax.f32 %v2684, %v2685
        %v2687 = vrot.slane %v2686, 1
        %v2688 = vmax.f32 %v2686, %v2687
        %v2689 = vsel %vm2114, %v1808, -inf
        %v2690 = vrot.slane %v2689, 4
        %v2691 = vmax.f32 %v2689, %v2690
        %v2692 = vrot.slane %v2691, 2
        %v2693 = vmax.f32 %v2691, %v2692
        %v2694 = vrot.slane %v2693, 1
        %v2695 = vmax.f32 %v2693, %v2694
        %v2696 = vsel %vm2114, %v1809, -inf
        %v2697 = vrot.slane %v2696, 4
        %v2698 = vmax.f32 %v2696, %v2697
        %v2699 = vrot.slane %v2698, 2
        %v2700 = vmax.f32 %v2698, %v2699
        %v2701 = vrot.slane %v2700, 1
        %v2702 = vmax.f32 %v2700, %v2701
        %v2703 = vsel %vm2114, %v1816, -inf
        %v2704 = vrot.slane %v2703, 4
        %v2705 = vmax.f32 %v2703, %v2704
        %v2706 = vrot.slane %v2705, 2
        %v2707 = vmax.f32 %v2705, %v2706
        %v2708 = vrot.slane %v2707, 1
        %v2709 = vmax.f32 %v2707, %v2708
        %v2710 = vsel %vm2114, %v1817, -inf
        %v2711 = vrot.slane %v2710, 4
        %v2712 = vmax.f32 %v2710, %v2711
        %v2713 = vrot.slane %v2712, 2
        %v2714 = vmax.f32 %v2712, %v2713
        %v2715 = vrot.slane %v2714, 1
        %v2716 = vmax.f32 %v2714, %v2715
        %v2717 = vsel %vm2114, %v1824, -inf
        %v2718 = vrot.slane %v2717, 4
        %v2719 = vmax.f32 %v2717, %v2718
        %v2720 = vrot.slane %v2719, 2
        %v2721 = vmax.f32 %v2719, %v2720
        %v2722 = vrot.slane %v2721, 1
        %v2723 = vmax.f32 %v2721, %v2722
        %v2724 = vsel %vm2114, %v1825, -inf
        %v2725 = vrot.slane %v2724, 4
        %v2726 = vmax.f32 %v2724, %v2725
        %v2727 = vrot.slane %v2726, 2
        %v2728 = vmax.f32 %v2726, %v2727
        %v2729 = vrot.slane %v2728, 1
        %v2730 = vmax.f32 %v2728, %v2729
        %v2731 = vsel %vm2114, %v1832, -inf
        %v2732 = vrot.slane %v2731, 4
        %v2733 = vmax.f32 %v2731, %v2732
        %v2734 = vrot.slane %v2733, 2
        %v2735 = vmax.f32 %v2733, %v2734
        %v2736 = vrot.slane %v2735, 1
        %v2737 = vmax.f32 %v2735, %v2736
        %v2738 = vsel %vm2114, %v1833, -inf
        %v2739 = vrot.slane %v2738, 4
        %v2740 = vmax.f32 %v2738, %v2739
        %v2741 = vrot.slane %v2740, 2
        %v2742 = vmax.f32 %v2740, %v2741
        %v2743 = vrot.slane %v2742, 1
        %v2744 = vmax.f32 %v2742, %v2743
        %v2745 = vsel %vm2114, %v1840, -inf
        %v2746 = vrot.slane %v2745, 4
        %v2747 = vmax.f32 %v2745, %v2746
        %v2748 = vrot.slane %v2747, 2
        %v2749 = vmax.f32 %v2747, %v2748
        %v2750 = vrot.slane %v2749, 1
        %v2751 = vmax.f32 %v2749, %v2750
        %v2752 = vsel %vm2114, %v1841, -inf
        %v2753 = vrot.slane %v2752, 4
        %v2754 = vmax.f32 %v2752, %v2753
        %v2755 = vrot.slane %v2754, 2
        %v2756 = vmax.f32 %v2754, %v2755
        %v2757 = vrot.slane %v2756, 1
        %v2758 = vmax.f32 %v2756, %v2757
        %v2759 = vsel %vm2114, %v1848, -inf
        %v2760 = vrot.slane %v2759, 4
        %v2761 = vmax.f32 %v2759, %v2760
        %v2762 = vrot.slane %v2761, 2
        %v2763 = vmax.f32 %v2761, %v2762
        %v2764 = vrot.slane %v2763, 1
        %v2765 = vmax.f32 %v2763, %v2764
        %v2766 = vsel %vm2114, %v1849, -inf
        %v2767 = vrot.slane %v2766, 4
        %v2768 = vmax.f32 %v2766, %v2767
        %v2769 = vrot.slane %v2768, 2
        %v2770 = vmax.f32 %v2768, %v2769
        %v2771 = vrot.slane %v2770, 1
        %v2772 = vmax.f32 %v2770, %v2771
        %v2773 = vsel %vm2114, %v1856, -inf
        %v2774 = vrot.slane %v2773, 4
        %v2775 = vmax.f32 %v2773, %v2774
        %v2776 = vrot.slane %v2775, 2
        %v2777 = vmax.f32 %v2775, %v2776
        %v2778 = vrot.slane %v2777, 1
        %v2779 = vmax.f32 %v2777, %v2778
        %v2780 = vsel %vm2114, %v1857, -inf
        %v2781 = vrot.slane %v2780, 4
        %v2782 = vmax.f32 %v2780, %v2781
        %v2783 = vrot.slane %v2782, 2
        %v2784 = vmax.f32 %v2782, %v2783
        %v2785 = vrot.slane %v2784, 1
        %v2786 = vmax.f32 %v2784, %v2785
        %v2787 = vsel %vm2114, %v1864, -inf
        %v2788 = vrot.slane %v2787, 4
        %v2789 = vmax.f32 %v2787, %v2788
        %v2790 = vrot.slane %v2789, 2
        %v2791 = vmax.f32 %v2789, %v2790
        %v2792 = vrot.slane %v2791, 1
        %v2793 = vmax.f32 %v2791, %v2792
        %v2794 = vsel %vm2114, %v1865, -inf
        %v2795 = vrot.slane %v2794, 4
        %v2796 = vmax.f32 %v2794, %v2795
        %v2797 = vrot.slane %v2796, 2
        %v2798 = vmax.f32 %v2796, %v2797
        %v2799 = vrot.slane %v2798, 1
        %v2800 = vmax.f32 %v2798, %v2799
        %v2801 = vsel %vm2114, %v1872, -inf
        %v2802 = vrot.slane %v2801, 4
        %v2803 = vmax.f32 %v2801, %v2802
        %v2804 = vrot.slane %v2803, 2
        %v2805 = vmax.f32 %v2803, %v2804
        %v2806 = vrot.slane %v2805, 1
        %v2807 = vmax.f32 %v2805, %v2806
        %v2808 = vsel %vm2114, %v1873, -inf
        %v2809 = vrot.slane %v2808, 4
        %v2810 = vmax.f32 %v2808, %v2809
        %v2811 = vrot.slane %v2810, 2
        %v2812 = vmax.f32 %v2810, %v2811
        %v2813 = vrot.slane %v2812, 1
        %v2814 = vmax.f32 %v2812, %v2813
        %v2815 = vsel %vm2114, %v1880, -inf
        %v2816 = vrot.slane %v2815, 4
        %v2817 = vmax.f32 %v2815, %v2816
        %v2818 = vrot.slane %v2817, 2
        %v2819 = vmax.f32 %v2817, %v2818
        %v2820 = vrot.slane %v2819, 1
        %v2821 = vmax.f32 %v2819, %v2820
        %v2822 = vsel %vm2114, %v1881, -inf
        %v2823 = vrot.slane %v2822, 4
        %v2824 = vmax.f32 %v2822, %v2823
        %v2825 = vrot.slane %v2824, 2
        %v2826 = vmax.f32 %v2824, %v2825
        %v2827 = vrot.slane %v2826, 1
        %v2828 = vmax.f32 %v2826, %v2827
        %v2829 = vsel %vm2114, %v1888, -inf
        %v2830 = vrot.slane %v2829, 4
        %v2831 = vmax.f32 %v2829, %v2830
        %v2832 = vrot.slane %v2831, 2
        %v2833 = vmax.f32 %v2831, %v2832
        %v2834 = vrot.slane %v2833, 1
        %v2835 = vmax.f32 %v2833, %v2834
        %v2836 = vsel %vm2114, %v1889, -inf
        %v2837 = vrot.slane %v2836, 4
        %v2838 = vmax.f32 %v2836, %v2837
        %v2839 = vrot.slane %v2838, 2
        %v2840 = vmax.f32 %v2838, %v2839
        %v2841 = vrot.slane %v2840, 1
        %v2842 = vmax.f32 %v2840, %v2841
        %v2843 = vsel %vm2114, %v1896, -inf
        %v2844 = vrot.slane %v2843, 4
        %v2845 = vmax.f32 %v2843, %v2844
        %v2846 = vrot.slane %v2845, 2
        %v2847 = vmax.f32 %v2845, %v2846
        %v2848 = vrot.slane %v2847, 1
        %v2849 = vmax.f32 %v2847, %v2848
        %v2850 = vsel %vm2114, %v1897, -inf
        %v2851 = vrot.slane %v2850, 4
        %v2852 = vmax.f32 %v2850, %v2851
        %v2853 = vrot.slane %v2852, 2
        %v2854 = vmax.f32 %v2852, %v2853
        %v2855 = vrot.slane %v2854, 1
        %v2856 = vmax.f32 %v2854, %v2855
        %v2857 = vsel %vm2114, %v1904, -inf
        %v2858 = vrot.slane %v2857, 4
        %v2859 = vmax.f32 %v2857, %v2858
        %v2860 = vrot.slane %v2859, 2
        %v2861 = vmax.f32 %v2859, %v2860
        %v2862 = vrot.slane %v2861, 1
        %v2863 = vmax.f32 %v2861, %v2862
        %v2864 = vsel %vm2114, %v1905, -inf
        %v2865 = vrot.slane %v2864, 4
        %v2866 = vmax.f32 %v2864, %v2865
        %v2867 = vrot.slane %v2866, 2
        %v2868 = vmax.f32 %v2866, %v2867
        %v2869 = vrot.slane %v2868, 1
        %v2870 = vmax.f32 %v2868, %v2869
        %v2871 = vsel %vm2114, %v1912, -inf
        %v2872 = vrot.slane %v2871, 4
        %v2873 = vmax.f32 %v2871, %v2872
        %v2874 = vrot.slane %v2873, 2
        %v2875 = vmax.f32 %v2873, %v2874
        %v2876 = vrot.slane %v2875, 1
        %v2877 = vmax.f32 %v2875, %v2876
        %v2878 = vsel %vm2114, %v1913, -inf
        %v2879 = vrot.slane %v2878, 4
        %v2880 = vmax.f32 %v2878, %v2879
        %v2881 = vrot.slane %v2880, 2
        %v2882 = vmax.f32 %v2880, %v2881
        %v2883 = vrot.slane %v2882, 1
        %v2884 = vmax.f32 %v2882, %v2883
        %v2885 = vsel %vm2114, %v1920, -inf
        %v2886 = vrot.slane %v2885, 4
        %v2887 = vmax.f32 %v2885, %v2886
        %v2888 = vrot.slane %v2887, 2
        %v2889 = vmax.f32 %v2887, %v2888
        %v2890 = vrot.slane %v2889, 1
        %v2891 = vmax.f32 %v2889, %v2890
        %v2892 = vsel %vm2114, %v1921, -inf
        %v2893 = vrot.slane %v2892, 4
        %v2894 = vmax.f32 %v2892, %v2893
        %v2895 = vrot.slane %v2894, 2
        %v2896 = vmax.f32 %v2894, %v2895
        %v2897 = vrot.slane %v2896, 1
        %v2898 = vmax.f32 %v2896, %v2897
        %v2899 = vsel %vm2114, %v1928, -inf
        %v2900 = vrot.slane %v2899, 4
        %v2901 = vmax.f32 %v2899, %v2900
        %v2902 = vrot.slane %v2901, 2
        %v2903 = vmax.f32 %v2901, %v2902
        %v2904 = vrot.slane %v2903, 1
        %v2905 = vmax.f32 %v2903, %v2904
        %v2906 = vsel %vm2114, %v1929, -inf
        %v2907 = vrot.slane %v2906, 4
        %v2908 = vmax.f32 %v2906, %v2907
        %v2909 = vrot.slane %v2908, 2
        %v2910 = vmax.f32 %v2908, %v2909
        %v2911 = vrot.slane %v2910, 1
        %v2912 = vmax.f32 %v2910, %v2911
        %v2913 = vsel %vm2114, %v1936, -inf
        %v2914 = vrot.slane %v2913, 4
        %v2915 = vmax.f32 %v2913, %v2914
        %v2916 = vrot.slane %v2915, 2
        %v2917 = vmax.f32 %v2915, %v2916
        %v2918 = vrot.slane %v2917, 1
        %v2919 = vmax.f32 %v2917, %v2918
        %v2920 = vsel %vm2114, %v1937, -inf
        %v2921 = vrot.slane %v2920, 4
        %v2922 = vmax.f32 %v2920, %v2921
        %v2923 = vrot.slane %v2922, 2
        %v2924 = vmax.f32 %v2922, %v2923
        %v2925 = vrot.slane %v2924, 1
        %v2926 = vmax.f32 %v2924, %v2925
        %v2927 = vsel %vm2114, %v1944, -inf
        %v2928 = vrot.slane %v2927, 4
        %v2929 = vmax.f32 %v2927, %v2928
        %v2930 = vrot.slane %v2929, 2
        %v2931 = vmax.f32 %v2929, %v2930
        %v2932 = vrot.slane %v2931, 1
        %v2933 = vmax.f32 %v2931, %v2932
        %v2934 = vsel %vm2114, %v1945, -inf
        %v2935 = vrot.slane %v2934, 4
        %v2936 = vmax.f32 %v2934, %v2935
        %v2937 = vrot.slane %v2936, 2
        %v2938 = vmax.f32 %v2936, %v2937
        %v2939 = vrot.slane %v2938, 1
        %v2940 = vmax.f32 %v2938, %v2939
        %v2941 = vsel %vm2114, %v1952, -inf
        %v2942 = vrot.slane %v2941, 4
        %v2943 = vmax.f32 %v2941, %v2942
        %v2944 = vrot.slane %v2943, 2
        %v2945 = vmax.f32 %v2943, %v2944
        %v2946 = vrot.slane %v2945, 1
        %v2947 = vmax.f32 %v2945, %v2946
        %v2948 = vsel %vm2114, %v1953, -inf
        %v2949 = vrot.slane %v2948, 4
        %v2950 = vmax.f32 %v2948, %v2949
        %v2951 = vrot.slane %v2950, 2
        %v2952 = vmax.f32 %v2950, %v2951
        %v2953 = vrot.slane %v2952, 1
        %v2954 = vmax.f32 %v2952, %v2953
        %v2955 = vsel %vm2114, %v1960, -inf
        %v2956 = vrot.slane %v2955, 4
        %v2957 = vmax.f32 %v2955, %v2956
        %v2958 = vrot.slane %v2957, 2
        %v2959 = vmax.f32 %v2957, %v2958
        %v2960 = vrot.slane %v2959, 1
        %v2961 = vmax.f32 %v2959, %v2960
        %v2962 = vsel %vm2114, %v1961, -inf
        %v2963 = vrot.slane %v2962, 4
        %v2964 = vmax.f32 %v2962, %v2963
        %v2965 = vrot.slane %v2964, 2
        %v2966 = vmax.f32 %v2964, %v2965
        %v2967 = vrot.slane %v2966, 1
        %v2968 = vmax.f32 %v2966, %v2967
        %v2969 = vsel %vm2114, %v1968, -inf
        %v2970 = vrot.slane %v2969, 4
        %v2971 = vmax.f32 %v2969, %v2970
        %v2972 = vrot.slane %v2971, 2
        %v2973 = vmax.f32 %v2971, %v2972
        %v2974 = vrot.slane %v2973, 1
        %v2975 = vmax.f32 %v2973, %v2974
        %v2976 = vsel %vm2114, %v1969, -inf
        %v2977 = vrot.slane %v2976, 4
        %v2978 = vmax.f32 %v2976, %v2977
        %v2979 = vrot.slane %v2978, 2
        %v2980 = vmax.f32 %v2978, %v2979
        %v2981 = vrot.slane %v2980, 1
        %v2982 = vmax.f32 %v2980, %v2981
        %v2983 = vsel %vm2114, %v1976, -inf
        %v2984 = vrot.slane %v2983, 4
        %v2985 = vmax.f32 %v2983, %v2984
        %v2986 = vrot.slane %v2985, 2
        %v2987 = vmax.f32 %v2985, %v2986
        %v2988 = vrot.slane %v2987, 1
        %v2989 = vmax.f32 %v2987, %v2988
        %v2990 = vsel %vm2114, %v1977, -inf
        %v2991 = vrot.slane %v2990, 4
        %v2992 = vmax.f32 %v2990, %v2991
        %v2993 = vrot.slane %v2992, 2
        %v2994 = vmax.f32 %v2992, %v2993
        %v2995 = vrot.slane %v2994, 1
        %v2996 = vmax.f32 %v2994, %v2995
        %v2997 = vsel %vm2114, %v1984, -inf
        %v2998 = vrot.slane %v2997, 4
        %v2999 = vmax.f32 %v2997, %v2998
        %v3000 = vrot.slane %v2999, 2
        %v3001 = vmax.f32 %v2999, %v3000
        %v3002 = vrot.slane %v3001, 1
        %v3003 = vmax.f32 %v3001, %v3002
        %v3004 = vsel %vm2114, %v1985, -inf
        %v3005 = vrot.slane %v3004, 4
        %v3006 = vmax.f32 %v3004, %v3005
        %v3007 = vrot.slane %v3006, 2
        %v3008 = vmax.f32 %v3006, %v3007
        %v3009 = vrot.slane %v3008, 1
        %v3010 = vmax.f32 %v3008, %v3009
        %v3011 = vmax.f32 %v2121, %v2128
        %v3012 = vmax.f32 %v2135, %v2142
        %v3013 = vmax.f32 %v2149, %v2156
        %v3014 = vmax.f32 %v2163, %v2170
        %v3015 = vmax.f32 %v2177, %v2184
        %v3016 = vmax.f32 %v2191, %v2198
        %v3017 = vmax.f32 %v2205, %v2212
        %v3018 = vmax.f32 %v2219, %v2226
        %v3019 = vmax.f32 %v2233, %v2240
        %v3020 = vmax.f32 %v2247, %v2254
        %v3021 = vmax.f32 %v2261, %v2268
        %v3022 = vmax.f32 %v2275, %v2282
        %v3023 = vmax.f32 %v2289, %v2296
        %v3024 = vmax.f32 %v2303, %v2310
        %v3025 = vmax.f32 %v2317, %v2324
        %v3026 = vmax.f32 %v2331, %v2338
        %v3027 = vmax.f32 %v2345, %v2352
        %v3028 = vmax.f32 %v2359, %v2366
        %v3029 = vmax.f32 %v2373, %v2380
        %v3030 = vmax.f32 %v2387, %v2394
        %v3031 = vmax.f32 %v2401, %v2408
        %v3032 = vmax.f32 %v2415, %v2422
        %v3033 = vmax.f32 %v2429, %v2436
        %v3034 = vmax.f32 %v2443, %v2450
        %v3035 = vmax.f32 %v2457, %v2464
        %v3036 = vmax.f32 %v2471, %v2478
        %v3037 = vmax.f32 %v2485, %v2492
        %v3038 = vmax.f32 %v2499, %v2506
        %v3039 = vmax.f32 %v2513, %v2520
        %v3040 = vmax.f32 %v2527, %v2534
        %v3041 = vmax.f32 %v2541, %v2548
        %v3042 = vmax.f32 %v2555, %v2562
        %v3043 = vmax.f32 %v2569, %v2576
        %v3044 = vmax.f32 %v2583, %v2590
        %v3045 = vmax.f32 %v2597, %v2604
        %v3046 = vmax.f32 %v2611, %v2618
        %v3047 = vmax.f32 %v2625, %v2632
        %v3048 = vmax.f32 %v2639, %v2646
        %v3049 = vmax.f32 %v2653, %v2660
        %v3050 = vmax.f32 %v2667, %v2674
        %v3051 = vmax.f32 %v2681, %v2688
        %v3052 = vmax.f32 %v2695, %v2702
        %v3053 = vmax.f32 %v2709, %v2716
        %v3054 = vmax.f32 %v2723, %v2730
        %v3055 = vmax.f32 %v2737, %v2744
        %v3056 = vmax.f32 %v2751, %v2758
        %v3057 = vmax.f32 %v2765, %v2772
        %v3058 = vmax.f32 %v2779, %v2786
        %v3059 = vmax.f32 %v2793, %v2800
        %v3060 = vmax.f32 %v2807, %v2814
        %v3061 = vmax.f32 %v2821, %v2828
        %v3062 = vmax.f32 %v2835, %v2842
        %v3063 = vmax.f32 %v2849, %v2856
        %v3064 = vmax.f32 %v2863, %v2870
        %v3065 = vmax.f32 %v2877, %v2884
        %v3066 = vmax.f32 %v2891, %v2898
        %v3067 = vmax.f32 %v2905, %v2912
        %v3068 = vmax.f32 %v2919, %v2926
        %v3069 = vmax.f32 %v2933, %v2940
        %v3070 = vmax.f32 %v2947, %v2954
        %v3071 = vmax.f32 %v2961, %v2968
        %v3072 = vmax.f32 %v2975, %v2982
        %v3073 = vmax.f32 %v2989, %v2996
        %v3074 = vmax.f32 %v3003, %v3010
        %v3075 = vld [vmem:[%s6] sm:$0x1]
        %v3077 = vlaneseq
        %v3078 = vshrl.u32 %v3077, 7
        %v3079 = vsub.s32 0, %v3078
        %v3080 = vrot.slane %v3075, %v3079
        %v3082 = vadd.f32 %v3011, %v3080
        %v3083 = vadd.f32 %v3012, %v3080
        %v3084 = vadd.f32 %v3013, %v3080
        %v3085 = vadd.f32 %v3014, %v3080
        %v3086 = vadd.f32 %v3015, %v3080
        %v3087 = vadd.f32 %v3016, %v3080
        %v3088 = vadd.f32 %v3017, %v3080
        %v3089 = vadd.f32 %v3018, %v3080
        %v3090 = vadd.f32 %v3019, %v3080
        %v3091 = vadd.f32 %v3020, %v3080
        %v3092 = vadd.f32 %v3021, %v3080
        %v3093 = vadd.f32 %v3022, %v3080
        %v3094 = vadd.f32 %v3023, %v3080
        %v3095 = vadd.f32 %v3024, %v3080
        %v3096 = vadd.f32 %v3025, %v3080
        %v3097 = vadd.f32 %v3026, %v3080
        %v3098 = vadd.f32 %v3027, %v3080
        %v3099 = vadd.f32 %v3028, %v3080
        %v3100 = vadd.f32 %v3029, %v3080
        %v3101 = vadd.f32 %v3030, %v3080
        %v3102 = vadd.f32 %v3031, %v3080
        %v3103 = vadd.f32 %v3032, %v3080
        %v3104 = vadd.f32 %v3033, %v3080
        %v3105 = vadd.f32 %v3034, %v3080
        %v3106 = vadd.f32 %v3035, %v3080
        %v3107 = vadd.f32 %v3036, %v3080
        %v3108 = vadd.f32 %v3037, %v3080
        %v3109 = vadd.f32 %v3038, %v3080
        %v3110 = vadd.f32 %v3039, %v3080
        %v3111 = vadd.f32 %v3040, %v3080
        %v3112 = vadd.f32 %v3041, %v3080
        %v3113 = vadd.f32 %v3042, %v3080
        %v3114 = vadd.f32 %v3043, %v3080
        %v3115 = vadd.f32 %v3044, %v3080
        %v3116 = vadd.f32 %v3045, %v3080
        %v3117 = vadd.f32 %v3046, %v3080
        %v3118 = vadd.f32 %v3047, %v3080
        %v3119 = vadd.f32 %v3048, %v3080
        %v3120 = vadd.f32 %v3049, %v3080
        %v3121 = vadd.f32 %v3050, %v3080
        %v3122 = vadd.f32 %v3051, %v3080
        %v3123 = vadd.f32 %v3052, %v3080
        %v3124 = vadd.f32 %v3053, %v3080
        %v3125 = vadd.f32 %v3054, %v3080
        %v3126 = vadd.f32 %v3055, %v3080
        %v3127 = vadd.f32 %v3056, %v3080
        %v3128 = vadd.f32 %v3057, %v3080
        %v3129 = vadd.f32 %v3058, %v3080
        %v3130 = vadd.f32 %v3059, %v3080
        %v3131 = vadd.f32 %v3060, %v3080
        %v3132 = vadd.f32 %v3061, %v3080
        %v3133 = vadd.f32 %v3062, %v3080
        %v3134 = vadd.f32 %v3063, %v3080
        %v3135 = vadd.f32 %v3064, %v3080
        %v3136 = vadd.f32 %v3065, %v3080
        %v3137 = vadd.f32 %v3066, %v3080
        %v3138 = vadd.f32 %v3067, %v3080
        %v3139 = vadd.f32 %v3068, %v3080
        %v3140 = vadd.f32 %v3069, %v3080
        %v3141 = vadd.f32 %v3070, %v3080
        %v3142 = vadd.f32 %v3071, %v3080
        %v3143 = vadd.f32 %v3072, %v3080
        %v3144 = vadd.f32 %v3073, %v3080
        %v3145 = vadd.f32 %v3074, %v3080
        %v3146 = vmax.f32 %v3082, 0.0
        %v3147 = vmax.f32 %v3083, 0.0
        %v3148 = vmax.f32 %v3084, 0.0
        %v3149 = vmax.f32 %v3085, 0.0
        %v3150 = vmax.f32 %v3086, 0.0
        %v3151 = vmax.f32 %v3087, 0.0
        %v3152 = vmax.f32 %v3088, 0.0
        %v3153 = vmax.f32 %v3089, 0.0
        %v3154 = vmax.f32 %v3090, 0.0
        %v3155 = vmax.f32 %v3091, 0.0
        %v3156 = vmax.f32 %v3092, 0.0
        %v3157 = vmax.f32 %v3093, 0.0
        %v3158 = vmax.f32 %v3094, 0.0
        %v3159 = vmax.f32 %v3095, 0.0
        %v3160 = vmax.f32 %v3096, 0.0
        %v3161 = vmax.f32 %v3097, 0.0
        %v3162 = vmax.f32 %v3098, 0.0
        %v3163 = vmax.f32 %v3099, 0.0
        %v3164 = vmax.f32 %v3100, 0.0
        %v3165 = vmax.f32 %v3101, 0.0
        %v3166 = vmax.f32 %v3102, 0.0
        %v3167 = vmax.f32 %v3103, 0.0
        %v3168 = vmax.f32 %v3104, 0.0
        %v3169 = vmax.f32 %v3105, 0.0
        %v3170 = vmax.f32 %v3106, 0.0
        %v3171 = vmax.f32 %v3107, 0.0
        %v3172 = vmax.f32 %v3108, 0.0
        %v3173 = vmax.f32 %v3109, 0.0
        %v3174 = vmax.f32 %v3110, 0.0
        %v3175 = vmax.f32 %v3111, 0.0
        %v3176 = vmax.f32 %v3112, 0.0
        %v3177 = vmax.f32 %v3113, 0.0
        %v3178 = vmax.f32 %v3114, 0.0
        %v3179 = vmax.f32 %v3115, 0.0
        %v3180 = vmax.f32 %v3116, 0.0
        %v3181 = vmax.f32 %v3117, 0.0
        %v3182 = vmax.f32 %v3118, 0.0
        %v3183 = vmax.f32 %v3119, 0.0
        %v3184 = vmax.f32 %v3120, 0.0
        %v3185 = vmax.f32 %v3121, 0.0
        %v3186 = vmax.f32 %v3122, 0.0
        %v3187 = vmax.f32 %v3123, 0.0
        %v3188 = vmax.f32 %v3124, 0.0
        %v3189 = vmax.f32 %v3125, 0.0
        %v3190 = vmax.f32 %v3126, 0.0
        %v3191 = vmax.f32 %v3127, 0.0
        %v3192 = vmax.f32 %v3128, 0.0
        %v3193 = vmax.f32 %v3129, 0.0
        %v3194 = vmax.f32 %v3130, 0.0
        %v3195 = vmax.f32 %v3131, 0.0
        %v3196 = vmax.f32 %v3132, 0.0
        %v3197 = vmax.f32 %v3133, 0.0
        %v3198 = vmax.f32 %v3134, 0.0
        %v3199 = vmax.f32 %v3135, 0.0
        %v3200 = vmax.f32 %v3136, 0.0
        %v3201 = vmax.f32 %v3137, 0.0
        %v3202 = vmax.f32 %v3138, 0.0
        %v3203 = vmax.f32 %v3139, 0.0
        %v3204 = vmax.f32 %v3140, 0.0
        %v3205 = vmax.f32 %v3141, 0.0
        %v3206 = vmax.f32 %v3142, 0.0
        %v3207 = vmax.f32 %v3143, 0.0
        %v3208 = vmax.f32 %v3144, 0.0
        %v3209 = vmax.f32 %v3145, 0.0
        %vm3210 = vcmask 1043459
        %vm3211 = vmand %vm3210, %vm446
        %v3212 = vld [vmem:[#allocation3] sm:$0x8]
        %v3213 = vsel %vm3211, 0, %v3212
        %3214 = vst [vmem:[#allocation3] sm:$0x8] %v3213
        %vm3215 = vcmask 1044484
        %vm3216 = vmand %vm3215, %vm452
        %v3217 = vld [vmem:[#allocation3 + $0x20] sm:$0x10]
        %v3218 = vsel %vm3216, 0, %v3217
        %3219 = vst [vmem:[#allocation3 + $0x20] sm:$0x10] %v3218
        %v3220 = vpack.c.bf16 %v3146, %v3146
        %v3221 = vpack.c.bf16 %v3147, %v3147
        %v3222 = vpack.c.bf16 %v3148, %v3148
        %v3223 = vpack.c.bf16 %v3149, %v3149
        %v3224 = vpack.c.bf16 %v3150, %v3150
        %v3225 = vpack.c.bf16 %v3151, %v3151
        %v3226 = vpack.c.bf16 %v3152, %v3152
        %v3227 = vpack.c.bf16 %v3153, %v3153
        %v3228 = vpack.c.bf16 %v3154, %v3154
        %v3229 = vpack.c.bf16 %v3155, %v3155
        %v3230 = vpack.c.bf16 %v3156, %v3156
        %v3231 = vpack.c.bf16 %v3157, %v3157
        %v3232 = vpack.c.bf16 %v3158, %v3158
        %v3233 = vpack.c.bf16 %v3159, %v3159
        %v3234 = vpack.c.bf16 %v3160, %v3160
        %v3235 = vpack.c.bf16 %v3161, %v3161
        %v3236 = vpack.c.bf16 %v3162, %v3162
        %v3237 = vpack.c.bf16 %v3163, %v3163
        %v3238 = vpack.c.bf16 %v3164, %v3164
        %v3239 = vpack.c.bf16 %v3165, %v3165
        %v3240 = vpack.c.bf16 %v3166, %v3166
        %v3241 = vpack.c.bf16 %v3167, %v3167
        %v3242 = vpack.c.bf16 %v3168, %v3168
        %v3243 = vpack.c.bf16 %v3169, %v3169
        %v3244 = vpack.c.bf16 %v3170, %v3170
        %v3245 = vpack.c.bf16 %v3171, %v3171
        %v3246 = vpack.c.bf16 %v3172, %v3172
        %v3247 = vpack.c.bf16 %v3173, %v3173
        %v3248 = vpack.c.bf16 %v3174, %v3174
        %v3249 = vpack.c.bf16 %v3175, %v3175
        %v3250 = vpack.c.bf16 %v3176, %v3176
        %v3251 = vpack.c.bf16 %v3177, %v3177
        %v3252 = vpack.c.bf16 %v3178, %v3178
        %v3253 = vpack.c.bf16 %v3179, %v3179
        %v3254 = vpack.c.bf16 %v3180, %v3180
        %v3255 = vpack.c.bf16 %v3181, %v3181
        %v3256 = vpack.c.bf16 %v3182, %v3182
        %v3257 = vpack.c.bf16 %v3183, %v3183
        %v3258 = vpack.c.bf16 %v3184, %v3184
        %v3259 = vpack.c.bf16 %v3185, %v3185
        %v3260 = vpack.c.bf16 %v3186, %v3186
        %v3261 = vpack.c.bf16 %v3187, %v3187
        %v3262 = vpack.c.bf16 %v3188, %v3188
        %v3263 = vpack.c.bf16 %v3189, %v3189
        %v3264 = vpack.c.bf16 %v3190, %v3190
        %v3265 = vpack.c.bf16 %v3191, %v3191
        %v3266 = vpack.c.bf16 %v3192, %v3192
        %v3267 = vpack.c.bf16 %v3193, %v3193
        %v3268 = vpack.c.bf16 %v3194, %v3194
        %v3269 = vpack.c.bf16 %v3195, %v3195
        %v3270 = vpack.c.bf16 %v3196, %v3196
        %v3271 = vpack.c.bf16 %v3197, %v3197
        %v3272 = vpack.c.bf16 %v3198, %v3198
        %v3273 = vpack.c.bf16 %v3199, %v3199
        %v3274 = vpack.c.bf16 %v3200, %v3200
        %v3275 = vpack.c.bf16 %v3201, %v3201
        %v3276 = vpack.c.bf16 %v3202, %v3202
        %v3277 = vpack.c.bf16 %v3203, %v3203
        %v3278 = vpack.c.bf16 %v3204, %v3204
        %v3279 = vpack.c.bf16 %v3205, %v3205
        %v3280 = vpack.c.bf16 %v3206, %v3206
        %v3281 = vpack.c.bf16 %v3207, %v3207
        %v3282 = vpack.c.bf16 %v3208, %v3208
        %v3283 = vpack.c.bf16 %v3209, %v3209
        %v3348 = vunpack.c.l.b16 %v3220
        %v3349 = vunpack.c.l.b16 %v3221
        %v3350 = vunpack.c.l.b16 %v3222
        %v3351 = vunpack.c.l.b16 %v3223
        %v3352 = vunpack.c.l.b16 %v3224
        %v3353 = vunpack.c.l.b16 %v3225
        %v3354 = vunpack.c.l.b16 %v3226
        %v3355 = vunpack.c.l.b16 %v3227
        %v3356 = vunpack.c.l.b16 %v3228
        %v3357 = vunpack.c.l.b16 %v3229
        %v3358 = vunpack.c.l.b16 %v3230
        %v3359 = vunpack.c.l.b16 %v3231
        %v3360 = vunpack.c.l.b16 %v3232
        %v3361 = vunpack.c.l.b16 %v3233
        %v3362 = vunpack.c.l.b16 %v3234
        %v3363 = vunpack.c.l.b16 %v3235
        %v3364 = vunpack.c.l.b16 %v3236
        %v3365 = vunpack.c.l.b16 %v3237
        %v3366 = vunpack.c.l.b16 %v3238
        %v3367 = vunpack.c.l.b16 %v3239
        %v3368 = vunpack.c.l.b16 %v3240
        %v3369 = vunpack.c.l.b16 %v3241
        %v3370 = vunpack.c.l.b16 %v3242
        %v3371 = vunpack.c.l.b16 %v3243
        %v3372 = vunpack.c.l.b16 %v3244
        %v3373 = vunpack.c.l.b16 %v3245
        %v3374 = vunpack.c.l.b16 %v3246
        %v3375 = vunpack.c.l.b16 %v3247
        %v3376 = vunpack.c.l.b16 %v3248
        %v3377 = vunpack.c.l.b16 %v3249
        %v3378 = vunpack.c.l.b16 %v3250
        %v3379 = vunpack.c.l.b16 %v3251
        %v3380 = vunpack.c.l.b16 %v3252
        %v3381 = vunpack.c.l.b16 %v3253
        %v3382 = vunpack.c.l.b16 %v3254
        %v3383 = vunpack.c.l.b16 %v3255
        %v3384 = vunpack.c.l.b16 %v3256
        %v3385 = vunpack.c.l.b16 %v3257
        %v3386 = vunpack.c.l.b16 %v3258
        %v3387 = vunpack.c.l.b16 %v3259
        %v3388 = vunpack.c.l.b16 %v3260
        %v3389 = vunpack.c.l.b16 %v3261
        %v3390 = vunpack.c.l.b16 %v3262
        %v3391 = vunpack.c.l.b16 %v3263
        %v3392 = vunpack.c.l.b16 %v3264
        %v3393 = vunpack.c.l.b16 %v3265
        %v3394 = vunpack.c.l.b16 %v3266
        %v3395 = vunpack.c.l.b16 %v3267
        %v3396 = vunpack.c.l.b16 %v3268
        %v3397 = vunpack.c.l.b16 %v3269
        %v3398 = vunpack.c.l.b16 %v3270
        %v3399 = vunpack.c.l.b16 %v3271
        %v3400 = vunpack.c.l.b16 %v3272
        %v3401 = vunpack.c.l.b16 %v3273
        %v3402 = vunpack.c.l.b16 %v3274
        %v3403 = vunpack.c.l.b16 %v3275
        %v3404 = vunpack.c.l.b16 %v3276
        %v3405 = vunpack.c.l.b16 %v3277
        %v3406 = vunpack.c.l.b16 %v3278
        %v3407 = vunpack.c.l.b16 %v3279
        %v3408 = vunpack.c.l.b16 %v3280
        %v3409 = vunpack.c.l.b16 %v3281
        %v3410 = vunpack.c.l.b16 %v3282
        %v3411 = vunpack.c.l.b16 %v3283
        %v3412 = vrot.slane %v3349, 7
        %vm3413 = vcmask 1041409
        %v3414 = vsel %vm3413, %v3412, %v3348
        %v3415 = vrot.slane %v3350, 6
        %vm3416 = vcmask 1042434
        %v3417 = vsel %vm3416, %v3415, %v3414
        %v3418 = vrot.slane %v3351, 5
        %vm3419 = vcmask 1043459
        %v3420 = vsel %vm3419, %v3418, %v3417
        %v3421 = vrot.slane %v3352, 4
        %vm3422 = vcmask 1044484
        %v3423 = vsel %vm3422, %v3421, %v3420
        %v3424 = vrot.slane %v3353, 3
        %vm3425 = vcmask 1045509
        %v3426 = vsel %vm3425, %v3424, %v3423
        %v3427 = vrot.slane %v3354, 2
        %vm3428 = vcmask 1046534
        %v3429 = vsel %vm3428, %v3427, %v3426
        %v3430 = vrot.slane %v3355, 1
        %vm3431 = vcmask 1047559
        %v3432 = vsel %vm3431, %v3430, %v3429
        %v3433 = vrot.slane %v3357, 7
        %v3434 = vsel %vm3413, %v3433, %v3356
        %v3435 = vrot.slane %v3358, 6
        %v3436 = vsel %vm3416, %v3435, %v3434
        %v3437 = vrot.slane %v3359, 5
        %v3438 = vsel %vm3419, %v3437, %v3436
        %v3439 = vrot.slane %v3360, 4
        %v3440 = vsel %vm3422, %v3439, %v3438
        %v3441 = vrot.slane %v3361, 3
        %v3442 = vsel %vm3425, %v3441, %v3440
        %v3443 = vrot.slane %v3362, 2
        %v3444 = vsel %vm3428, %v3443, %v3442
        %v3445 = vrot.slane %v3363, 1
        %v3446 = vsel %vm3431, %v3445, %v3444
        %v3447 = vrot.slane %v3365, 7
        %v3448 = vsel %vm3413, %v3447, %v3364
        %v3449 = vrot.slane %v3366, 6
        %v3450 = vsel %vm3416, %v3449, %v3448
        %v3451 = vrot.slane %v3367, 5
        %v3452 = vsel %vm3419, %v3451, %v3450
        %v3453 = vrot.slane %v3368, 4
        %v3454 = vsel %vm3422, %v3453, %v3452
        %v3455 = vrot.slane %v3369, 3
        %v3456 = vsel %vm3425, %v3455, %v3454
        %v3457 = vrot.slane %v3370, 2
        %v3458 = vsel %vm3428, %v3457, %v3456
        %v3459 = vrot.slane %v3371, 1
        %v3460 = vsel %vm3431, %v3459, %v3458
        %v3461 = vrot.slane %v3373, 7
        %v3462 = vsel %vm3413, %v3461, %v3372
        %v3463 = vrot.slane %v3374, 6
        %v3464 = vsel %vm3416, %v3463, %v3462
        %v3465 = vrot.slane %v3375, 5
        %v3466 = vsel %vm3419, %v3465, %v3464
        %v3467 = vrot.slane %v3376, 4
        %v3468 = vsel %vm3422, %v3467, %v3466
        %v3469 = vrot.slane %v3377, 3
        %v3470 = vsel %vm3425, %v3469, %v3468
        %v3471 = vrot.slane %v3378, 2
        %v3472 = vsel %vm3428, %v3471, %v3470
        %v3473 = vrot.slane %v3379, 1
        %v3474 = vsel %vm3431, %v3473, %v3472
        %v3475 = vrot.slane %v3381, 7
        %v3476 = vsel %vm3413, %v3475, %v3380
        %v3477 = vrot.slane %v3382, 6
        %v3478 = vsel %vm3416, %v3477, %v3476
        %v3479 = vrot.slane %v3383, 5
        %v3480 = vsel %vm3419, %v3479, %v3478
        %v3481 = vrot.slane %v3384, 4
        %v3482 = vsel %vm3422, %v3481, %v3480
        %v3483 = vrot.slane %v3385, 3
        %v3484 = vsel %vm3425, %v3483, %v3482
        %v3485 = vrot.slane %v3386, 2
        %v3486 = vsel %vm3428, %v3485, %v3484
        %v3487 = vrot.slane %v3387, 1
        %v3488 = vsel %vm3431, %v3487, %v3486
        %v3489 = vrot.slane %v3389, 7
        %v3490 = vsel %vm3413, %v3489, %v3388
        %v3491 = vrot.slane %v3390, 6
        %v3492 = vsel %vm3416, %v3491, %v3490
        %v3493 = vrot.slane %v3391, 5
        %v3494 = vsel %vm3419, %v3493, %v3492
        %v3495 = vrot.slane %v3392, 4
        %v3496 = vsel %vm3422, %v3495, %v3494
        %v3497 = vrot.slane %v3393, 3
        %v3498 = vsel %vm3425, %v3497, %v3496
        %v3499 = vrot.slane %v3394, 2
        %v3500 = vsel %vm3428, %v3499, %v3498
        %v3501 = vrot.slane %v3395, 1
        %v3502 = vsel %vm3431, %v3501, %v3500
        %v3503 = vrot.slane %v3397, 7
        %v3504 = vsel %vm3413, %v3503, %v3396
        %v3505 = vrot.slane %v3398, 6
        %v3506 = vsel %vm3416, %v3505, %v3504
        %v3507 = vrot.slane %v3399, 5
        %v3508 = vsel %vm3419, %v3507, %v3506
        %v3509 = vrot.slane %v3400, 4
        %v3510 = vsel %vm3422, %v3509, %v3508
        %v3511 = vrot.slane %v3401, 3
        %v3512 = vsel %vm3425, %v3511, %v3510
        %v3513 = vrot.slane %v3402, 2
        %v3514 = vsel %vm3428, %v3513, %v3512
        %v3515 = vrot.slane %v3403, 1
        %v3516 = vsel %vm3431, %v3515, %v3514
        %v3517 = vrot.slane %v3405, 7
        %v3518 = vsel %vm3413, %v3517, %v3404
        %v3519 = vrot.slane %v3406, 6
        %v3520 = vsel %vm3416, %v3519, %v3518
        %v3521 = vrot.slane %v3407, 5
        %v3522 = vsel %vm3419, %v3521, %v3520
        %v3523 = vrot.slane %v3408, 4
        %v3524 = vsel %vm3422, %v3523, %v3522
        %v3525 = vrot.slane %v3409, 3
        %v3526 = vsel %vm3425, %v3525, %v3524
        %v3527 = vrot.slane %v3410, 2
        %v3528 = vsel %vm3428, %v3527, %v3526
        %v3529 = vrot.slane %v3411, 1
        %v3530 = vsel %vm3431, %v3529, %v3528
        %v3531 = vpack.c.b16 %v3432, %v3432
        %v3532 = vpack.c.b16 %v3460, %v3446
        %v3533 = vpack.c.b16 %v3488, %v3474
        %v3534 = vpack.c.b16 %v3516, %v3502
        %v3535 = vpack.c.b16 %v3530, %v3530
        %3541 = vst [vmem:[#allocation3] sm:$0xf0] %v3531
        %3542 = vst [vmem:[#allocation3 + $0x8] sm:$0xff] %v3532
        %3543 = vst [vmem:[#allocation3 + $0x10] sm:$0xff] %v3533
        %3544 = vst [vmem:[#allocation3 + $0x18] sm:$0xff] %v3534
        %3545 = vst [vmem:[#allocation3 + $0x20] sm:$0xf] %v3535
        %v3546 = vld [vmem:[#allocation3] sm:$0xf8]
        %v3547 = vld [vmem:[#allocation3 + $0x8] sm:$0xff]
        %v3548 = vld [vmem:[#allocation3 + $0x10] sm:$0xff]
        %v3549 = vld [vmem:[#allocation3 + $0x18] sm:$0xff]
        %v3550 = vld [vmem:[#allocation3 + $0x20] sm:$0xf]
        %v3551 = vld [vmem:[#allocation5] sm:$0xff]
        %v3552 = vld [vmem:[#allocation5 + $0x8] sm:$0xff]
        %v3553 = vld [vmem:[#allocation5 + $0x10] sm:$0xff]
        %v3554 = vld [vmem:[#allocation5 + $0x18] sm:$0xff]
        %v3555 = vld [vmem:[#allocation5 + $0x20] sm:$0xff]
        %v3556 = vld [vmem:[#allocation5 + $0x28] sm:$0xff]
        %v3557 = vld [vmem:[#allocation5 + $0x30] sm:$0xff]
        %v3558 = vld [vmem:[#allocation5 + $0x38] sm:$0xff]
        %v3559 = vld [vmem:[#allocation5 + $0x40] sm:$0xff]
        %v3560 = vld [vmem:[#allocation5 + $0x48] sm:$0xff]
        %v3561 = vld [vmem:[#allocation5 + $0x50] sm:$0xff]
        %v3562 = vld [vmem:[#allocation5 + $0x58] sm:$0xff]
        %v3563 = vld [vmem:[#allocation5 + $0x60] sm:$0xff]
        %v3564 = vld [vmem:[#allocation5 + $0x68] sm:$0xff]
        %v3565 = vld [vmem:[#allocation5 + $0x70] sm:$0xff]
        %v3566 = vld [vmem:[#allocation5 + $0x78] sm:$0xff]
        %v3567 = vld [vmem:[#allocation3] sm:$0xf0]
        %s3568 = scalar_lea.vmem [#allocation5], 128
        %v3569 = vld [vmem:[%s3568] sm:$0xff]
        %v3570 = vld [vmem:[%s3568 + $0x8] sm:$0xff]
        %v3571 = vld [vmem:[%s3568 + $0x10] sm:$0xff]
        %v3572 = vld [vmem:[%s3568 + $0x18] sm:$0xff]
        %v3573 = vld [vmem:[%s3568 + $0x20] sm:$0xff]
        %v3574 = vld [vmem:[%s3568 + $0x28] sm:$0xff]
        %v3575 = vld [vmem:[%s3568 + $0x30] sm:$0xff]
        %v3576 = vld [vmem:[%s3568 + $0x38] sm:$0xff]
        %v3577 = vld [vmem:[%s3568 + $0x40] sm:$0xff]
        %v3578 = vld [vmem:[%s3568 + $0x48] sm:$0xff]
        %v3579 = vld [vmem:[%s3568 + $0x50] sm:$0xff]
        %v3580 = vld [vmem:[%s3568 + $0x58] sm:$0xff]
        %v3581 = vld [vmem:[%s3568 + $0x60] sm:$0xff]
        %v3582 = vld [vmem:[%s3568 + $0x68] sm:$0xff]
        %v3583 = vld [vmem:[%s3568 + $0x70] sm:$0xff]
        %v3584 = vld [vmem:[%s3568 + $0x78] sm:$0xff]
        %v3590 = vrot.slane %v3567, 4
        %v3591 = vrot.slane %v3547, 4
        %v3592 = vsel %vm473, %v3590, %v3591
        %v3593 = vrot.slane %v3548, 4
        %v3594 = vsel %vm473, %v3591, %v3593
        %v3595 = vrot.slane %v3549, 4
        %v3596 = vsel %vm473, %v3593, %v3595
        %v3597 = vrot.slane %v3550, 4
        %v3598 = vsel %vm473, %v3595, %v3597
        %v3619 = vunpack.c.l.b16 %v3569
        %v3620 = vunpack.c.h.b16 %v3569
        %v3621 = vunpack.c.l.b16 %v3570
        %v3622 = vunpack.c.h.b16 %v3570
        %v3623 = vunpack.c.l.b16 %v3571
        %v3624 = vunpack.c.h.b16 %v3571
        %v3625 = vunpack.c.l.b16 %v3572
        %v3626 = vunpack.c.h.b16 %v3572
        %v3627 = vunpack.c.l.b16 %v3573
        %v3628 = vunpack.c.h.b16 %v3573
        %v3629 = vunpack.c.l.b16 %v3574
        %v3630 = vunpack.c.h.b16 %v3574
        %v3631 = vunpack.c.l.b16 %v3575
        %v3632 = vunpack.c.h.b16 %v3575
        %v3633 = vunpack.c.l.b16 %v3576
        %v3634 = vunpack.c.h.b16 %v3576
        %v3635 = vunpack.c.l.b16 %v3577
        %v3636 = vunpack.c.h.b16 %v3577
        %v3637 = vunpack.c.l.b16 %v3578
        %v3638 = vunpack.c.h.b16 %v3578
        %v3639 = vunpack.c.l.b16 %v3579
        %v3640 = vunpack.c.h.b16 %v3579
        %v3641 = vunpack.c.l.b16 %v3580
        %v3642 = vunpack.c.h.b16 %v3580
        %v3643 = vunpack.c.l.b16 %v3581
        %v3644 = vunpack.c.h.b16 %v3581
        %v3645 = vunpack.c.l.b16 %v3582
        %v3646 = vunpack.c.h.b16 %v3582
        %v3647 = vunpack.c.l.b16 %v3583
        %v3648 = vunpack.c.h.b16 %v3583
        %v3649 = vunpack.c.l.b16 %v3584
        %v3650 = vunpack.c.h.b16 %v3584
        %v3651 = vpack.c.b16 %v3621, %v3619
        %v3652 = vpack.c.b16 %v3622, %v3620
        %v3653 = vpack.c.b16 %v3625, %v3623
        %v3654 = vpack.c.b16 %v3626, %v3624
        %v3655 = vpack.c.b16 %v3629, %v3627
        %v3656 = vpack.c.b16 %v3630, %v3628
        %v3657 = vpack.c.b16 %v3633, %v3631
        %v3658 = vpack.c.b16 %v3634, %v3632
        %v3659 = vpack.c.b16 %v3637, %v3635
        %v3660 = vpack.c.b16 %v3638, %v3636
        %v3661 = vpack.c.b16 %v3641, %v3639
        %v3662 = vpack.c.b16 %v3642, %v3640
        %v3663 = vpack.c.b16 %v3645, %v3643
        %v3664 = vpack.c.b16 %v3646, %v3644
        %v3665 = vpack.c.b16 %v3649, %v3647
        %v3666 = vpack.c.b16 %v3650, %v3648
        %3683 = vmatprep.subr.bf16.mxu0 %v3652
        %3684 = vmatpush1.bf16.msra.mxu0 %v3651
        %3685 = vmatprep.subr.bf16.mxu0 %v3654
        %3686 = vmatpush1.bf16.msra.mxu0 %v3653
        %3687 = vmatprep.subr.bf16.mxu0 %v3656
        %3688 = vmatpush1.bf16.msra.mxu0 %v3655
        %3689 = vmatprep.subr.bf16.mxu0 %v3658
        %3690 = vmatpush1.bf16.msra.mxu0 %v3657
        %3691 = vmatprep.subr.bf16.mxu0 %v3660
        %3692 = vmatpush1.bf16.msra.mxu0 %v3659
        %3693 = vmatprep.subr.bf16.mxu0 %v3662
        %3694 = vmatpush1.bf16.msra.mxu0 %v3661
        %3695 = vmatprep.subr.bf16.mxu0 %v3664
        %3696 = vmatpush1.bf16.msra.mxu0 %v3663
        %3697 = vmatprep.subr.bf16.mxu0 %v3666
        %3698 = vmatpush1.bf16.msra.mxu0 %v3665
        %3699 = vmatprep.subr.bf16.mxu0 0
        %3700 = vmatpush1.bf16.msra.mxu0 0
        %3701 = vmatprep.subr.bf16.mxu0 0
        %3702 = vmatpush1.bf16.msra.mxu0 0
        %3703 = vmatprep.subr.bf16.mxu0 0
        %3704 = vmatpush1.bf16.msra.mxu0 0
        %3705 = vmatprep.subr.bf16.mxu0 0
        %3706 = vmatpush1.bf16.msra.mxu0 0
        %3707 = vmatprep.subr.bf16.mxu0 0
        %3708 = vmatpush1.bf16.msra.mxu0 0
        %3709 = vmatprep.subr.bf16.mxu0 0
        %3710 = vmatpush1.bf16.msra.mxu0 0
        %3711 = vmatprep.subr.bf16.mxu0 0
        %3712 = vmatpush1.bf16.msra.mxu0 0
        %3713 = vmatprep.subr.bf16.mxu0 0
        %3714 = vmatpush1.bf16.msra.mxu0 0
        %3715 = vmatprep.mubr.bf16.mxu0 0
        %3716 = vmatmul.mubr.bf16.gmra.mrb[0].mxu0 %v3592
        %v3717 = vpop.f32.mrb[0].mxu0
        %v3718 = vadd.f32 0.0, %v3717
        %v3719 = vpop.f32.mrb[0].mxu0
        %v3720 = vadd.f32 0.0, %v3719
        %v3721 = vpop.f32.mrb[0].mxu0
        %v3722 = vadd.f32 0.0, %v3721
        %v3723 = vpop.f32.mrb[0].mxu0
        %v3724 = vadd.f32 0.0, %v3723
        %3725 = vmatprep.mubr.bf16.mxu0 0
        %3726 = vmatmul.mubr.bf16.gmra.mrb[0].mxu0 %v3594
        %v3727 = vpop.f32.mrb[0].mxu0
        %v3728 = vadd.f32 0.0, %v3727
        %v3729 = vpop.f32.mrb[0].mxu0
        %v3730 = vadd.f32 0.0, %v3729
        %v3731 = vpop.f32.mrb[0].mxu0
        %v3732 = vadd.f32 0.0, %v3731
        %v3733 = vpop.f32.mrb[0].mxu0
        %v3734 = vadd.f32 0.0, %v3733
        %3735 = vmatprep.mubr.bf16.mxu0 0
        %3736 = vmatmul.mubr.bf16.gmra.mrb[0].mxu0 %v3596
        %v3737 = vpop.f32.mrb[0].mxu0
        %v3738 = vadd.f32 0.0, %v3737
        %v3739 = vpop.f32.mrb[0].mxu0
        %v3740 = vadd.f32 0.0, %v3739
        %v3741 = vpop.f32.mrb[0].mxu0
        %v3742 = vadd.f32 0.0, %v3741
        %v3743 = vpop.f32.mrb[0].mxu0
        %v3744 = vadd.f32 0.0, %v3743
        %3745 = vmatprep.mubr.bf16.mxu0 0
        %3746 = vmatmul.mubr.bf16.gmra.mrb[0].mxu0 %v3598
        %v3747 = vpop.f32.mrb[0].mxu0
        %v3748 = vadd.f32 0.0, %v3747
        %v3749 = vpop.f32.mrb[0].mxu0
        %v3750 = vadd.f32 0.0, %v3749
        %v3751 = vpop.f32.mrb[0].mxu0
        %v3752 = vadd.f32 0.0, %v3751
        %v3753 = vpop.f32.mrb[0].mxu0
        %v3754 = vadd.f32 0.0, %v3753
        %3755 = vdwg.mxu0
        %v3757 = vshrl.u32 %v3546, 16
        %v3759 = vrot.slane %v3757, 3
        %v3760 = vshll.u32 %v3546, 16
        %v3762 = vrot.slane %v3760, 4
        %v3763 = vor.u32 %v3759, %v3762
        %v3765 = vshrl.u32 %v3547, 16
        %v3767 = vrot.slane %v3765, 3
        %v3768 = vshll.u32 %v3547, 16
        %v3770 = vrot.slane %v3768, 4
        %v3771 = vor.u32 %v3767, %v3770
        %v3772 = vsel %vm452, %v3763, %v3771
        %v3774 = vshrl.u32 %v3548, 16
        %v3776 = vrot.slane %v3774, 3
        %v3777 = vshll.u32 %v3548, 16
        %v3779 = vrot.slane %v3777, 4
        %v3780 = vor.u32 %v3776, %v3779
        %v3781 = vsel %vm452, %v3771, %v3780
        %v3783 = vshrl.u32 %v3549, 16
        %v3785 = vrot.slane %v3783, 3
        %v3786 = vshll.u32 %v3549, 16
        %v3788 = vrot.slane %v3786, 4
        %v3789 = vor.u32 %v3785, %v3788
        %v3790 = vsel %vm452, %v3780, %v3789
        %v3792 = vshrl.u32 %v3550, 16
        %v3794 = vrot.slane %v3792, 3
        %v3795 = vshll.u32 %v3550, 16
        %v3797 = vrot.slane %v3795, 4
        %v3798 = vor.u32 %v3794, %v3797
        %v3799 = vsel %vm452, %v3789, %v3798
        %v3820 = vunpack.c.l.b16 %v3551
        %v3821 = vunpack.c.h.b16 %v3551
        %v3822 = vunpack.c.l.b16 %v3552
        %v3823 = vunpack.c.h.b16 %v3552
        %v3824 = vunpack.c.l.b16 %v3553
        %v3825 = vunpack.c.h.b16 %v3553
        %v3826 = vunpack.c.l.b16 %v3554
        %v3827 = vunpack.c.h.b16 %v3554
        %v3828 = vunpack.c.l.b16 %v3555
        %v3829 = vunpack.c.h.b16 %v3555
        %v3830 = vunpack.c.l.b16 %v3556
        %v3831 = vunpack.c.h.b16 %v3556
        %v3832 = vunpack.c.l.b16 %v3557
        %v3833 = vunpack.c.h.b16 %v3557
        %v3834 = vunpack.c.l.b16 %v3558
        %v3835 = vunpack.c.h.b16 %v3558
        %v3836 = vunpack.c.l.b16 %v3559
        %v3837 = vunpack.c.h.b16 %v3559
        %v3838 = vunpack.c.l.b16 %v3560
        %v3839 = vunpack.c.h.b16 %v3560
        %v3840 = vunpack.c.l.b16 %v3561
        %v3841 = vunpack.c.h.b16 %v3561
        %v3842 = vunpack.c.l.b16 %v3562
        %v3843 = vunpack.c.h.b16 %v3562
        %v3844 = vunpack.c.l.b16 %v3563
        %v3845 = vunpack.c.h.b16 %v3563
        %v3846 = vunpack.c.l.b16 %v3564
        %v3847 = vunpack.c.h.b16 %v3564
        %v3848 = vunpack.c.l.b16 %v3565
        %v3849 = vunpack.c.h.b16 %v3565
        %v3850 = vunpack.c.l.b16 %v3566
        %v3851 = vunpack.c.h.b16 %v3566
        %v3852 = vpack.c.b16 %v3822, %v3820
        %v3853 = vpack.c.b16 %v3823, %v3821
        %v3854 = vpack.c.b16 %v3826, %v3824
        %v3855 = vpack.c.b16 %v3827, %v3825
        %v3856 = vpack.c.b16 %v3830, %v3828
        %v3857 = vpack.c.b16 %v3831, %v3829
        %v3858 = vpack.c.b16 %v3834, %v3832
        %v3859 = vpack.c.b16 %v3835, %v3833
        %v3860 = vpack.c.b16 %v3838, %v3836
        %v3861 = vpack.c.b16 %v3839, %v3837
        %v3862 = vpack.c.b16 %v3842, %v3840
        %v3863 = vpack.c.b16 %v3843, %v3841
        %v3864 = vpack.c.b16 %v3846, %v3844
        %v3865 = vpack.c.b16 %v3847, %v3845
        %v3866 = vpack.c.b16 %v3850, %v3848
        %v3867 = vpack.c.b16 %v3851, %v3849
        %3884 = vmatprep.subr.bf16.mxu0 %v3853
        %3885 = vmatpush1.bf16.msra.mxu0 %v3852
        %3886 = vmatprep.subr.bf16.mxu0 %v3855
        %3887 = vmatpush1.bf16.msra.mxu0 %v3854
        %3888 = vmatprep.subr.bf16.mxu0 %v3857
        %3889 = vmatpush1.bf16.msra.mxu0 %v3856
        %3890 = vmatprep.subr.bf16.mxu0 %v3859
        %3891 = vmatpush1.bf16.msra.mxu0 %v3858
        %3892 = vmatprep.subr.bf16.mxu0 %v3861
        %3893 = vmatpush1.bf16.msra.mxu0 %v3860
        %3894 = vmatprep.subr.bf16.mxu0 %v3863
        %3895 = vmatpush1.bf16.msra.mxu0 %v3862
        %3896 = vmatprep.subr.bf16.mxu0 %v3865
        %3897 = vmatpush1.bf16.msra.mxu0 %v3864
        %3898 = vmatprep.subr.bf16.mxu0 %v3867
        %3899 = vmatpush1.bf16.msra.mxu0 %v3866
        %3900 = vmatprep.subr.bf16.mxu0 0
        %3901 = vmatpush1.bf16.msra.mxu0 0
        %3902 = vmatprep.subr.bf16.mxu0 0
        %3903 = vmatpush1.bf16.msra.mxu0 0
        %3904 = vmatprep.subr.bf16.mxu0 0
        %3905 = vmatpush1.bf16.msra.mxu0 0
        %3906 = vmatprep.subr.bf16.mxu0 0
        %3907 = vmatpush1.bf16.msra.mxu0 0
        %3908 = vmatprep.subr.bf16.mxu0 0
        %3909 = vmatpush1.bf16.msra.mxu0 0
        %3910 = vmatprep.subr.bf16.mxu0 0
        %3911 = vmatpush1.bf16.msra.mxu0 0
        %3912 = vmatprep.subr.bf16.mxu0 0
        %3913 = vmatpush1.bf16.msra.mxu0 0
        %3914 = vmatprep.subr.bf16.mxu0 0
        %3915 = vmatpush1.bf16.msra.mxu0 0
        %3916 = vmatprep.mubr.bf16.mxu0 0
        %3917 = vmatmul.mubr.bf16.gmra.mrb[0].mxu0 %v3772
        %v3918 = vpop.f32.mrb[0].mxu0
        %v3919 = vadd.f32 %v3718, %v3918
        %v3920 = vpop.f32.mrb[0].mxu0
        %v3921 = vadd.f32 %v3720, %v3920
        %v3922 = vpop.f32.mrb[0].mxu0
        %v3923 = vadd.f32 %v3722, %v3922
        %v3924 = vpop.f32.mrb[0].mxu0
        %v3925 = vadd.f32 %v3724, %v3924
        %3926 = vmatprep.mubr.bf16.mxu0 0
        %3927 = vmatmul.mubr.bf16.gmra.mrb[0].mxu0 %v3781
        %v3928 = vpop.f32.mrb[0].mxu0
        %v3929 = vadd.f32 %v3728, %v3928
        %v3930 = vpop.f32.mrb[0].mxu0
        %v3931 = vadd.f32 %v3730, %v3930
        %v3932 = vpop.f32.mrb[0].mxu0
        %v3933 = vadd.f32 %v3732, %v3932
        %v3934 = vpop.f32.mrb[0].mxu0
        %v3935 = vadd.f32 %v3734, %v3934
        %3936 = vmatprep.mubr.bf16.mxu0 0
        %3937 = vmatmul.mubr.bf16.gmra.mrb[0].mxu0 %v3790
        %v3938 = vpop.f32.mrb[0].mxu0
        %v3939 = vadd.f32 %v3738, %v3938
        %v3940 = vpop.f32.mrb[0].mxu0
        %v3941 = vadd.f32 %v3740, %v3940
        %v3942 = vpop.f32.mrb[0].mxu0
        %v3943 = vadd.f32 %v3742, %v3942
        %v3944 = vpop.f32.mrb[0].mxu0
        %v3945 = vadd.f32 %v3744, %v3944
        %3946 = vmatprep.mubr.bf16.mxu0 0
        %3947 = vmatmul.mubr.bf16.gmra.mrb[0].mxu0 %v3799
        %v3948 = vpop.f32.mrb[0].mxu0
        %v3949 = vadd.f32 %v3748, %v3948
        %v3950 = vpop.f32.mrb[0].mxu0
        %v3951 = vadd.f32 %v3750, %v3950
        %v3952 = vpop.f32.mrb[0].mxu0
        %v3953 = vadd.f32 %v3752, %v3952
        %v3954 = vpop.f32.mrb[0].mxu0
        %v3955 = vadd.f32 %v3754, %v3954
        %3956 = vdwg.mxu0
        %v3957 = vld [vmem:[#allocation3 + $0x20] sm:$0x1f]
        %s3958 = scalar_lea.vmem [#allocation5], 256
        %v3959 = vld [vmem:[%s3958] sm:$0xff]
        %v3960 = vld [vmem:[%s3958 + $0x8] sm:$0xff]
        %v3961 = vld [vmem:[%s3958 + $0x10] sm:$0xff]
        %v3962 = vld [vmem:[%s3958 + $0x18] sm:$0xff]
        %v3963 = vld [vmem:[%s3958 + $0x20] sm:$0xff]
        %v3964 = vld [vmem:[%s3958 + $0x28] sm:$0xff]
        %v3965 = vld [vmem:[%s3958 + $0x30] sm:$0xff]
        %v3966 = vld [vmem:[%s3958 + $0x38] sm:$0xff]
        %v3967 = vld [vmem:[%s3958 + $0x40] sm:$0xff]
        %v3968 = vld [vmem:[%s3958 + $0x48] sm:$0xff]
        %v3969 = vld [vmem:[%s3958 + $0x50] sm:$0xff]
        %v3970 = vld [vmem:[%s3958 + $0x58] sm:$0xff]
        %v3971 = vld [vmem:[%s3958 + $0x60] sm:$0xff]
        %v3972 = vld [vmem:[%s3958 + $0x68] sm:$0xff]
        %v3973 = vld [vmem:[%s3958 + $0x70] sm:$0xff]
        %v3974 = vld [vmem:[%s3958 + $0x78] sm:$0xff]
        %v3976 = vshrl.u32 %v3567, 16
        %v3978 = vrot.slane %v3976, 4
        %v3979 = vshll.u32 %v3567, 16
        %v3981 = vrot.slane %v3979, 5
        %v3982 = vor.u32 %v3978, %v3981
        %v3983 = vrot.slane %v3765, 4
        %v3984 = vrot.slane %v3768, 5
        %v3985 = vor.u32 %v3983, %v3984
        %v3986 = vsel %vm929, %v3982, %v3985
        %v3987 = vrot.slane %v3774, 4
        %v3988 = vrot.slane %v3777, 5
        %v3989 = vor.u32 %v3987, %v3988
        %v3990 = vsel %vm929, %v3985, %v3989
        %v3991 = vrot.slane %v3783, 4
        %v3992 = vrot.slane %v3786, 5
        %v3993 = vor.u32 %v3991, %v3992
        %v3994 = vsel %vm929, %v3989, %v3993
        %v3996 = vshrl.u32 %v3957, 16
        %v3998 = vrot.slane %v3996, 4
        %v3999 = vshll.u32 %v3957, 16
        %v4001 = vrot.slane %v3999, 5
        %v4002 = vor.u32 %v3998, %v4001
        %v4003 = vsel %vm929, %v3993, %v4002
        %v4024 = vunpack.c.l.b16 %v3959
        %v4025 = vunpack.c.h.b16 %v3959
        %v4026 = vunpack.c.l.b16 %v3960
        %v4027 = vunpack.c.h.b16 %v3960
        %v4028 = vunpack.c.l.b16 %v3961
        %v4029 = vunpack.c.h.b16 %v3961
        %v4030 = vunpack.c.l.b16 %v3962
        %v4031 = vunpack.c.h.b16 %v3962
        %v4032 = vunpack.c.l.b16 %v3963
        %v4033 = vunpack.c.h.b16 %v3963
        %v4034 = vunpack.c.l.b16 %v3964
        %v4035 = vunpack.c.h.b16 %v3964
        %v4036 = vunpack.c.l.b16 %v3965
        %v4037 = vunpack.c.h.b16 %v3965
        %v4038 = vunpack.c.l.b16 %v3966
        %v4039 = vunpack.c.h.b16 %v3966
        %v4040 = vunpack.c.l.b16 %v3967
        %v4041 = vunpack.c.h.b16 %v3967
        %v4042 = vunpack.c.l.b16 %v3968
        %v4043 = vunpack.c.h.b16 %v3968
        %v4044 = vunpack.c.l.b16 %v3969
        %v4045 = vunpack.c.h.b16 %v3969
        %v4046 = vunpack.c.l.b16 %v3970
        %v4047 = vunpack.c.h.b16 %v3970
        %v4048 = vunpack.c.l.b16 %v3971
        %v4049 = vunpack.c.h.b16 %v3971
        %v4050 = vunpack.c.l.b16 %v3972
        %v4051 = vunpack.c.h.b16 %v3972
        %v4052 = vunpack.c.l.b16 %v3973
        %v4053 = vunpack.c.h.b16 %v3973
        %v4054 = vunpack.c.l.b16 %v3974
        %v4055 = vunpack.c.h.b16 %v3974
        %v4056 = vpack.c.b16 %v4026, %v4024
        %v4057 = vpack.c.b16 %v4027, %v4025
        %v4058 = vpack.c.b16 %v4030, %v4028
        %v4059 = vpack.c.b16 %v4031, %v4029
        %v4060 = vpack.c.b16 %v4034, %v4032
        %v4061 = vpack.c.b16 %v4035, %v4033
        %v4062 = vpack.c.b16 %v4038, %v4036
        %v4063 = vpack.c.b16 %v4039, %v4037
        %v4064 = vpack.c.b16 %v4042, %v4040
        %v4065 = vpack.c.b16 %v4043, %v4041
        %v4066 = vpack.c.b16 %v4046, %v4044
        %v4067 = vpack.c.b16 %v4047, %v4045
        %v4068 = vpack.c.b16 %v4050, %v4048
        %v4069 = vpack.c.b16 %v4051, %v4049
        %v4070 = vpack.c.b16 %v4054, %v4052
        %v4071 = vpack.c.b16 %v4055, %v4053
        %4088 = vmatprep.subr.bf16.mxu0 %v4057
        %4089 = vmatpush1.bf16.msra.mxu0 %v4056
        %4090 = vmatprep.subr.bf16.mxu0 %v4059
        %4091 = vmatpush1.bf16.msra.mxu0 %v4058
        %4092 = vmatprep.subr.bf16.mxu0 %v4061
        %4093 = vmatpush1.bf16.msra.mxu0 %v4060
        %4094 = vmatprep.subr.bf16.mxu0 %v4063
        %4095 = vmatpush1.bf16.msra.mxu0 %v4062
        %4096 = vmatprep.subr.bf16.mxu0 %v4065
        %4097 = vmatpush1.bf16.msra.mxu0 %v4064
        %4098 = vmatprep.subr.bf16.mxu0 %v4067
        %4099 = vmatpush1.bf16.msra.mxu0 %v4066
        %4100 = vmatprep.subr.bf16.mxu0 %v4069
        %4101 = vmatpush1.bf16.msra.mxu0 %v4068
        %4102 = vmatprep.subr.bf16.mxu0 %v4071
        %4103 = vmatpush1.bf16.msra.mxu0 %v4070
        %4104 = vmatprep.subr.bf16.mxu0 0
        %4105 = vmatpush1.bf16.msra.mxu0 0
        %4106 = vmatprep.subr.bf16.mxu0 0
        %4107 = vmatpush1.bf16.msra.mxu0 0
        %4108 = vmatprep.subr.bf16.mxu0 0
        %4109 = vmatpush1.bf16.msra.mxu0 0
        %4110 = vmatprep.subr.bf16.mxu0 0
        %4111 = vmatpush1.bf16.msra.mxu0 0
        %4112 = vmatprep.subr.bf16.mxu0 0
        %4113 = vmatpush1.bf16.msra.mxu0 0
        %4114 = vmatprep.subr.bf16.mxu0 0
        %4115 = vmatpush1.bf16.msra.mxu0 0
        %4116 = vmatprep.subr.bf16.mxu0 0
        %4117 = vmatpush1.bf16.msra.mxu0 0
        %4118 = vmatprep.subr.bf16.mxu0 0
        %4119 = vmatpush1.bf16.msra.mxu0 0
        %4120 = vmatprep.mubr.bf16.mxu0 0
        %4121 = vmatmul.mubr.bf16.gmra.mrb[0].mxu0 %v3986
        %v4122 = vpop.f32.mrb[0].mxu0
        %v4123 = vadd.f32 0.0, %v4122
        %v4124 = vpop.f32.mrb[0].mxu0
        %v4125 = vadd.f32 0.0, %v4124
        %v4126 = vpop.f32.mrb[0].mxu0
        %v4127 = vadd.f32 0.0, %v4126
        %v4128 = vpop.f32.mrb[0].mxu0
        %v4129 = vadd.f32 0.0, %v4128
        %4130 = vmatprep.mubr.bf16.mxu0 0
        %4131 = vmatmul.mubr.bf16.gmra.mrb[0].mxu0 %v3990
        %v4132 = vpop.f32.mrb[0].mxu0
        %v4133 = vadd.f32 0.0, %v4132
        %v4134 = vpop.f32.mrb[0].mxu0
        %v4135 = vadd.f32 0.0, %v4134
        %v4136 = vpop.f32.mrb[0].mxu0
        %v4137 = vadd.f32 0.0, %v4136
        %v4138 = vpop.f32.mrb[0].mxu0
        %v4139 = vadd.f32 0.0, %v4138
        %4140 = vmatprep.mubr.bf16.mxu0 0
        %4141 = vmatmul.mubr.bf16.gmra.mrb[0].mxu0 %v3994
        %v4142 = vpop.f32.mrb[0].mxu0
        %v4143 = vadd.f32 0.0, %v4142
        %v4144 = vpop.f32.mrb[0].mxu0
        %v4145 = vadd.f32 0.0, %v4144
        %v4146 = vpop.f32.mrb[0].mxu0
        %v4147 = vadd.f32 0.0, %v4146
        %v4148 = vpop.f32.mrb[0].mxu0
        %v4149 = vadd.f32 0.0, %v4148
        %4150 = vmatprep.mubr.bf16.mxu0 0
        %4151 = vmatmul.mubr.bf16.gmra.mrb[0].mxu0 %v4003
        %v4152 = vpop.f32.mrb[0].mxu0
        %v4153 = vadd.f32 0.0, %v4152
        %v4154 = vpop.f32.mrb[0].mxu0
        %v4155 = vadd.f32 0.0, %v4154
        %v4156 = vpop.f32.mrb[0].mxu0
        %v4157 = vadd.f32 0.0, %v4156
        %v4158 = vpop.f32.mrb[0].mxu0
        %v4159 = vadd.f32 0.0, %v4158
        %4160 = vdwg.mxu0
        %v4161 = vadd.f32 %v3919, %v4123
        %v4162 = vadd.f32 %v3921, %v4125
        %v4163 = vadd.f32 %v3923, %v4127
        %v4164 = vadd.f32 %v3925, %v4129
        %v4165 = vadd.f32 %v3929, %v4133
        %v4166 = vadd.f32 %v3931, %v4135
        %v4167 = vadd.f32 %v3933, %v4137
        %v4168 = vadd.f32 %v3935, %v4139
        %v4169 = vadd.f32 %v3939, %v4143
        %v4170 = vadd.f32 %v3941, %v4145
        %v4171 = vadd.f32 %v3943, %v4147
        %v4172 = vadd.f32 %v3945, %v4149
        %v4173 = vadd.f32 %v3949, %v4153
        %v4174 = vadd.f32 %v3951, %v4155
        %v4175 = vadd.f32 %v3953, %v4157
        %v4176 = vadd.f32 %v3955, %v4159
        %v4193 = vcombine.low %v4161, %v4162
        %v4194 = vcombine.high %v4161, %v4162
        %v4196 = vunpack.c.l.s4 1983009808
        %v4197 = vunpack.c.0.s8 %v4196
        %v4198 = vlaneseq
        %v4199 = vshrl.u32 %v4198, 7
        %v4200 = vsub.s32 %v4197, %v4199
        %v4201 = vrot.slane %v4193, %v4200
        %v4203 = vunpack.c.l.s4 1983009808
        %v4204 = vunpack.c.0.s8 %v4203
        %v4205 = vlaneseq
        %v4206 = vshrl.u32 %v4205, 7
        %v4207 = vsub.s32 %v4204, %v4206
        %v4208 = vrot.slane %v4194, %v4207
        %v4209 = vcombine.high %v4201, %v4201
        %v4210 = vcombine.high %v4208, %v4208
        %v4211 = vcombine.low %v4163, %v4164
        %v4212 = vcombine.high %v4163, %v4164
        %v4214 = vunpack.c.l.s4 1983009808
        %v4215 = vunpack.c.0.s8 %v4214
        %v4216 = vlaneseq
        %v4217 = vshrl.u32 %v4216, 7
        %v4218 = vsub.s32 %v4215, %v4217
        %v4219 = vrot.slane %v4211, %v4218
        %v4221 = vunpack.c.l.s4 1983009808
        %v4222 = vunpack.c.0.s8 %v4221
        %v4223 = vlaneseq
        %v4224 = vshrl.u32 %v4223, 7
        %v4225 = vsub.s32 %v4222, %v4224
        %v4226 = vrot.slane %v4212, %v4225
        %v4227 = vcombine.high %v4219, %v4219
        %v4228 = vcombine.high %v4226, %v4226
        %v4229 = vcombine.low %v4165, %v4166
        %v4230 = vcombine.high %v4165, %v4166
        %v4232 = vunpack.c.l.s4 1983009808
        %v4233 = vunpack.c.0.s8 %v4232
        %v4234 = vlaneseq
        %v4235 = vshrl.u32 %v4234, 7
        %v4236 = vsub.s32 %v4233, %v4235
        %v4237 = vrot.slane %v4229, %v4236
        %v4239 = vunpack.c.l.s4 1983009808
        %v4240 = vunpack.c.0.s8 %v4239
        %v4241 = vlaneseq
        %v4242 = vshrl.u32 %v4241, 7
        %v4243 = vsub.s32 %v4240, %v4242
        %v4244 = vrot.slane %v4230, %v4243
        %v4245 = vcombine.high %v4237, %v4237
        %v4246 = vcombine.high %v4244, %v4244
        %v4247 = vcombine.low %v4167, %v4168
        %v4248 = vcombine.high %v4167, %v4168
        %v4250 = vunpack.c.l.s4 1983009808
        %v4251 = vunpack.c.0.s8 %v4250
        %v4252 = vlaneseq
        %v4253 = vshrl.u32 %v4252, 7
        %v4254 = vsub.s32 %v4251, %v4253
        %v4255 = vrot.slane %v4247, %v4254
        %v4257 = vunpack.c.l.s4 1983009808
        %v4258 = vunpack.c.0.s8 %v4257
        %v4259 = vlaneseq
        %v4260 = vshrl.u32 %v4259, 7
        %v4261 = vsub.s32 %v4258, %v4260
        %v4262 = vrot.slane %v4248, %v4261
        %v4263 = vcombine.high %v4255, %v4255
        %v4264 = vcombine.high %v4262, %v4262
        %v4265 = vcombine.low %v4169, %v4170
        %v4266 = vcombine.high %v4169, %v4170
        %v4268 = vunpack.c.l.s4 1983009808
        %v4269 = vunpack.c.0.s8 %v4268
        %v4270 = vlaneseq
        %v4271 = vshrl.u32 %v4270, 7
        %v4272 = vsub.s32 %v4269, %v4271
        %v4273 = vrot.slane %v4265, %v4272
        %v4275 = vunpack.c.l.s4 1983009808
        %v4276 = vunpack.c.0.s8 %v4275
        %v4277 = vlaneseq
        %v4278 = vshrl.u32 %v4277, 7
        %v4279 = vsub.s32 %v4276, %v4278
        %v4280 = vrot.slane %v4266, %v4279
        %v4281 = vcombine.high %v4273, %v4273
        %v4282 = vcombine.high %v4280, %v4280
        %v4283 = vcombine.low %v4171, %v4172
        %v4284 = vcombine.high %v4171, %v4172
        %v4286 = vunpack.c.l.s4 1983009808
        %v4287 = vunpack.c.0.s8 %v4286
        %v4288 = vlaneseq
        %v4289 = vshrl.u32 %v4288, 7
        %v4290 = vsub.s32 %v4287, %v4289
        %v4291 = vrot.slane %v4283, %v4290
        %v4293 = vunpack.c.l.s4 1983009808
        %v4294 = vunpack.c.0.s8 %v4293
        %v4295 = vlaneseq
        %v4296 = vshrl.u32 %v4295, 7
        %v4297 = vsub.s32 %v4294, %v4296
        %v4298 = vrot.slane %v4284, %v4297
        %v4299 = vcombine.high %v4291, %v4291
        %v4300 = vcombine.high %v4298, %v4298
        %v4301 = vcombine.low %v4173, %v4174
        %v4302 = vcombine.high %v4173, %v4174
        %v4304 = vunpack.c.l.s4 1983009808
        %v4305 = vunpack.c.0.s8 %v4304
        %v4306 = vlaneseq
        %v4307 = vshrl.u32 %v4306, 7
        %v4308 = vsub.s32 %v4305, %v4307
        %v4309 = vrot.slane %v4301, %v4308
        %v4311 = vunpack.c.l.s4 1983009808
        %v4312 = vunpack.c.0.s8 %v4311
        %v4313 = vlaneseq
        %v4314 = vshrl.u32 %v4313, 7
        %v4315 = vsub.s32 %v4312, %v4314
        %v4316 = vrot.slane %v4302, %v4315
        %v4317 = vcombine.high %v4309, %v4309
        %v4318 = vcombine.high %v4316, %v4316
        %v4319 = vcombine.low %v4175, %v4176
        %v4320 = vcombine.high %v4175, %v4176
        %v4322 = vunpack.c.l.s4 1983009808
        %v4323 = vunpack.c.0.s8 %v4322
        %v4324 = vlaneseq
        %v4325 = vshrl.u32 %v4324, 7
        %v4326 = vsub.s32 %v4323, %v4325
        %v4327 = vrot.slane %v4319, %v4326
        %v4329 = vunpack.c.l.s4 1983009808
        %v4330 = vunpack.c.0.s8 %v4329
        %v4331 = vlaneseq
        %v4332 = vshrl.u32 %v4331, 7
        %v4333 = vsub.s32 %v4330, %v4332
        %v4334 = vrot.slane %v4320, %v4333
        %v4335 = vcombine.high %v4327, %v4327
        %v4336 = vcombine.high %v4334, %v4334
        %v4338 = vunpack.c.l.s4 1983009808
        %v4339 = vunpack.c.0.s8 %v4338
        %v4340 = vlaneseq
        %v4341 = vshrl.u32 %v4340, 7
        %v4342 = vsub.s32 %v4339, %v4341
        %v4343 = vrot.slane %v4201, %v4342
        %v4344 = vcombine.high %v4343, %v4343
        %v4346 = vunpack.c.l.s4 1983009808
        %v4347 = vunpack.c.0.s8 %v4346
        %v4348 = vlaneseq
        %v4349 = vshrl.u32 %v4348, 7
        %v4350 = vsub.s32 %v4347, %v4349
        %v4351 = vrot.slane %v4209, %v4350
        %v4352 = vcombine.high %v4351, %v4351
        %v4354 = vunpack.c.l.s4 1983009808
        %v4355 = vunpack.c.0.s8 %v4354
        %v4356 = vlaneseq
        %v4357 = vshrl.u32 %v4356, 7
        %v4358 = vsub.s32 %v4355, %v4357
        %v4359 = vrot.slane %v4208, %v4358
        %v4360 = vcombine.high %v4359, %v4359
        %v4362 = vunpack.c.l.s4 1983009808
        %v4363 = vunpack.c.0.s8 %v4362
        %v4364 = vlaneseq
        %v4365 = vshrl.u32 %v4364, 7
        %v4366 = vsub.s32 %v4363, %v4365
        %v4367 = vrot.slane %v4210, %v4366
        %v4368 = vcombine.high %v4367, %v4367
        %v4370 = vunpack.c.l.s4 1983009808
        %v4371 = vunpack.c.0.s8 %v4370
        %v4372 = vlaneseq
        %v4373 = vshrl.u32 %v4372, 7
        %v4374 = vsub.s32 %v4371, %v4373
        %v4375 = vrot.slane %v4219, %v4374
        %v4376 = vcombine.high %v4375, %v4375
        %v4378 = vunpack.c.l.s4 1983009808
        %v4379 = vunpack.c.0.s8 %v4378
        %v4380 = vlaneseq
        %v4381 = vshrl.u32 %v4380, 7
        %v4382 = vsub.s32 %v4379, %v4381
        %v4383 = vrot.slane %v4227, %v4382
        %v4384 = vcombine.high %v4383, %v4383
        %v4386 = vunpack.c.l.s4 1983009808
        %v4387 = vunpack.c.0.s8 %v4386
        %v4388 = vlaneseq
        %v4389 = vshrl.u32 %v4388, 7
        %v4390 = vsub.s32 %v4387, %v4389
        %v4391 = vrot.slane %v4226, %v4390
        %v4392 = vcombine.high %v4391, %v4391
        %v4394 = vunpack.c.l.s4 1983009808
        %v4395 = vunpack.c.0.s8 %v4394
        %v4396 = vlaneseq
        %v4397 = vshrl.u32 %v4396, 7
        %v4398 = vsub.s32 %v4395, %v4397
        %v4399 = vrot.slane %v4228, %v4398
        %v4400 = vcombine.high %v4399, %v4399
        %v4402 = vunpack.c.l.s4 1983009808
        %v4403 = vunpack.c.0.s8 %v4402
        %v4404 = vlaneseq
        %v4405 = vshrl.u32 %v4404, 7
        %v4406 = vsub.s32 %v4403, %v4405
        %v4407 = vrot.slane %v4237, %v4406
        %v4408 = vcombine.high %v4407, %v4407
        %v4410 = vunpack.c.l.s4 1983009808
        %v4411 = vunpack.c.0.s8 %v4410
        %v4412 = vlaneseq
        %v4413 = vshrl.u32 %v4412, 7
        %v4414 = vsub.s32 %v4411, %v4413
        %v4415 = vrot.slane %v4245, %v4414
        %v4416 = vcombine.high %v4415, %v4415
        %v4418 = vunpack.c.l.s4 1983009808
        %v4419 = vunpack.c.0.s8 %v4418
        %v4420 = vlaneseq
        %v4421 = vshrl.u32 %v4420, 7
        %v4422 = vsub.s32 %v4419, %v4421
        %v4423 = vrot.slane %v4244, %v4422
        %v4424 = vcombine.high %v4423, %v4423
        %v4426 = vunpack.c.l.s4 1983009808
        %v4427 = vunpack.c.0.s8 %v4426
        %v4428 = vlaneseq
        %v4429 = vshrl.u32 %v4428, 7
        %v4430 = vsub.s32 %v4427, %v4429
        %v4431 = vrot.slane %v4246, %v4430
        %v4432 = vcombine.high %v4431, %v4431
        %v4434 = vunpack.c.l.s4 1983009808
        %v4435 = vunpack.c.0.s8 %v4434
        %v4436 = vlaneseq
        %v4437 = vshrl.u32 %v4436, 7
        %v4438 = vsub.s32 %v4435, %v4437
        %v4439 = vrot.slane %v4255, %v4438
        %v4440 = vcombine.high %v4439, %v4439
        %v4442 = vunpack.c.l.s4 1983009808
        %v4443 = vunpack.c.0.s8 %v4442
        %v4444 = vlaneseq
        %v4445 = vshrl.u32 %v4444, 7
        %v4446 = vsub.s32 %v4443, %v4445
        %v4447 = vrot.slane %v4263, %v4446
        %v4448 = vcombine.high %v4447, %v4447
        %v4450 = vunpack.c.l.s4 1983009808
        %v4451 = vunpack.c.0.s8 %v4450
        %v4452 = vlaneseq
        %v4453 = vshrl.u32 %v4452, 7
        %v4454 = vsub.s32 %v4451, %v4453
        %v4455 = vrot.slane %v4262, %v4454
        %v4456 = vcombine.high %v4455, %v4455
        %v4458 = vunpack.c.l.s4 1983009808
        %v4459 = vunpack.c.0.s8 %v4458
        %v4460 = vlaneseq
        %v4461 = vshrl.u32 %v4460, 7
        %v4462 = vsub.s32 %v4459, %v4461
        %v4463 = vrot.slane %v4264, %v4462
        %v4464 = vcombine.high %v4463, %v4463
        %v4466 = vunpack.c.l.s4 1983009808
        %v4467 = vunpack.c.0.s8 %v4466
        %v4468 = vlaneseq
        %v4469 = vshrl.u32 %v4468, 7
        %v4470 = vsub.s32 %v4467, %v4469
        %v4471 = vrot.slane %v4273, %v4470
        %v4472 = vcombine.high %v4471, %v4471
        %v4474 = vunpack.c.l.s4 1983009808
        %v4475 = vunpack.c.0.s8 %v4474
        %v4476 = vlaneseq
        %v4477 = vshrl.u32 %v4476, 7
        %v4478 = vsub.s32 %v4475, %v4477
        %v4479 = vrot.slane %v4281, %v4478
        %v4480 = vcombine.high %v4479, %v4479
        %v4482 = vunpack.c.l.s4 1983009808
        %v4483 = vunpack.c.0.s8 %v4482
        %v4484 = vlaneseq
        %v4485 = vshrl.u32 %v4484, 7
        %v4486 = vsub.s32 %v4483, %v4485
        %v4487 = vrot.slane %v4280, %v4486
        %v4488 = vcombine.high %v4487, %v4487
        %v4490 = vunpack.c.l.s4 1983009808
        %v4491 = vunpack.c.0.s8 %v4490
        %v4492 = vlaneseq
        %v4493 = vshrl.u32 %v4492, 7
        %v4494 = vsub.s32 %v4491, %v4493
        %v4495 = vrot.slane %v4282, %v4494
        %v4496 = vcombine.high %v4495, %v4495
        %v4498 = vunpack.c.l.s4 1983009808
        %v4499 = vunpack.c.0.s8 %v4498
        %v4500 = vlaneseq
        %v4501 = vshrl.u32 %v4500, 7
        %v4502 = vsub.s32 %v4499, %v4501
        %v4503 = vrot.slane %v4291, %v4502
        %v4504 = vcombine.high %v4503, %v4503
        %v4506 = vunpack.c.l.s4 1983009808
        %v4507 = vunpack.c.0.s8 %v4506
        %v4508 = vlaneseq
        %v4509 = vshrl.u32 %v4508, 7
        %v4510 = vsub.s32 %v4507, %v4509
        %v4511 = vrot.slane %v4299, %v4510
        %v4512 = vcombine.high %v4511, %v4511
        %v4514 = vunpack.c.l.s4 1983009808
        %v4515 = vunpack.c.0.s8 %v4514
        %v4516 = vlaneseq
        %v4517 = vshrl.u32 %v4516, 7
        %v4518 = vsub.s32 %v4515, %v4517
        %v4519 = vrot.slane %v4298, %v4518
        %v4520 = vcombine.high %v4519, %v4519
        %v4522 = vunpack.c.l.s4 1983009808
        %v4523 = vunpack.c.0.s8 %v4522
        %v4524 = vlaneseq
        %v4525 = vshrl.u32 %v4524, 7
        %v4526 = vsub.s32 %v4523, %v4525
        %v4527 = vrot.slane %v4300, %v4526
        %v4528 = vcombine.high %v4527, %v4527
        %v4530 = vunpack.c.l.s4 1983009808
        %v4531 = vunpack.c.0.s8 %v4530
        %v4532 = vlaneseq
        %v4533 = vshrl.u32 %v4532, 7
        %v4534 = vsub.s32 %v4531, %v4533
        %v4535 = vrot.slane %v4309, %v4534
        %v4536 = vcombine.high %v4535, %v4535
        %v4538 = vunpack.c.l.s4 1983009808
        %v4539 = vunpack.c.0.s8 %v4538
        %v4540 = vlaneseq
        %v4541 = vshrl.u32 %v4540, 7
        %v4542 = vsub.s32 %v4539, %v4541
        %v4543 = vrot.slane %v4317, %v4542
        %v4544 = vcombine.high %v4543, %v4543
        %v4546 = vunpack.c.l.s4 1983009808
        %v4547 = vunpack.c.0.s8 %v4546
        %v4548 = vlaneseq
        %v4549 = vshrl.u32 %v4548, 7
        %v4550 = vsub.s32 %v4547, %v4549
        %v4551 = vrot.slane %v4316, %v4550
        %v4552 = vcombine.high %v4551, %v4551
        %v4554 = vunpack.c.l.s4 1983009808
        %v4555 = vunpack.c.0.s8 %v4554
        %v4556 = vlaneseq
        %v4557 = vshrl.u32 %v4556, 7
        %v4558 = vsub.s32 %v4555, %v4557
        %v4559 = vrot.slane %v4318, %v4558
        %v4560 = vcombine.high %v4559, %v4559
        %v4562 = vunpack.c.l.s4 1983009808
        %v4563 = vunpack.c.0.s8 %v4562
        %v4564 = vlaneseq
        %v4565 = vshrl.u32 %v4564, 7
        %v4566 = vsub.s32 %v4563, %v4565
        %v4567 = vrot.slane %v4327, %v4566
        %v4568 = vcombine.high %v4567, %v4567
        %v4570 = vunpack.c.l.s4 1983009808
        %v4571 = vunpack.c.0.s8 %v4570
        %v4572 = vlaneseq
        %v4573 = vshrl.u32 %v4572, 7
        %v4574 = vsub.s32 %v4571, %v4573
        %v4575 = vrot.slane %v4335, %v4574
        %v4576 = vcombine.high %v4575, %v4575
        %v4578 = vunpack.c.l.s4 1983009808
        %v4579 = vunpack.c.0.s8 %v4578
        %v4580 = vlaneseq
        %v4581 = vshrl.u32 %v4580, 7
        %v4582 = vsub.s32 %v4579, %v4581
        %v4583 = vrot.slane %v4334, %v4582
        %v4584 = vcombine.high %v4583, %v4583
        %v4586 = vunpack.c.l.s4 1983009808
        %v4587 = vunpack.c.0.s8 %v4586
        %v4588 = vlaneseq
        %v4589 = vshrl.u32 %v4588, 7
        %v4590 = vsub.s32 %v4587, %v4589
        %v4591 = vrot.slane %v4336, %v4590
        %v4592 = vcombine.high %v4591, %v4591
        %v4657 = vsel %vm2114, %v4343, -inf
        %v4658 = vrot.slane %v4657, 4
        %v4659 = vmax.f32 %v4657, %v4658
        %v4660 = vrot.slane %v4659, 2
        %v4661 = vmax.f32 %v4659, %v4660
        %v4662 = vrot.slane %v4661, 1
        %v4663 = vmax.f32 %v4661, %v4662
        %v4664 = vsel %vm2114, %v4344, -inf
        %v4665 = vrot.slane %v4664, 4
        %v4666 = vmax.f32 %v4664, %v4665
        %v4667 = vrot.slane %v4666, 2
        %v4668 = vmax.f32 %v4666, %v4667
        %v4669 = vrot.slane %v4668, 1
        %v4670 = vmax.f32 %v4668, %v4669
        %v4671 = vsel %vm2114, %v4351, -inf
        %v4672 = vrot.slane %v4671, 4
        %v4673 = vmax.f32 %v4671, %v4672
        %v4674 = vrot.slane %v4673, 2
        %v4675 = vmax.f32 %v4673, %v4674
        %v4676 = vrot.slane %v4675, 1
        %v4677 = vmax.f32 %v4675, %v4676
        %v4678 = vsel %vm2114, %v4352, -inf
        %v4679 = vrot.slane %v4678, 4
        %v4680 = vmax.f32 %v4678, %v4679
        %v4681 = vrot.slane %v4680, 2
        %v4682 = vmax.f32 %v4680, %v4681
        %v4683 = vrot.slane %v4682, 1
        %v4684 = vmax.f32 %v4682, %v4683
        %v4685 = vsel %vm2114, %v4359, -inf
        %v4686 = vrot.slane %v4685, 4
        %v4687 = vmax.f32 %v4685, %v4686
        %v4688 = vrot.slane %v4687, 2
        %v4689 = vmax.f32 %v4687, %v4688
        %v4690 = vrot.slane %v4689, 1
        %v4691 = vmax.f32 %v4689, %v4690
        %v4692 = vsel %vm2114, %v4360, -inf
        %v4693 = vrot.slane %v4692, 4
        %v4694 = vmax.f32 %v4692, %v4693
        %v4695 = vrot.slane %v4694, 2
        %v4696 = vmax.f32 %v4694, %v4695
        %v4697 = vrot.slane %v4696, 1
        %v4698 = vmax.f32 %v4696, %v4697
        %v4699 = vsel %vm2114, %v4367, -inf
        %v4700 = vrot.slane %v4699, 4
        %v4701 = vmax.f32 %v4699, %v4700
        %v4702 = vrot.slane %v4701, 2
        %v4703 = vmax.f32 %v4701, %v4702
        %v4704 = vrot.slane %v4703, 1
        %v4705 = vmax.f32 %v4703, %v4704
        %v4706 = vsel %vm2114, %v4368, -inf
        %v4707 = vrot.slane %v4706, 4
        %v4708 = vmax.f32 %v4706, %v4707
        %v4709 = vrot.slane %v4708, 2
        %v4710 = vmax.f32 %v4708, %v4709
        %v4711 = vrot.slane %v4710, 1
        %v4712 = vmax.f32 %v4710, %v4711
        %v4713 = vsel %vm2114, %v4375, -inf
        %v4714 = vrot.slane %v4713, 4
        %v4715 = vmax.f32 %v4713, %v4714
        %v4716 = vrot.slane %v4715, 2
        %v4717 = vmax.f32 %v4715, %v4716
        %v4718 = vrot.slane %v4717, 1
        %v4719 = vmax.f32 %v4717, %v4718
        %v4720 = vsel %vm2114, %v4376, -inf
        %v4721 = vrot.slane %v4720, 4
        %v4722 = vmax.f32 %v4720, %v4721
        %v4723 = vrot.slane %v4722, 2
        %v4724 = vmax.f32 %v4722, %v4723
        %v4725 = vrot.slane %v4724, 1
        %v4726 = vmax.f32 %v4724, %v4725
        %v4727 = vsel %vm2114, %v4383, -inf
        %v4728 = vrot.slane %v4727, 4
        %v4729 = vmax.f32 %v4727, %v4728
        %v4730 = vrot.slane %v4729, 2
        %v4731 = vmax.f32 %v4729, %v4730
        %v4732 = vrot.slane %v4731, 1
        %v4733 = vmax.f32 %v4731, %v4732
        %v4734 = vsel %vm2114, %v4384, -inf
        %v4735 = vrot.slane %v4734, 4
        %v4736 = vmax.f32 %v4734, %v4735
        %v4737 = vrot.slane %v4736, 2
        %v4738 = vmax.f32 %v4736, %v4737
        %v4739 = vrot.slane %v4738, 1
        %v4740 = vmax.f32 %v4738, %v4739
        %v4741 = vsel %vm2114, %v4391, -inf
        %v4742 = vrot.slane %v4741, 4
        %v4743 = vmax.f32 %v4741, %v4742
        %v4744 = vrot.slane %v4743, 2
        %v4745 = vmax.f32 %v4743, %v4744
        %v4746 = vrot.slane %v4745, 1
        %v4747 = vmax.f32 %v4745, %v4746
        %v4748 = vsel %vm2114, %v4392, -inf
        %v4749 = vrot.slane %v4748, 4
        %v4750 = vmax.f32 %v4748, %v4749
        %v4751 = vrot.slane %v4750, 2
        %v4752 = vmax.f32 %v4750, %v4751
        %v4753 = vrot.slane %v4752, 1
        %v4754 = vmax.f32 %v4752, %v4753
        %v4755 = vsel %vm2114, %v4399, -inf
        %v4756 = vrot.slane %v4755, 4
        %v4757 = vmax.f32 %v4755, %v4756
        %v4758 = vrot.slane %v4757, 2
        %v4759 = vmax.f32 %v4757, %v4758
        %v4760 = vrot.slane %v4759, 1
        %v4761 = vmax.f32 %v4759, %v4760
        %v4762 = vsel %vm2114, %v4400, -inf
        %v4763 = vrot.slane %v4762, 4
        %v4764 = vmax.f32 %v4762, %v4763
        %v4765 = vrot.slane %v4764, 2
        %v4766 = vmax.f32 %v4764, %v4765
        %v4767 = vrot.slane %v4766, 1
        %v4768 = vmax.f32 %v4766, %v4767
        %v4769 = vsel %vm2114, %v4407, -inf
        %v4770 = vrot.slane %v4769, 4
        %v4771 = vmax.f32 %v4769, %v4770
        %v4772 = vrot.slane %v4771, 2
        %v4773 = vmax.f32 %v4771, %v4772
        %v4774 = vrot.slane %v4773, 1
        %v4775 = vmax.f32 %v4773, %v4774
        %v4776 = vsel %vm2114, %v4408, -inf
        %v4777 = vrot.slane %v4776, 4
        %v4778 = vmax.f32 %v4776, %v4777
        %v4779 = vrot.slane %v4778, 2
        %v4780 = vmax.f32 %v4778, %v4779
        %v4781 = vrot.slane %v4780, 1
        %v4782 = vmax.f32 %v4780, %v4781
        %v4783 = vsel %vm2114, %v4415, -inf
        %v4784 = vrot.slane %v4783, 4
        %v4785 = vmax.f32 %v4783, %v4784
        %v4786 = vrot.slane %v4785, 2
        %v4787 = vmax.f32 %v4785, %v4786
        %v4788 = vrot.slane %v4787, 1
        %v4789 = vmax.f32 %v4787, %v4788
        %v4790 = vsel %vm2114, %v4416, -inf
        %v4791 = vrot.slane %v4790, 4
        %v4792 = vmax.f32 %v4790, %v4791
        %v4793 = vrot.slane %v4792, 2
        %v4794 = vmax.f32 %v4792, %v4793
        %v4795 = vrot.slane %v4794, 1
        %v4796 = vmax.f32 %v4794, %v4795
        %v4797 = vsel %vm2114, %v4423, -inf
        %v4798 = vrot.slane %v4797, 4
        %v4799 = vmax.f32 %v4797, %v4798
        %v4800 = vrot.slane %v4799, 2
        %v4801 = vmax.f32 %v4799, %v4800
        %v4802 = vrot.slane %v4801, 1
        %v4803 = vmax.f32 %v4801, %v4802
        %v4804 = vsel %vm2114, %v4424, -inf
        %v4805 = vrot.slane %v4804, 4
        %v4806 = vmax.f32 %v4804, %v4805
        %v4807 = vrot.slane %v4806, 2
        %v4808 = vmax.f32 %v4806, %v4807
        %v4809 = vrot.slane %v4808, 1
        %v4810 = vmax.f32 %v4808, %v4809
        %v4811 = vsel %vm2114, %v4431, -inf
        %v4812 = vrot.slane %v4811, 4
        %v4813 = vmax.f32 %v4811, %v4812
        %v4814 = vrot.slane %v4813, 2
        %v4815 = vmax.f32 %v4813, %v4814
        %v4816 = vrot.slane %v4815, 1
        %v4817 = vmax.f32 %v4815, %v4816
        %v4818 = vsel %vm2114, %v4432, -inf
        %v4819 = vrot.slane %v4818, 4
        %v4820 = vmax.f32 %v4818, %v4819
        %v4821 = vrot.slane %v4820, 2
        %v4822 = vmax.f32 %v4820, %v4821
        %v4823 = vrot.slane %v4822, 1
        %v4824 = vmax.f32 %v4822, %v4823
        %v4825 = vsel %vm2114, %v4439, -inf
        %v4826 = vrot.slane %v4825, 4
        %v4827 = vmax.f32 %v4825, %v4826
        %v4828 = vrot.slane %v4827, 2
        %v4829 = vmax.f32 %v4827, %v4828
        %v4830 = vrot.slane %v4829, 1
        %v4831 = vmax.f32 %v4829, %v4830
        %v4832 = vsel %vm2114, %v4440, -inf
        %v4833 = vrot.slane %v4832, 4
        %v4834 = vmax.f32 %v4832, %v4833
        %v4835 = vrot.slane %v4834, 2
        %v4836 = vmax.f32 %v4834, %v4835
        %v4837 = vrot.slane %v4836, 1
        %v4838 = vmax.f32 %v4836, %v4837
        %v4839 = vsel %vm2114, %v4447, -inf
        %v4840 = vrot.slane %v4839, 4
        %v4841 = vmax.f32 %v4839, %v4840
        %v4842 = vrot.slane %v4841, 2
        %v4843 = vmax.f32 %v4841, %v4842
        %v4844 = vrot.slane %v4843, 1
        %v4845 = vmax.f32 %v4843, %v4844
        %v4846 = vsel %vm2114, %v4448, -inf
        %v4847 = vrot.slane %v4846, 4
        %v4848 = vmax.f32 %v4846, %v4847
        %v4849 = vrot.slane %v4848, 2
        %v4850 = vmax.f32 %v4848, %v4849
        %v4851 = vrot.slane %v4850, 1
        %v4852 = vmax.f32 %v4850, %v4851
        %v4853 = vsel %vm2114, %v4455, -inf
        %v4854 = vrot.slane %v4853, 4
        %v4855 = vmax.f32 %v4853, %v4854
        %v4856 = vrot.slane %v4855, 2
        %v4857 = vmax.f32 %v4855, %v4856
        %v4858 = vrot.slane %v4857, 1
        %v4859 = vmax.f32 %v4857, %v4858
        %v4860 = vsel %vm2114, %v4456, -inf
        %v4861 = vrot.slane %v4860, 4
        %v4862 = vmax.f32 %v4860, %v4861
        %v4863 = vrot.slane %v4862, 2
        %v4864 = vmax.f32 %v4862, %v4863
        %v4865 = vrot.slane %v4864, 1
        %v4866 = vmax.f32 %v4864, %v4865
        %v4867 = vsel %vm2114, %v4463, -inf
        %v4868 = vrot.slane %v4867, 4
        %v4869 = vmax.f32 %v4867, %v4868
        %v4870 = vrot.slane %v4869, 2
        %v4871 = vmax.f32 %v4869, %v4870
        %v4872 = vrot.slane %v4871, 1
        %v4873 = vmax.f32 %v4871, %v4872
        %v4874 = vsel %vm2114, %v4464, -inf
        %v4875 = vrot.slane %v4874, 4
        %v4876 = vmax.f32 %v4874, %v4875
        %v4877 = vrot.slane %v4876, 2
        %v4878 = vmax.f32 %v4876, %v4877
        %v4879 = vrot.slane %v4878, 1
        %v4880 = vmax.f32 %v4878, %v4879
        %v4881 = vsel %vm2114, %v4471, -inf
        %v4882 = vrot.slane %v4881, 4
        %v4883 = vmax.f32 %v4881, %v4882
        %v4884 = vrot.slane %v4883, 2
        %v4885 = vmax.f32 %v4883, %v4884
        %v4886 = vrot.slane %v4885, 1
        %v4887 = vmax.f32 %v4885, %v4886
        %v4888 = vsel %vm2114, %v4472, -inf
        %v4889 = vrot.slane %v4888, 4
        %v4890 = vmax.f32 %v4888, %v4889
        %v4891 = vrot.slane %v4890, 2
        %v4892 = vmax.f32 %v4890, %v4891
        %v4893 = vrot.slane %v4892, 1
        %v4894 = vmax.f32 %v4892, %v4893
        %v4895 = vsel %vm2114, %v4479, -inf
        %v4896 = vrot.slane %v4895, 4
        %v4897 = vmax.f32 %v4895, %v4896
        %v4898 = vrot.slane %v4897, 2
        %v4899 = vmax.f32 %v4897, %v4898
        %v4900 = vrot.slane %v4899, 1
        %v4901 = vmax.f32 %v4899, %v4900
        %v4902 = vsel %vm2114, %v4480, -inf
        %v4903 = vrot.slane %v4902, 4
        %v4904 = vmax.f32 %v4902, %v4903
        %v4905 = vrot.slane %v4904, 2
        %v4906 = vmax.f32 %v4904, %v4905
        %v4907 = vrot.slane %v4906, 1
        %v4908 = vmax.f32 %v4906, %v4907
        %v4909 = vsel %vm2114, %v4487, -inf
        %v4910 = vrot.slane %v4909, 4
        %v4911 = vmax.f32 %v4909, %v4910
        %v4912 = vrot.slane %v4911, 2
        %v4913 = vmax.f32 %v4911, %v4912
        %v4914 = vrot.slane %v4913, 1
        %v4915 = vmax.f32 %v4913, %v4914
        %v4916 = vsel %vm2114, %v4488, -inf
        %v4917 = vrot.slane %v4916, 4
        %v4918 = vmax.f32 %v4916, %v4917
        %v4919 = vrot.slane %v4918, 2
        %v4920 = vmax.f32 %v4918, %v4919
        %v4921 = vrot.slane %v4920, 1
        %v4922 = vmax.f32 %v4920, %v4921
        %v4923 = vsel %vm2114, %v4495, -inf
        %v4924 = vrot.slane %v4923, 4
        %v4925 = vmax.f32 %v4923, %v4924
        %v4926 = vrot.slane %v4925, 2
        %v4927 = vmax.f32 %v4925, %v4926
        %v4928 = vrot.slane %v4927, 1
        %v4929 = vmax.f32 %v4927, %v4928
        %v4930 = vsel %vm2114, %v4496, -inf
        %v4931 = vrot.slane %v4930, 4
        %v4932 = vmax.f32 %v4930, %v4931
        %v4933 = vrot.slane %v4932, 2
        %v4934 = vmax.f32 %v4932, %v4933
        %v4935 = vrot.slane %v4934, 1
        %v4936 = vmax.f32 %v4934, %v4935
        %v4937 = vsel %vm2114, %v4503, -inf
        %v4938 = vrot.slane %v4937, 4
        %v4939 = vmax.f32 %v4937, %v4938
        %v4940 = vrot.slane %v4939, 2
        %v4941 = vmax.f32 %v4939, %v4940
        %v4942 = vrot.slane %v4941, 1
        %v4943 = vmax.f32 %v4941, %v4942
        %v4944 = vsel %vm2114, %v4504, -inf
        %v4945 = vrot.slane %v4944, 4
        %v4946 = vmax.f32 %v4944, %v4945
        %v4947 = vrot.slane %v4946, 2
        %v4948 = vmax.f32 %v4946, %v4947
        %v4949 = vrot.slane %v4948, 1
        %v4950 = vmax.f32 %v4948, %v4949
        %v4951 = vsel %vm2114, %v4511, -inf
        %v4952 = vrot.slane %v4951, 4
        %v4953 = vmax.f32 %v4951, %v4952
        %v4954 = vrot.slane %v4953, 2
        %v4955 = vmax.f32 %v4953, %v4954
        %v4956 = vrot.slane %v4955, 1
        %v4957 = vmax.f32 %v4955, %v4956
        %v4958 = vsel %vm2114, %v4512, -inf
        %v4959 = vrot.slane %v4958, 4
        %v4960 = vmax.f32 %v4958, %v4959
        %v4961 = vrot.slane %v4960, 2
        %v4962 = vmax.f32 %v4960, %v4961
        %v4963 = vrot.slane %v4962, 1
        %v4964 = vmax.f32 %v4962, %v4963
        %v4965 = vsel %vm2114, %v4519, -inf
        %v4966 = vrot.slane %v4965, 4
        %v4967 = vmax.f32 %v4965, %v4966
        %v4968 = vrot.slane %v4967, 2
        %v4969 = vmax.f32 %v4967, %v4968
        %v4970 = vrot.slane %v4969, 1
        %v4971 = vmax.f32 %v4969, %v4970
        %v4972 = vsel %vm2114, %v4520, -inf
        %v4973 = vrot.slane %v4972, 4
        %v4974 = vmax.f32 %v4972, %v4973
        %v4975 = vrot.slane %v4974, 2
        %v4976 = vmax.f32 %v4974, %v4975
        %v4977 = vrot.slane %v4976, 1
        %v4978 = vmax.f32 %v4976, %v4977
        %v4979 = vsel %vm2114, %v4527, -inf
        %v4980 = vrot.slane %v4979, 4
        %v4981 = vmax.f32 %v4979, %v4980
        %v4982 = vrot.slane %v4981, 2
        %v4983 = vmax.f32 %v4981, %v4982
        %v4984 = vrot.slane %v4983, 1
        %v4985 = vmax.f32 %v4983, %v4984
        %v4986 = vsel %vm2114, %v4528, -inf
        %v4987 = vrot.slane %v4986, 4
        %v4988 = vmax.f32 %v4986, %v4987
        %v4989 = vrot.slane %v4988, 2
        %v4990 = vmax.f32 %v4988, %v4989
        %v4991 = vrot.slane %v4990, 1
        %v4992 = vmax.f32 %v4990, %v4991
        %v4993 = vsel %vm2114, %v4535, -inf
        %v4994 = vrot.slane %v4993, 4
        %v4995 = vmax.f32 %v4993, %v4994
        %v4996 = vrot.slane %v4995, 2
        %v4997 = vmax.f32 %v4995, %v4996
        %v4998 = vrot.slane %v4997, 1
        %v4999 = vmax.f32 %v4997, %v4998
        %v5000 = vsel %vm2114, %v4536, -inf
        %v5001 = vrot.slane %v5000, 4
        %v5002 = vmax.f32 %v5000, %v5001
        %v5003 = vrot.slane %v5002, 2
        %v5004 = vmax.f32 %v5002, %v5003
        %v5005 = vrot.slane %v5004, 1
        %v5006 = vmax.f32 %v5004, %v5005
        %v5007 = vsel %vm2114, %v4543, -inf
        %v5008 = vrot.slane %v5007, 4
        %v5009 = vmax.f32 %v5007, %v5008
        %v5010 = vrot.slane %v5009, 2
        %v5011 = vmax.f32 %v5009, %v5010
        %v5012 = vrot.slane %v5011, 1
        %v5013 = vmax.f32 %v5011, %v5012
        %v5014 = vsel %vm2114, %v4544, -inf
        %v5015 = vrot.slane %v5014, 4
        %v5016 = vmax.f32 %v5014, %v5015
        %v5017 = vrot.slane %v5016, 2
        %v5018 = vmax.f32 %v5016, %v5017
        %v5019 = vrot.slane %v5018, 1
        %v5020 = vmax.f32 %v5018, %v5019
        %v5021 = vsel %vm2114, %v4551, -inf
        %v5022 = vrot.slane %v5021, 4
        %v5023 = vmax.f32 %v5021, %v5022
        %v5024 = vrot.slane %v5023, 2
        %v5025 = vmax.f32 %v5023, %v5024
        %v5026 = vrot.slane %v5025, 1
        %v5027 = vmax.f32 %v5025, %v5026
        %v5028 = vsel %vm2114, %v4552, -inf
        %v5029 = vrot.slane %v5028, 4
        %v5030 = vmax.f32 %v5028, %v5029
        %v5031 = vrot.slane %v5030, 2
        %v5032 = vmax.f32 %v5030, %v5031
        %v5033 = vrot.slane %v5032, 1
        %v5034 = vmax.f32 %v5032, %v5033
        %v5035 = vsel %vm2114, %v4559, -inf
        %v5036 = vrot.slane %v5035, 4
        %v5037 = vmax.f32 %v5035, %v5036
        %v5038 = vrot.slane %v5037, 2
        %v5039 = vmax.f32 %v5037, %v5038
        %v5040 = vrot.slane %v5039, 1
        %v5041 = vmax.f32 %v5039, %v5040
        %v5042 = vsel %vm2114, %v4560, -inf
        %v5043 = vrot.slane %v5042, 4
        %v5044 = vmax.f32 %v5042, %v5043
        %v5045 = vrot.slane %v5044, 2
        %v5046 = vmax.f32 %v5044, %v5045
        %v5047 = vrot.slane %v5046, 1
        %v5048 = vmax.f32 %v5046, %v5047
        %v5049 = vsel %vm2114, %v4567, -inf
        %v5050 = vrot.slane %v5049, 4
        %v5051 = vmax.f32 %v5049, %v5050
        %v5052 = vrot.slane %v5051, 2
        %v5053 = vmax.f32 %v5051, %v5052
        %v5054 = vrot.slane %v5053, 1
        %v5055 = vmax.f32 %v5053, %v5054
        %v5056 = vsel %vm2114, %v4568, -inf
        %v5057 = vrot.slane %v5056, 4
        %v5058 = vmax.f32 %v5056, %v5057
        %v5059 = vrot.slane %v5058, 2
        %v5060 = vmax.f32 %v5058, %v5059
        %v5061 = vrot.slane %v5060, 1
        %v5062 = vmax.f32 %v5060, %v5061
        %v5063 = vsel %vm2114, %v4575, -inf
        %v5064 = vrot.slane %v5063, 4
        %v5065 = vmax.f32 %v5063, %v5064
        %v5066 = vrot.slane %v5065, 2
        %v5067 = vmax.f32 %v5065, %v5066
        %v5068 = vrot.slane %v5067, 1
        %v5069 = vmax.f32 %v5067, %v5068
        %v5070 = vsel %vm2114, %v4576, -inf
        %v5071 = vrot.slane %v5070, 4
        %v5072 = vmax.f32 %v5070, %v5071
        %v5073 = vrot.slane %v5072, 2
        %v5074 = vmax.f32 %v5072, %v5073
        %v5075 = vrot.slane %v5074, 1
        %v5076 = vmax.f32 %v5074, %v5075
        %v5077 = vsel %vm2114, %v4583, -inf
        %v5078 = vrot.slane %v5077, 4
        %v5079 = vmax.f32 %v5077, %v5078
        %v5080 = vrot.slane %v5079, 2
        %v5081 = vmax.f32 %v5079, %v5080
        %v5082 = vrot.slane %v5081, 1
        %v5083 = vmax.f32 %v5081, %v5082
        %v5084 = vsel %vm2114, %v4584, -inf
        %v5085 = vrot.slane %v5084, 4
        %v5086 = vmax.f32 %v5084, %v5085
        %v5087 = vrot.slane %v5086, 2
        %v5088 = vmax.f32 %v5086, %v5087
        %v5089 = vrot.slane %v5088, 1
        %v5090 = vmax.f32 %v5088, %v5089
        %v5091 = vsel %vm2114, %v4591, -inf
        %v5092 = vrot.slane %v5091, 4
        %v5093 = vmax.f32 %v5091, %v5092
        %v5094 = vrot.slane %v5093, 2
        %v5095 = vmax.f32 %v5093, %v5094
        %v5096 = vrot.slane %v5095, 1
        %v5097 = vmax.f32 %v5095, %v5096
        %v5098 = vsel %vm2114, %v4592, -inf
        %v5099 = vrot.slane %v5098, 4
        %v5100 = vmax.f32 %v5098, %v5099
        %v5101 = vrot.slane %v5100, 2
        %v5102 = vmax.f32 %v5100, %v5101
        %v5103 = vrot.slane %v5102, 1
        %v5104 = vmax.f32 %v5102, %v5103
        %v5105 = vmax.f32 %v4663, %v4670
        %v5106 = vmax.f32 %v4677, %v4684
        %v5107 = vmax.f32 %v4691, %v4698
        %v5108 = vmax.f32 %v4705, %v4712
        %v5109 = vmax.f32 %v4719, %v4726
        %v5110 = vmax.f32 %v4733, %v4740
        %v5111 = vmax.f32 %v4747, %v4754
        %v5112 = vmax.f32 %v4761, %v4768
        %v5113 = vmax.f32 %v4775, %v4782
        %v5114 = vmax.f32 %v4789, %v4796
        %v5115 = vmax.f32 %v4803, %v4810
        %v5116 = vmax.f32 %v4817, %v4824
        %v5117 = vmax.f32 %v4831, %v4838
        %v5118 = vmax.f32 %v4845, %v4852
        %v5119 = vmax.f32 %v4859, %v4866
        %v5120 = vmax.f32 %v4873, %v4880
        %v5121 = vmax.f32 %v4887, %v4894
        %v5122 = vmax.f32 %v4901, %v4908
        %v5123 = vmax.f32 %v4915, %v4922
        %v5124 = vmax.f32 %v4929, %v4936
        %v5125 = vmax.f32 %v4943, %v4950
        %v5126 = vmax.f32 %v4957, %v4964
        %v5127 = vmax.f32 %v4971, %v4978
        %v5128 = vmax.f32 %v4985, %v4992
        %v5129 = vmax.f32 %v4999, %v5006
        %v5130 = vmax.f32 %v5013, %v5020
        %v5131 = vmax.f32 %v5027, %v5034
        %v5132 = vmax.f32 %v5041, %v5048
        %v5133 = vmax.f32 %v5055, %v5062
        %v5134 = vmax.f32 %v5069, %v5076
        %v5135 = vmax.f32 %v5083, %v5090
        %v5136 = vmax.f32 %v5097, %v5104
        %v5137 = vld [vmem:[%s7] sm:$0x1]
        %v5139 = vlaneseq
        %v5140 = vshrl.u32 %v5139, 7
        %v5141 = vsub.s32 0, %v5140
        %v5142 = vrot.slane %v5137, %v5141
        %v5144 = vadd.f32 %v5105, %v5142
        %v5145 = vadd.f32 %v5106, %v5142
        %v5146 = vadd.f32 %v5107, %v5142
        %v5147 = vadd.f32 %v5108, %v5142
        %v5148 = vadd.f32 %v5109, %v5142
        %v5149 = vadd.f32 %v5110, %v5142
        %v5150 = vadd.f32 %v5111, %v5142
        %v5151 = vadd.f32 %v5112, %v5142
        %v5152 = vadd.f32 %v5113, %v5142
        %v5153 = vadd.f32 %v5114, %v5142
        %v5154 = vadd.f32 %v5115, %v5142
        %v5155 = vadd.f32 %v5116, %v5142
        %v5156 = vadd.f32 %v5117, %v5142
        %v5157 = vadd.f32 %v5118, %v5142
        %v5158 = vadd.f32 %v5119, %v5142
        %v5159 = vadd.f32 %v5120, %v5142
        %v5160 = vadd.f32 %v5121, %v5142
        %v5161 = vadd.f32 %v5122, %v5142
        %v5162 = vadd.f32 %v5123, %v5142
        %v5163 = vadd.f32 %v5124, %v5142
        %v5164 = vadd.f32 %v5125, %v5142
        %v5165 = vadd.f32 %v5126, %v5142
        %v5166 = vadd.f32 %v5127, %v5142
        %v5167 = vadd.f32 %v5128, %v5142
        %v5168 = vadd.f32 %v5129, %v5142
        %v5169 = vadd.f32 %v5130, %v5142
        %v5170 = vadd.f32 %v5131, %v5142
        %v5171 = vadd.f32 %v5132, %v5142
        %v5172 = vadd.f32 %v5133, %v5142
        %v5173 = vadd.f32 %v5134, %v5142
        %v5174 = vadd.f32 %v5135, %v5142
        %v5175 = vadd.f32 %v5136, %v5142
        %v5176 = vmax.f32 %v5144, 0.0
        %v5177 = vmax.f32 %v5145, 0.0
        %v5178 = vmax.f32 %v5146, 0.0
        %v5179 = vmax.f32 %v5147, 0.0
        %v5180 = vmax.f32 %v5148, 0.0
        %v5181 = vmax.f32 %v5149, 0.0
        %v5182 = vmax.f32 %v5150, 0.0
        %v5183 = vmax.f32 %v5151, 0.0
        %v5184 = vmax.f32 %v5152, 0.0
        %v5185 = vmax.f32 %v5153, 0.0
        %v5186 = vmax.f32 %v5154, 0.0
        %v5187 = vmax.f32 %v5155, 0.0
        %v5188 = vmax.f32 %v5156, 0.0
        %v5189 = vmax.f32 %v5157, 0.0
        %v5190 = vmax.f32 %v5158, 0.0
        %v5191 = vmax.f32 %v5159, 0.0
        %v5192 = vmax.f32 %v5160, 0.0
        %v5193 = vmax.f32 %v5161, 0.0
        %v5194 = vmax.f32 %v5162, 0.0
        %v5195 = vmax.f32 %v5163, 0.0
        %v5196 = vmax.f32 %v5164, 0.0
        %v5197 = vmax.f32 %v5165, 0.0
        %v5198 = vmax.f32 %v5166, 0.0
        %v5199 = vmax.f32 %v5167, 0.0
        %v5200 = vmax.f32 %v5168, 0.0
        %v5201 = vmax.f32 %v5169, 0.0
        %v5202 = vmax.f32 %v5170, 0.0
        %v5203 = vmax.f32 %v5171, 0.0
        %v5204 = vmax.f32 %v5172, 0.0
        %v5205 = vmax.f32 %v5173, 0.0
        %v5206 = vmax.f32 %v5174, 0.0
        %v5207 = vmax.f32 %v5175, 0.0
        %v5208 = vld [vmem:[#allocation4] sm:$0x8]
        %v5209 = vsel %vm3211, 0, %v5208
        %5210 = vst [vmem:[#allocation4] sm:$0x8] %v5209
        %v5211 = vld [vmem:[#allocation4 + $0x10] sm:$0x10]
        %v5212 = vsel %vm3216, 0, %v5211
        %5213 = vst [vmem:[#allocation4 + $0x10] sm:$0x10] %v5212
        %v5214 = vpack.c.bf16 %v5176, %v5176
        %v5215 = vpack.c.bf16 %v5177, %v5177
        %v5216 = vpack.c.bf16 %v5178, %v5178
        %v5217 = vpack.c.bf16 %v5179, %v5179
        %v5218 = vpack.c.bf16 %v5180, %v5180
        %v5219 = vpack.c.bf16 %v5181, %v5181
        %v5220 = vpack.c.bf16 %v5182, %v5182
        %v5221 = vpack.c.bf16 %v5183, %v5183
        %v5222 = vpack.c.bf16 %v5184, %v5184
        %v5223 = vpack.c.bf16 %v5185, %v5185
        %v5224 = vpack.c.bf16 %v5186, %v5186
        %v5225 = vpack.c.bf16 %v5187, %v5187
        %v5226 = vpack.c.bf16 %v5188, %v5188
        %v5227 = vpack.c.bf16 %v5189, %v5189
        %v5228 = vpack.c.bf16 %v5190, %v5190
        %v5229 = vpack.c.bf16 %v5191, %v5191
        %v5230 = vpack.c.bf16 %v5192, %v5192
        %v5231 = vpack.c.bf16 %v5193, %v5193
        %v5232 = vpack.c.bf16 %v5194, %v5194
        %v5233 = vpack.c.bf16 %v5195, %v5195
        %v5234 = vpack.c.bf16 %v5196, %v5196
        %v5235 = vpack.c.bf16 %v5197, %v5197
        %v5236 = vpack.c.bf16 %v5198, %v5198
        %v5237 = vpack.c.bf16 %v5199, %v5199
        %v5238 = vpack.c.bf16 %v5200, %v5200
        %v5239 = vpack.c.bf16 %v5201, %v5201
        %v5240 = vpack.c.bf16 %v5202, %v5202
        %v5241 = vpack.c.bf16 %v5203, %v5203
        %v5242 = vpack.c.bf16 %v5204, %v5204
        %v5243 = vpack.c.bf16 %v5205, %v5205
        %v5244 = vpack.c.bf16 %v5206, %v5206
        %v5245 = vpack.c.bf16 %v5207, %v5207
        %v5278 = vunpack.c.l.b16 %v5214
        %v5279 = vunpack.c.l.b16 %v5215
        %v5280 = vunpack.c.l.b16 %v5216
        %v5281 = vunpack.c.l.b16 %v5217
        %v5282 = vunpack.c.l.b16 %v5218
        %v5283 = vunpack.c.l.b16 %v5219
        %v5284 = vunpack.c.l.b16 %v5220
        %v5285 = vunpack.c.l.b16 %v5221
        %v5286 = vunpack.c.l.b16 %v5222
        %v5287 = vunpack.c.l.b16 %v5223
        %v5288 = vunpack.c.l.b16 %v5224
        %v5289 = vunpack.c.l.b16 %v5225
        %v5290 = vunpack.c.l.b16 %v5226
        %v5291 = vunpack.c.l.b16 %v5227
        %v5292 = vunpack.c.l.b16 %v5228
        %v5293 = vunpack.c.l.b16 %v5229
        %v5294 = vunpack.c.l.b16 %v5230
        %v5295 = vunpack.c.l.b16 %v5231
        %v5296 = vunpack.c.l.b16 %v5232
        %v5297 = vunpack.c.l.b16 %v5233
        %v5298 = vunpack.c.l.b16 %v5234
        %v5299 = vunpack.c.l.b16 %v5235
        %v5300 = vunpack.c.l.b16 %v5236
        %v5301 = vunpack.c.l.b16 %v5237
        %v5302 = vunpack.c.l.b16 %v5238
        %v5303 = vunpack.c.l.b16 %v5239
        %v5304 = vunpack.c.l.b16 %v5240
        %v5305 = vunpack.c.l.b16 %v5241
        %v5306 = vunpack.c.l.b16 %v5242
        %v5307 = vunpack.c.l.b16 %v5243
        %v5308 = vunpack.c.l.b16 %v5244
        %v5309 = vunpack.c.l.b16 %v5245
        %v5310 = vrot.slane %v5279, 7
        %v5311 = vsel %vm3413, %v5310, %v5278
        %v5312 = vrot.slane %v5280, 6
        %v5313 = vsel %vm3416, %v5312, %v5311
        %v5314 = vrot.slane %v5281, 5
        %v5315 = vsel %vm3419, %v5314, %v5313
        %v5316 = vrot.slane %v5282, 4
        %v5317 = vsel %vm3422, %v5316, %v5315
        %v5318 = vrot.slane %v5283, 3
        %v5319 = vsel %vm3425, %v5318, %v5317
        %v5320 = vrot.slane %v5284, 2
        %v5321 = vsel %vm3428, %v5320, %v5319
        %v5322 = vrot.slane %v5285, 1
        %v5323 = vsel %vm3431, %v5322, %v5321
        %v5324 = vrot.slane %v5287, 7
        %v5325 = vsel %vm3413, %v5324, %v5286
        %v5326 = vrot.slane %v5288, 6
        %v5327 = vsel %vm3416, %v5326, %v5325
        %v5328 = vrot.slane %v5289, 5
        %v5329 = vsel %vm3419, %v5328, %v5327
        %v5330 = vrot.slane %v5290, 4
        %v5331 = vsel %vm3422, %v5330, %v5329
        %v5332 = vrot.slane %v5291, 3
        %v5333 = vsel %vm3425, %v5332, %v5331
        %v5334 = vrot.slane %v5292, 2
        %v5335 = vsel %vm3428, %v5334, %v5333
        %v5336 = vrot.slane %v5293, 1
        %v5337 = vsel %vm3431, %v5336, %v5335
        %v5338 = vrot.slane %v5295, 7
        %v5339 = vsel %vm3413, %v5338, %v5294
        %v5340 = vrot.slane %v5296, 6
        %v5341 = vsel %vm3416, %v5340, %v5339
        %v5342 = vrot.slane %v5297, 5
        %v5343 = vsel %vm3419, %v5342, %v5341
        %v5344 = vrot.slane %v5298, 4
        %v5345 = vsel %vm3422, %v5344, %v5343
        %v5346 = vrot.slane %v5299, 3
        %v5347 = vsel %vm3425, %v5346, %v5345
        %v5348 = vrot.slane %v5300, 2
        %v5349 = vsel %vm3428, %v5348, %v5347
        %v5350 = vrot.slane %v5301, 1
        %v5351 = vsel %vm3431, %v5350, %v5349
        %v5352 = vrot.slane %v5303, 7
        %v5353 = vsel %vm3413, %v5352, %v5302
        %v5354 = vrot.slane %v5304, 6
        %v5355 = vsel %vm3416, %v5354, %v5353
        %v5356 = vrot.slane %v5305, 5
        %v5357 = vsel %vm3419, %v5356, %v5355
        %v5358 = vrot.slane %v5306, 4
        %v5359 = vsel %vm3422, %v5358, %v5357
        %v5360 = vrot.slane %v5307, 3
        %v5361 = vsel %vm3425, %v5360, %v5359
        %v5362 = vrot.slane %v5308, 2
        %v5363 = vsel %vm3428, %v5362, %v5361
        %v5364 = vrot.slane %v5309, 1
        %v5365 = vsel %vm3431, %v5364, %v5363
        %v5366 = vpack.c.b16 %v5323, %v5323
        %v5367 = vpack.c.b16 %v5351, %v5337
        %v5368 = vpack.c.b16 %v5365, %v5365
        %5372 = vst [vmem:[#allocation4] sm:$0xf0] %v5366
        %5373 = vst [vmem:[#allocation4 + $0x8] sm:$0xff] %v5367
        %5374 = vst [vmem:[#allocation4 + $0x10] sm:$0xf] %v5368
        %v5375 = vld [vmem:[#allocation4] sm:$0xf8]
        %v5376 = vld [vmem:[#allocation4 + $0x8] sm:$0xff]
        %v5377 = vld [vmem:[#allocation4 + $0x10] sm:$0xf]
        %v5378 = vld [vmem:[#allocation8] sm:$0xff]
        %v5379 = vld [vmem:[#allocation8 + $0x8] sm:$0xff]
        %v5380 = vld [vmem:[#allocation8 + $0x10] sm:$0xff]
        %v5381 = vld [vmem:[#allocation8 + $0x18] sm:$0xff]
        %v5382 = vld [vmem:[#allocation8 + $0x20] sm:$0xff]
        %v5383 = vld [vmem:[#allocation8 + $0x28] sm:$0xff]
        %v5384 = vld [vmem:[#allocation8 + $0x30] sm:$0xff]
        %v5385 = vld [vmem:[#allocation8 + $0x38] sm:$0xff]
        %v5386 = vld [vmem:[#allocation8 + $0x40] sm:$0xff]
        %v5387 = vld [vmem:[#allocation8 + $0x48] sm:$0xff]
        %v5388 = vld [vmem:[#allocation8 + $0x50] sm:$0xff]
        %v5389 = vld [vmem:[#allocation8 + $0x58] sm:$0xff]
        %v5390 = vld [vmem:[#allocation8 + $0x60] sm:$0xff]
        %v5391 = vld [vmem:[#allocation8 + $0x68] sm:$0xff]
        %v5392 = vld [vmem:[#allocation8 + $0x70] sm:$0xff]
        %v5393 = vld [vmem:[#allocation8 + $0x78] sm:$0xff]
        %v5394 = vld [vmem:[#allocation4] sm:$0xf0]
        %s5395 = scalar_lea.vmem [#allocation8], 128
        %v5396 = vld [vmem:[%s5395] sm:$0xff]
        %v5397 = vld [vmem:[%s5395 + $0x8] sm:$0xff]
        %v5398 = vld [vmem:[%s5395 + $0x10] sm:$0xff]
        %v5399 = vld [vmem:[%s5395 + $0x18] sm:$0xff]
        %v5400 = vld [vmem:[%s5395 + $0x20] sm:$0xff]
        %v5401 = vld [vmem:[%s5395 + $0x28] sm:$0xff]
        %v5402 = vld [vmem:[%s5395 + $0x30] sm:$0xff]
        %v5403 = vld [vmem:[%s5395 + $0x38] sm:$0xff]
        %v5404 = vld [vmem:[%s5395 + $0x40] sm:$0xff]
        %v5405 = vld [vmem:[%s5395 + $0x48] sm:$0xff]
        %v5406 = vld [vmem:[%s5395 + $0x50] sm:$0xff]
        %v5407 = vld [vmem:[%s5395 + $0x58] sm:$0xff]
        %v5408 = vld [vmem:[%s5395 + $0x60] sm:$0xff]
        %v5409 = vld [vmem:[%s5395 + $0x68] sm:$0xff]
        %v5410 = vld [vmem:[%s5395 + $0x70] sm:$0xff]
        %v5411 = vld [vmem:[%s5395 + $0x78] sm:$0xff]
        %v5415 = vrot.slane %v5394, 4
        %v5416 = vrot.slane %v5376, 4
        %v5417 = vsel %vm473, %v5415, %v5416
        %v5418 = vrot.slane %v5377, 4
        %v5419 = vsel %vm473, %v5416, %v5418
        %v5438 = vunpack.c.l.b16 %v5396
        %v5439 = vunpack.c.h.b16 %v5396
        %v5440 = vunpack.c.l.b16 %v5397
        %v5441 = vunpack.c.h.b16 %v5397
        %v5442 = vunpack.c.l.b16 %v5398
        %v5443 = vunpack.c.h.b16 %v5398
        %v5444 = vunpack.c.l.b16 %v5399
        %v5445 = vunpack.c.h.b16 %v5399
        %v5446 = vunpack.c.l.b16 %v5400
        %v5447 = vunpack.c.h.b16 %v5400
        %v5448 = vunpack.c.l.b16 %v5401
        %v5449 = vunpack.c.h.b16 %v5401
        %v5450 = vunpack.c.l.b16 %v5402
        %v5451 = vunpack.c.h.b16 %v5402
        %v5452 = vunpack.c.l.b16 %v5403
        %v5453 = vunpack.c.h.b16 %v5403
        %v5454 = vunpack.c.l.b16 %v5404
        %v5455 = vunpack.c.h.b16 %v5404
        %v5456 = vunpack.c.l.b16 %v5405
        %v5457 = vunpack.c.h.b16 %v5405
        %v5458 = vunpack.c.l.b16 %v5406
        %v5459 = vunpack.c.h.b16 %v5406
        %v5460 = vunpack.c.l.b16 %v5407
        %v5461 = vunpack.c.h.b16 %v5407
        %v5462 = vunpack.c.l.b16 %v5408
        %v5463 = vunpack.c.h.b16 %v5408
        %v5464 = vunpack.c.l.b16 %v5409
        %v5465 = vunpack.c.h.b16 %v5409
        %v5466 = vunpack.c.l.b16 %v5410
        %v5467 = vunpack.c.h.b16 %v5410
        %v5468 = vunpack.c.l.b16 %v5411
        %v5469 = vunpack.c.h.b16 %v5411
        %v5470 = vpack.c.b16 %v5440, %v5438
        %v5471 = vpack.c.b16 %v5441, %v5439
        %v5472 = vpack.c.b16 %v5444, %v5442
        %v5473 = vpack.c.b16 %v5445, %v5443
        %v5474 = vpack.c.b16 %v5448, %v5446
        %v5475 = vpack.c.b16 %v5449, %v5447
        %v5476 = vpack.c.b16 %v5452, %v5450
        %v5477 = vpack.c.b16 %v5453, %v5451
        %v5478 = vpack.c.b16 %v5456, %v5454
        %v5479 = vpack.c.b16 %v5457, %v5455
        %v5480 = vpack.c.b16 %v5460, %v5458
        %v5481 = vpack.c.b16 %v5461, %v5459
        %v5482 = vpack.c.b16 %v5464, %v5462
        %v5483 = vpack.c.b16 %v5465, %v5463
        %v5484 = vpack.c.b16 %v5468, %v5466
        %v5485 = vpack.c.b16 %v5469, %v5467
        %5502 = vmatprep.subr.bf16.mxu0 %v5471
        %5503 = vmatpush1.bf16.msra.mxu0 %v5470
        %5504 = vmatprep.subr.bf16.mxu0 %v5473
        %5505 = vmatpush1.bf16.msra.mxu0 %v5472
        %5506 = vmatprep.subr.bf16.mxu0 %v5475
        %5507 = vmatpush1.bf16.msra.mxu0 %v5474
        %5508 = vmatprep.subr.bf16.mxu0 %v5477
        %5509 = vmatpush1.bf16.msra.mxu0 %v5476
        %5510 = vmatprep.subr.bf16.mxu0 %v5479
        %5511 = vmatpush1.bf16.msra.mxu0 %v5478
        %5512 = vmatprep.subr.bf16.mxu0 %v5481
        %5513 = vmatpush1.bf16.msra.mxu0 %v5480
        %5514 = vmatprep.subr.bf16.mxu0 %v5483
        %5515 = vmatpush1.bf16.msra.mxu0 %v5482
        %5516 = vmatprep.subr.bf16.mxu0 %v5485
        %5517 = vmatpush1.bf16.msra.mxu0 %v5484
        %5518 = vmatprep.subr.bf16.mxu0 0
        %5519 = vmatpush1.bf16.msra.mxu0 0
        %5520 = vmatprep.subr.bf16.mxu0 0
        %5521 = vmatpush1.bf16.msra.mxu0 0
        %5522 = vmatprep.subr.bf16.mxu0 0
        %5523 = vmatpush1.bf16.msra.mxu0 0
        %5524 = vmatprep.subr.bf16.mxu0 0
        %5525 = vmatpush1.bf16.msra.mxu0 0
        %5526 = vmatprep.subr.bf16.mxu0 0
        %5527 = vmatpush1.bf16.msra.mxu0 0
        %5528 = vmatprep.subr.bf16.mxu0 0
        %5529 = vmatpush1.bf16.msra.mxu0 0
        %5530 = vmatprep.subr.bf16.mxu0 0
        %5531 = vmatpush1.bf16.msra.mxu0 0
        %5532 = vmatprep.subr.bf16.mxu0 0
        %5533 = vmatpush1.bf16.msra.mxu0 0
        %5534 = vmatprep.mubr.bf16.mxu0 0
        %5535 = vmatmul.mubr.bf16.gmra.mrb[0].mxu0 %v5417
        %v5536 = vpop.f32.mrb[0].mxu0
        %v5537 = vadd.f32 0.0, %v5536
        %v5538 = vpop.f32.mrb[0].mxu0
        %v5539 = vadd.f32 0.0, %v5538
        %v5540 = vpop.f32.mrb[0].mxu0
        %v5541 = vadd.f32 0.0, %v5540
        %v5542 = vpop.f32.mrb[0].mxu0
        %v5543 = vadd.f32 0.0, %v5542
        %5544 = vmatprep.mubr.bf16.mxu0 0
        %5545 = vmatmul.mubr.bf16.gmra.mrb[0].mxu0 %v5419
        %v5546 = vpop.f32.mrb[0].mxu0
        %v5547 = vadd.f32 0.0, %v5546
        %v5548 = vpop.f32.mrb[0].mxu0
        %v5549 = vadd.f32 0.0, %v5548
        %v5550 = vpop.f32.mrb[0].mxu0
        %v5551 = vadd.f32 0.0, %v5550
        %v5552 = vpop.f32.mrb[0].mxu0
        %v5553 = vadd.f32 0.0, %v5552
        %5554 = vdwg.mxu0
        %v5556 = vshrl.u32 %v5375, 16
        %v5558 = vrot.slane %v5556, 3
        %v5559 = vshll.u32 %v5375, 16
        %v5561 = vrot.slane %v5559, 4
        %v5562 = vor.u32 %v5558, %v5561
        %v5564 = vshrl.u32 %v5376, 16
        %v5566 = vrot.slane %v5564, 3
        %v5567 = vshll.u32 %v5376, 16
        %v5569 = vrot.slane %v5567, 4
        %v5570 = vor.u32 %v5566, %v5569
        %v5571 = vsel %vm452, %v5562, %v5570
        %v5573 = vshrl.u32 %v5377, 16
        %v5575 = vrot.slane %v5573, 3
        %v5576 = vshll.u32 %v5377, 16
        %v5578 = vrot.slane %v5576, 4
        %v5579 = vor.u32 %v5575, %v5578
        %v5580 = vsel %vm452, %v5570, %v5579
        %v5599 = vunpack.c.l.b16 %v5378
        %v5600 = vunpack.c.h.b16 %v5378
        %v5601 = vunpack.c.l.b16 %v5379
        %v5602 = vunpack.c.h.b16 %v5379
        %v5603 = vunpack.c.l.b16 %v5380
        %v5604 = vunpack.c.h.b16 %v5380
        %v5605 = vunpack.c.l.b16 %v5381
        %v5606 = vunpack.c.h.b16 %v5381
        %v5607 = vunpack.c.l.b16 %v5382
        %v5608 = vunpack.c.h.b16 %v5382
        %v5609 = vunpack.c.l.b16 %v5383
        %v5610 = vunpack.c.h.b16 %v5383
        %v5611 = vunpack.c.l.b16 %v5384
        %v5612 = vunpack.c.h.b16 %v5384
        %v5613 = vunpack.c.l.b16 %v5385
        %v5614 = vunpack.c.h.b16 %v5385
        %v5615 = vunpack.c.l.b16 %v5386
        %v5616 = vunpack.c.h.b16 %v5386
        %v5617 = vunpack.c.l.b16 %v5387
        %v5618 = vunpack.c.h.b16 %v5387
        %v5619 = vunpack.c.l.b16 %v5388
        %v5620 = vunpack.c.h.b16 %v5388
        %v5621 = vunpack.c.l.b16 %v5389
        %v5622 = vunpack.c.h.b16 %v5389
        %v5623 = vunpack.c.l.b16 %v5390
        %v5624 = vunpack.c.h.b16 %v5390
        %v5625 = vunpack.c.l.b16 %v5391
        %v5626 = vunpack.c.h.b16 %v5391
        %v5627 = vunpack.c.l.b16 %v5392
        %v5628 = vunpack.c.h.b16 %v5392
        %v5629 = vunpack.c.l.b16 %v5393
        %v5630 = vunpack.c.h.b16 %v5393
        %v5631 = vpack.c.b16 %v5601, %v5599
        %v5632 = vpack.c.b16 %v5602, %v5600
        %v5633 = vpack.c.b16 %v5605, %v5603
        %v5634 = vpack.c.b16 %v5606, %v5604
        %v5635 = vpack.c.b16 %v5609, %v5607
        %v5636 = vpack.c.b16 %v5610, %v5608
        %v5637 = vpack.c.b16 %v5613, %v5611
        %v5638 = vpack.c.b16 %v5614, %v5612
        %v5639 = vpack.c.b16 %v5617, %v5615
        %v5640 = vpack.c.b16 %v5618, %v5616
        %v5641 = vpack.c.b16 %v5621, %v5619
        %v5642 = vpack.c.b16 %v5622, %v5620
        %v5643 = vpack.c.b16 %v5625, %v5623
        %v5644 = vpack.c.b16 %v5626, %v5624
        %v5645 = vpack.c.b16 %v5629, %v5627
        %v5646 = vpack.c.b16 %v5630, %v5628
        %5663 = vmatprep.subr.bf16.mxu0 %v5632
        %5664 = vmatpush1.bf16.msra.mxu0 %v5631
        %5665 = vmatprep.subr.bf16.mxu0 %v5634
        %5666 = vmatpush1.bf16.msra.mxu0 %v5633
        %5667 = vmatprep.subr.bf16.mxu0 %v5636
        %5668 = vmatpush1.bf16.msra.mxu0 %v5635
        %5669 = vmatprep.subr.bf16.mxu0 %v5638
        %5670 = vmatpush1.bf16.msra.mxu0 %v5637
        %5671 = vmatprep.subr.bf16.mxu0 %v5640
        %5672 = vmatpush1.bf16.msra.mxu0 %v5639
        %5673 = vmatprep.subr.bf16.mxu0 %v5642
        %5674 = vmatpush1.bf16.msra.mxu0 %v5641
        %5675 = vmatprep.subr.bf16.mxu0 %v5644
        %5676 = vmatpush1.bf16.msra.mxu0 %v5643
        %5677 = vmatprep.subr.bf16.mxu0 %v5646
        %5678 = vmatpush1.bf16.msra.mxu0 %v5645
        %5679 = vmatprep.subr.bf16.mxu0 0
        %5680 = vmatpush1.bf16.msra.mxu0 0
        %5681 = vmatprep.subr.bf16.mxu0 0
        %5682 = vmatpush1.bf16.msra.mxu0 0
        %5683 = vmatprep.subr.bf16.mxu0 0
        %5684 = vmatpush1.bf16.msra.mxu0 0
        %5685 = vmatprep.subr.bf16.mxu0 0
        %5686 = vmatpush1.bf16.msra.mxu0 0
        %5687 = vmatprep.subr.bf16.mxu0 0
        %5688 = vmatpush1.bf16.msra.mxu0 0
        %5689 = vmatprep.subr.bf16.mxu0 0
        %5690 = vmatpush1.bf16.msra.mxu0 0
        %5691 = vmatprep.subr.bf16.mxu0 0
        %5692 = vmatpush1.bf16.msra.mxu0 0
        %5693 = vmatprep.subr.bf16.mxu0 0
        %5694 = vmatpush1.bf16.msra.mxu0 0
        %5695 = vmatprep.mubr.bf16.mxu0 0
        %5696 = vmatmul.mubr.bf16.gmra.mrb[0].mxu0 %v5571
        %v5697 = vpop.f32.mrb[0].mxu0
        %v5698 = vadd.f32 %v5537, %v5697
        %v5699 = vpop.f32.mrb[0].mxu0
        %v5700 = vadd.f32 %v5539, %v5699
        %v5701 = vpop.f32.mrb[0].mxu0
        %v5702 = vadd.f32 %v5541, %v5701
        %v5703 = vpop.f32.mrb[0].mxu0
        %v5704 = vadd.f32 %v5543, %v5703
        %5705 = vmatprep.mubr.bf16.mxu0 0
        %5706 = vmatmul.mubr.bf16.gmra.mrb[0].mxu0 %v5580
        %v5707 = vpop.f32.mrb[0].mxu0
        %v5708 = vadd.f32 %v5547, %v5707
        %v5709 = vpop.f32.mrb[0].mxu0
        %v5710 = vadd.f32 %v5549, %v5709
        %v5711 = vpop.f32.mrb[0].mxu0
        %v5712 = vadd.f32 %v5551, %v5711
        %v5713 = vpop.f32.mrb[0].mxu0
        %v5714 = vadd.f32 %v5553, %v5713
        %5715 = vdwg.mxu0
        %v5716 = vld [vmem:[#allocation4 + $0x10] sm:$0x1f]
        %s5717 = scalar_lea.vmem [#allocation8], 256
        %v5718 = vld [vmem:[%s5717] sm:$0xff]
        %v5719 = vld [vmem:[%s5717 + $0x8] sm:$0xff]
        %v5720 = vld [vmem:[%s5717 + $0x10] sm:$0xff]
        %v5721 = vld [vmem:[%s5717 + $0x18] sm:$0xff]
        %v5722 = vld [vmem:[%s5717 + $0x20] sm:$0xff]
        %v5723 = vld [vmem:[%s5717 + $0x28] sm:$0xff]
        %v5724 = vld [vmem:[%s5717 + $0x30] sm:$0xff]
        %v5725 = vld [vmem:[%s5717 + $0x38] sm:$0xff]
        %v5726 = vld [vmem:[%s5717 + $0x40] sm:$0xff]
        %v5727 = vld [vmem:[%s5717 + $0x48] sm:$0xff]
        %v5728 = vld [vmem:[%s5717 + $0x50] sm:$0xff]
        %v5729 = vld [vmem:[%s5717 + $0x58] sm:$0xff]
        %v5730 = vld [vmem:[%s5717 + $0x60] sm:$0xff]
        %v5731 = vld [vmem:[%s5717 + $0x68] sm:$0xff]
        %v5732 = vld [vmem:[%s5717 + $0x70] sm:$0xff]
        %v5733 = vld [vmem:[%s5717 + $0x78] sm:$0xff]
        %v5735 = vshrl.u32 %v5394, 16
        %v5737 = vrot.slane %v5735, 4
        %v5738 = vshll.u32 %v5394, 16
        %v5740 = vrot.slane %v5738, 5
        %v5741 = vor.u32 %v5737, %v5740
        %v5742 = vrot.slane %v5564, 4
        %v5743 = vrot.slane %v5567, 5
        %v5744 = vor.u32 %v5742, %v5743
        %v5745 = vsel %vm929, %v5741, %v5744
        %v5747 = vshrl.u32 %v5716, 16
        %v5749 = vrot.slane %v5747, 4
        %v5750 = vshll.u32 %v5716, 16
        %v5752 = vrot.slane %v5750, 5
        %v5753 = vor.u32 %v5749, %v5752
        %v5754 = vsel %vm929, %v5744, %v5753
        %v5773 = vunpack.c.l.b16 %v5718
        %v5774 = vunpack.c.h.b16 %v5718
        %v5775 = vunpack.c.l.b16 %v5719
        %v5776 = vunpack.c.h.b16 %v5719
        %v5777 = vunpack.c.l.b16 %v5720
        %v5778 = vunpack.c.h.b16 %v5720
        %v5779 = vunpack.c.l.b16 %v5721
        %v5780 = vunpack.c.h.b16 %v5721
        %v5781 = vunpack.c.l.b16 %v5722
        %v5782 = vunpack.c.h.b16 %v5722
        %v5783 = vunpack.c.l.b16 %v5723
        %v5784 = vunpack.c.h.b16 %v5723
        %v5785 = vunpack.c.l.b16 %v5724
        %v5786 = vunpack.c.h.b16 %v5724
        %v5787 = vunpack.c.l.b16 %v5725
        %v5788 = vunpack.c.h.b16 %v5725
        %v5789 = vunpack.c.l.b16 %v5726
        %v5790 = vunpack.c.h.b16 %v5726
        %v5791 = vunpack.c.l.b16 %v5727
        %v5792 = vunpack.c.h.b16 %v5727
        %v5793 = vunpack.c.l.b16 %v5728
        %v5794 = vunpack.c.h.b16 %v5728
        %v5795 = vunpack.c.l.b16 %v5729
        %v5796 = vunpack.c.h.b16 %v5729
        %v5797 = vunpack.c.l.b16 %v5730
        %v5798 = vunpack.c.h.b16 %v5730
        %v5799 = vunpack.c.l.b16 %v5731
        %v5800 = vunpack.c.h.b16 %v5731
        %v5801 = vunpack.c.l.b16 %v5732
        %v5802 = vunpack.c.h.b16 %v5732
        %v5803 = vunpack.c.l.b16 %v5733
        %v5804 = vunpack.c.h.b16 %v5733
        %v5805 = vpack.c.b16 %v5775, %v5773
        %v5806 = vpack.c.b16 %v5776, %v5774
        %v5807 = vpack.c.b16 %v5779, %v5777
        %v5808 = vpack.c.b16 %v5780, %v5778
        %v5809 = vpack.c.b16 %v5783, %v5781
        %v5810 = vpack.c.b16 %v5784, %v5782
        %v5811 = vpack.c.b16 %v5787, %v5785
        %v5812 = vpack.c.b16 %v5788, %v5786
        %v5813 = vpack.c.b16 %v5791, %v5789
        %v5814 = vpack.c.b16 %v5792, %v5790
        %v5815 = vpack.c.b16 %v5795, %v5793
        %v5816 = vpack.c.b16 %v5796, %v5794
        %v5817 = vpack.c.b16 %v5799, %v5797
        %v5818 = vpack.c.b16 %v5800, %v5798
        %v5819 = vpack.c.b16 %v5803, %v5801
        %v5820 = vpack.c.b16 %v5804, %v5802
        %5837 = vmatprep.subr.bf16.mxu0 %v5806
        %5838 = vmatpush1.bf16.msra.mxu0 %v5805
        %5839 = vmatprep.subr.bf16.mxu0 %v5808
        %5840 = vmatpush1.bf16.msra.mxu0 %v5807
        %5841 = vmatprep.subr.bf16.mxu0 %v5810
        %5842 = vmatpush1.bf16.msra.mxu0 %v5809
        %5843 = vmatprep.subr.bf16.mxu0 %v5812
        %5844 = vmatpush1.bf16.msra.mxu0 %v5811
        %5845 = vmatprep.subr.bf16.mxu0 %v5814
        %5846 = vmatpush1.bf16.msra.mxu0 %v5813
        %5847 = vmatprep.subr.bf16.mxu0 %v5816
        %5848 = vmatpush1.bf16.msra.mxu0 %v5815
        %5849 = vmatprep.subr.bf16.mxu0 %v5818
        %5850 = vmatpush1.bf16.msra.mxu0 %v5817
        %5851 = vmatprep.subr.bf16.mxu0 %v5820
        %5852 = vmatpush1.bf16.msra.mxu0 %v5819
        %5853 = vmatprep.subr.bf16.mxu0 0
        %5854 = vmatpush1.bf16.msra.mxu0 0
        %5855 = vmatprep.subr.bf16.mxu0 0
        %5856 = vmatpush1.bf16.msra.mxu0 0
        %5857 = vmatprep.subr.bf16.mxu0 0
        %5858 = vmatpush1.bf16.msra.mxu0 0
        %5859 = vmatprep.subr.bf16.mxu0 0
        %5860 = vmatpush1.bf16.msra.mxu0 0
        %5861 = vmatprep.subr.bf16.mxu0 0
        %5862 = vmatpush1.bf16.msra.mxu0 0
        %5863 = vmatprep.subr.bf16.mxu0 0
        %5864 = vmatpush1.bf16.msra.mxu0 0
        %5865 = vmatprep.subr.bf16.mxu0 0
        %5866 = vmatpush1.bf16.msra.mxu0 0
        %5867 = vmatprep.subr.bf16.mxu0 0
        %5868 = vmatpush1.bf16.msra.mxu0 0
        %5869 = vmatprep.mubr.bf16.mxu0 0
        %5870 = vmatmul.mubr.bf16.gmra.mrb[0].mxu0 %v5745
        %v5871 = vpop.f32.mrb[0].mxu0
        %v5872 = vadd.f32 0.0, %v5871
        %v5873 = vpop.f32.mrb[0].mxu0
        %v5874 = vadd.f32 0.0, %v5873
        %v5875 = vpop.f32.mrb[0].mxu0
        %v5876 = vadd.f32 0.0, %v5875
        %v5877 = vpop.f32.mrb[0].mxu0
        %v5878 = vadd.f32 0.0, %v5877
        %5879 = vmatprep.mubr.bf16.mxu0 0
        %5880 = vmatmul.mubr.bf16.gmra.mrb[0].mxu0 %v5754
        %v5881 = vpop.f32.mrb[0].mxu0
        %v5882 = vadd.f32 0.0, %v5881
        %v5883 = vpop.f32.mrb[0].mxu0
        %v5884 = vadd.f32 0.0, %v5883
        %v5885 = vpop.f32.mrb[0].mxu0
        %v5886 = vadd.f32 0.0, %v5885
        %v5887 = vpop.f32.mrb[0].mxu0
        %v5888 = vadd.f32 0.0, %v5887
        %5889 = vdwg.mxu0
        %v5890 = vadd.f32 %v5698, %v5872
        %v5891 = vadd.f32 %v5700, %v5874
        %v5892 = vadd.f32 %v5702, %v5876
        %v5893 = vadd.f32 %v5704, %v5878
        %v5894 = vadd.f32 %v5708, %v5882
        %v5895 = vadd.f32 %v5710, %v5884
        %v5896 = vadd.f32 %v5712, %v5886
        %v5897 = vadd.f32 %v5714, %v5888
        %v5898 = vrot.slane %v5890, 4
        %v5899 = vadd.f32 %v5890, %v5898
        %v5900 = vrot.slane %v5899, 2
        %v5901 = vadd.f32 %v5899, %v5900
        %v5902 = vrot.slane %v5901, 1
        %v5903 = vadd.f32 %v5901, %v5902
        %v5904 = vrot.slane %v5891, 4
        %v5905 = vadd.f32 %v5891, %v5904
        %v5906 = vrot.slane %v5905, 2
        %v5907 = vadd.f32 %v5905, %v5906
        %v5908 = vrot.slane %v5907, 1
        %v5909 = vadd.f32 %v5907, %v5908
        %v5910 = vrot.slane %v5892, 4
        %v5911 = vadd.f32 %v5892, %v5910
        %v5912 = vrot.slane %v5911, 2
        %v5913 = vadd.f32 %v5911, %v5912
        %v5914 = vrot.slane %v5913, 1
        %v5915 = vadd.f32 %v5913, %v5914
        %v5916 = vrot.slane %v5893, 4
        %v5917 = vadd.f32 %v5893, %v5916
        %v5918 = vrot.slane %v5917, 2
        %v5919 = vadd.f32 %v5917, %v5918
        %v5920 = vrot.slane %v5919, 1
        %v5921 = vadd.f32 %v5919, %v5920
        %v5922 = vrot.slane %v5894, 4
        %v5923 = vadd.f32 %v5894, %v5922
        %v5924 = vrot.slane %v5923, 2
        %v5925 = vadd.f32 %v5923, %v5924
        %v5926 = vrot.slane %v5925, 1
        %v5927 = vadd.f32 %v5925, %v5926
        %v5928 = vrot.slane %v5895, 4
        %v5929 = vadd.f32 %v5895, %v5928
        %v5930 = vrot.slane %v5929, 2
        %v5931 = vadd.f32 %v5929, %v5930
        %v5932 = vrot.slane %v5931, 1
        %v5933 = vadd.f32 %v5931, %v5932
        %v5934 = vrot.slane %v5896, 4
        %v5935 = vadd.f32 %v5896, %v5934
        %v5936 = vrot.slane %v5935, 2
        %v5937 = vadd.f32 %v5935, %v5936
        %v5938 = vrot.slane %v5937, 1
        %v5939 = vadd.f32 %v5937, %v5938
        %v5940 = vrot.slane %v5897, 4
        %v5941 = vadd.f32 %v5897, %v5940
        %v5942 = vrot.slane %v5941, 2
        %v5943 = vadd.f32 %v5941, %v5942
        %v5944 = vrot.slane %v5943, 1
        %v5945 = vadd.f32 %v5943, %v5944
        %v5946 = vmul.f32 %v5903, 0.125
        %v5947 = vmul.f32 %v5909, 0.125
        %v5948 = vmul.f32 %v5915, 0.125
        %v5949 = vmul.f32 %v5921, 0.125
        %v5950 = vmul.f32 %v5927, 0.125
        %v5951 = vmul.f32 %v5933, 0.125
        %v5952 = vmul.f32 %v5939, 0.125
        %v5953 = vmul.f32 %v5945, 0.125
        %v5954 = vld [vmem:[%s8] sm:$0x3]
        %v5956 = vlaneseq
        %v5957 = vshrl.u32 %v5956, 7
        %v5958 = vsub.s32 0, %v5957
        %v5959 = vrot.slane %v5954, %v5958
        %v5960 = vlaneseq
        %v5961 = vshrl.u32 %v5960, 7
        %v5962 = vsub.s32 1, %v5961
        %v5963 = vrot.slane %v5954, %v5962
        %v5966 = vadd.f32 %v5946, %v5959
        %v5967 = vadd.f32 %v5947, %v5963
        %v5968 = vadd.f32 %v5948, %v5959
        %v5969 = vadd.f32 %v5949, %v5963
        %v5970 = vadd.f32 %v5950, %v5959
        %v5971 = vadd.f32 %v5951, %v5963
        %v5972 = vadd.f32 %v5952, %v5959
        %v5973 = vadd.f32 %v5953, %v5963
        %v5974 = vmax.f32 %v5966, 0.0
        %v5975 = vmax.f32 %v5967, 0.0
        %v5976 = vmax.f32 %v5968, 0.0
        %v5977 = vmax.f32 %v5969, 0.0
        %v5978 = vmax.f32 %v5970, 0.0
        %v5979 = vmax.f32 %v5971, 0.0
        %v5980 = vmax.f32 %v5972, 0.0
        %v5981 = vmax.f32 %v5973, 0.0
        %v5982 = vpack.c.bf16 %v5974, %v5974
        %v5983 = vpack.c.bf16 %v5975, %v5975
        %v5984 = vld [vmem:[#allocation10] sm:$0xf]
        %v5985 = vld [vmem:[#allocation10 + $0x4] sm:$0xf]
        %v5986 = vld [vmem:[#allocation10 + $0x8] sm:$0xf]
        %v5987 = vld [vmem:[#allocation10 + $0xc] sm:$0xf]
        %v5988 = vld [vmem:[#allocation10 + $0x10] sm:$0xf]
        %v5989 = vld [vmem:[#allocation10 + $0x14] sm:$0xf]
        %v5990 = vld [vmem:[#allocation10 + $0x18] sm:$0xf]
        %v5991 = vld [vmem:[#allocation10 + $0x1c] sm:$0xf]
        %v5992 = vld [vmem:[#allocation10 + $0x20] sm:$0xf]
        %v5993 = vld [vmem:[#allocation10 + $0x24] sm:$0xf]
        %v5994 = vld [vmem:[#allocation10 + $0x28] sm:$0xf]
        %v5995 = vld [vmem:[#allocation10 + $0x2c] sm:$0xf]
        %v5996 = vld [vmem:[#allocation10 + $0x30] sm:$0xf]
        %v5997 = vld [vmem:[#allocation10 + $0x34] sm:$0xf]
        %v5998 = vld [vmem:[#allocation10 + $0x38] sm:$0xf]
        %v5999 = vld [vmem:[#allocation10 + $0x3c] sm:$0xf]
        %v6000 = vld [vmem:[#allocation10 + $0x40] sm:$0xf]
        %v6001 = vld [vmem:[#allocation10 + $0x44] sm:$0xf]
        %v6002 = vld [vmem:[#allocation10 + $0x48] sm:$0xf]
        %v6003 = vld [vmem:[#allocation10 + $0x4c] sm:$0xf]
        %v6004 = vld [vmem:[#allocation10 + $0x50] sm:$0xf]
        %v6005 = vld [vmem:[#allocation10 + $0x54] sm:$0xf]
        %v6006 = vld [vmem:[#allocation10 + $0x58] sm:$0xf]
        %v6007 = vld [vmem:[#allocation10 + $0x5c] sm:$0xf]
        %v6008 = vld [vmem:[#allocation10 + $0x60] sm:$0xf]
        %v6009 = vld [vmem:[#allocation10 + $0x64] sm:$0xf]
        %v6010 = vld [vmem:[#allocation10 + $0x68] sm:$0xf]
        %v6011 = vld [vmem:[#allocation10 + $0x6c] sm:$0xf]
        %v6012 = vld [vmem:[#allocation10 + $0x70] sm:$0xf]
        %v6013 = vld [vmem:[#allocation10 + $0x74] sm:$0xf]
        %v6014 = vld [vmem:[#allocation10 + $0x78] sm:$0xf]
        %v6015 = vld [vmem:[#allocation10 + $0x7c] sm:$0xf]
        %v6016 = vpack.c.bf16 %v5976, %v5976
        %v6017 = vpack.c.bf16 %v5977, %v5977
        %s6018 = scalar_lea.vmem [#allocation10], 128
        %v6019 = vld [vmem:[%s6018] sm:$0xf]
        %v6020 = vld [vmem:[%s6018 + $0x4] sm:$0xf]
        %v6021 = vld [vmem:[%s6018 + $0x8] sm:$0xf]
        %v6022 = vld [vmem:[%s6018 + $0xc] sm:$0xf]
        %v6023 = vld [vmem:[%s6018 + $0x10] sm:$0xf]
        %v6024 = vld [vmem:[%s6018 + $0x14] sm:$0xf]
        %v6025 = vld [vmem:[%s6018 + $0x18] sm:$0xf]
        %v6026 = vld [vmem:[%s6018 + $0x1c] sm:$0xf]
        %v6027 = vld [vmem:[%s6018 + $0x20] sm:$0xf]
        %v6028 = vld [vmem:[%s6018 + $0x24] sm:$0xf]
        %v6029 = vld [vmem:[%s6018 + $0x28] sm:$0xf]
        %v6030 = vld [vmem:[%s6018 + $0x2c] sm:$0xf]
        %v6031 = vld [vmem:[%s6018 + $0x30] sm:$0xf]
        %v6032 = vld [vmem:[%s6018 + $0x34] sm:$0xf]
        %v6033 = vld [vmem:[%s6018 + $0x38] sm:$0xf]
        %v6034 = vld [vmem:[%s6018 + $0x3c] sm:$0xf]
        %v6035 = vld [vmem:[%s6018 + $0x40] sm:$0xf]
        %v6036 = vld [vmem:[%s6018 + $0x44] sm:$0xf]
        %v6037 = vld [vmem:[%s6018 + $0x48] sm:$0xf]
        %v6038 = vld [vmem:[%s6018 + $0x4c] sm:$0xf]
        %v6039 = vld [vmem:[%s6018 + $0x50] sm:$0xf]
        %v6040 = vld [vmem:[%s6018 + $0x54] sm:$0xf]
        %v6041 = vld [vmem:[%s6018 + $0x58] sm:$0xf]
        %v6042 = vld [vmem:[%s6018 + $0x5c] sm:$0xf]
        %v6043 = vld [vmem:[%s6018 + $0x60] sm:$0xf]
        %v6044 = vld [vmem:[%s6018 + $0x64] sm:$0xf]
        %v6045 = vld [vmem:[%s6018 + $0x68] sm:$0xf]
        %v6046 = vld [vmem:[%s6018 + $0x6c] sm:$0xf]
        %v6047 = vld [vmem:[%s6018 + $0x70] sm:$0xf]
        %v6048 = vld [vmem:[%s6018 + $0x74] sm:$0xf]
        %v6049 = vld [vmem:[%s6018 + $0x78] sm:$0xf]
        %v6050 = vld [vmem:[%s6018 + $0x7c] sm:$0xf]
        %v6083 = vunpack.c.l.b16 %v6019
        %v6084 = vunpack.c.l.b16 %v6020
        %v6085 = vunpack.c.l.b16 %v6021
        %v6086 = vunpack.c.l.b16 %v6022
        %v6087 = vunpack.c.l.b16 %v6023
        %v6088 = vunpack.c.l.b16 %v6024
        %v6089 = vunpack.c.l.b16 %v6025
        %v6090 = vunpack.c.l.b16 %v6026
        %v6091 = vunpack.c.l.b16 %v6027
        %v6092 = vunpack.c.l.b16 %v6028
        %v6093 = vunpack.c.l.b16 %v6029
        %v6094 = vunpack.c.l.b16 %v6030
        %v6095 = vunpack.c.l.b16 %v6031
        %v6096 = vunpack.c.l.b16 %v6032
        %v6097 = vunpack.c.l.b16 %v6033
        %v6098 = vunpack.c.l.b16 %v6034
        %v6099 = vunpack.c.l.b16 %v6035
        %v6100 = vunpack.c.l.b16 %v6036
        %v6101 = vunpack.c.l.b16 %v6037
        %v6102 = vunpack.c.l.b16 %v6038
        %v6103 = vunpack.c.l.b16 %v6039
        %v6104 = vunpack.c.l.b16 %v6040
        %v6105 = vunpack.c.l.b16 %v6041
        %v6106 = vunpack.c.l.b16 %v6042
        %v6107 = vunpack.c.l.b16 %v6043
        %v6108 = vunpack.c.l.b16 %v6044
        %v6109 = vunpack.c.l.b16 %v6045
        %v6110 = vunpack.c.l.b16 %v6046
        %v6111 = vunpack.c.l.b16 %v6047
        %v6112 = vunpack.c.l.b16 %v6048
        %v6113 = vunpack.c.l.b16 %v6049
        %v6114 = vunpack.c.l.b16 %v6050
        %v6115 = vpack.c.b16 %v6084, %v6083
        %v6116 = vpack.c.b16 %v6086, %v6085
        %v6117 = vpack.c.b16 %v6088, %v6087
        %v6118 = vpack.c.b16 %v6090, %v6089
        %v6119 = vpack.c.b16 %v6092, %v6091
        %v6120 = vpack.c.b16 %v6094, %v6093
        %v6121 = vpack.c.b16 %v6096, %v6095
        %v6122 = vpack.c.b16 %v6098, %v6097
        %v6123 = vpack.c.b16 %v6100, %v6099
        %v6124 = vpack.c.b16 %v6102, %v6101
        %v6125 = vpack.c.b16 %v6104, %v6103
        %v6126 = vpack.c.b16 %v6106, %v6105
        %v6127 = vpack.c.b16 %v6108, %v6107
        %v6128 = vpack.c.b16 %v6110, %v6109
        %v6129 = vpack.c.b16 %v6112, %v6111
        %v6130 = vpack.c.b16 %v6114, %v6113
        %6147 = vmatprep.subr.bf16.mxu0 0
        %6148 = vmatpush1.bf16.msra.mxu0 %v6115
        %6149 = vmatprep.subr.bf16.mxu0 0
        %6150 = vmatpush1.bf16.msra.mxu0 %v6116
        %6151 = vmatprep.subr.bf16.mxu0 0
        %6152 = vmatpush1.bf16.msra.mxu0 %v6117
        %6153 = vmatprep.subr.bf16.mxu0 0
        %6154 = vmatpush1.bf16.msra.mxu0 %v6118
        %6155 = vmatprep.subr.bf16.mxu0 0
        %6156 = vmatpush1.bf16.msra.mxu0 %v6119
        %6157 = vmatprep.subr.bf16.mxu0 0
        %6158 = vmatpush1.bf16.msra.mxu0 %v6120
        %6159 = vmatprep.subr.bf16.mxu0 0
        %6160 = vmatpush1.bf16.msra.mxu0 %v6121
        %6161 = vmatprep.subr.bf16.mxu0 0
        %6162 = vmatpush1.bf16.msra.mxu0 %v6122
        %6163 = vmatprep.subr.bf16.mxu0 0
        %6164 = vmatpush1.bf16.msra.mxu0 %v6123
        %6165 = vmatprep.subr.bf16.mxu0 0
        %6166 = vmatpush1.bf16.msra.mxu0 %v6124
        %6167 = vmatprep.subr.bf16.mxu0 0
        %6168 = vmatpush1.bf16.msra.mxu0 %v6125
        %6169 = vmatprep.subr.bf16.mxu0 0
        %6170 = vmatpush1.bf16.msra.mxu0 %v6126
        %6171 = vmatprep.subr.bf16.mxu0 0
        %6172 = vmatpush1.bf16.msra.mxu0 %v6127
        %6173 = vmatprep.subr.bf16.mxu0 0
        %6174 = vmatpush1.bf16.msra.mxu0 %v6128
        %6175 = vmatprep.subr.bf16.mxu0 0
        %6176 = vmatpush1.bf16.msra.mxu0 %v6129
        %6177 = vmatprep.subr.bf16.mxu0 0
        %6178 = vmatpush1.bf16.msra.mxu0 %v6130
        %6179 = vmatprep.mubr.bf16.mxu0 %v6017
        %6180 = vmatmul.mubr.bf16.gmra.mrb[0].mxu0 %v6016
        %v6181 = vpop.f32.mrb[0].mxu0
        %v6182 = vadd.f32 0.0, %v6181
        %v6183 = vpop.f32.mrb[0].mxu0
        %v6184 = vpop.f32.mrb[0].mxu0
        %v6185 = vpop.f32.mrb[0].mxu0
        %6186 = vdwg.mxu0
        %v6219 = vunpack.c.l.b16 %v5984
        %v6220 = vunpack.c.l.b16 %v5985
        %v6221 = vunpack.c.l.b16 %v5986
        %v6222 = vunpack.c.l.b16 %v5987
        %v6223 = vunpack.c.l.b16 %v5988
        %v6224 = vunpack.c.l.b16 %v5989
        %v6225 = vunpack.c.l.b16 %v5990
        %v6226 = vunpack.c.l.b16 %v5991
        %v6227 = vunpack.c.l.b16 %v5992
        %v6228 = vunpack.c.l.b16 %v5993
        %v6229 = vunpack.c.l.b16 %v5994
        %v6230 = vunpack.c.l.b16 %v5995
        %v6231 = vunpack.c.l.b16 %v5996
        %v6232 = vunpack.c.l.b16 %v5997
        %v6233 = vunpack.c.l.b16 %v5998
        %v6234 = vunpack.c.l.b16 %v5999
        %v6235 = vunpack.c.l.b16 %v6000
        %v6236 = vunpack.c.l.b16 %v6001
        %v6237 = vunpack.c.l.b16 %v6002
        %v6238 = vunpack.c.l.b16 %v6003
        %v6239 = vunpack.c.l.b16 %v6004
        %v6240 = vunpack.c.l.b16 %v6005
        %v6241 = vunpack.c.l.b16 %v6006
        %v6242 = vunpack.c.l.b16 %v6007
        %v6243 = vunpack.c.l.b16 %v6008
        %v6244 = vunpack.c.l.b16 %v6009
        %v6245 = vunpack.c.l.b16 %v6010
        %v6246 = vunpack.c.l.b16 %v6011
        %v6247 = vunpack.c.l.b16 %v6012
        %v6248 = vunpack.c.l.b16 %v6013
        %v6249 = vunpack.c.l.b16 %v6014
        %v6250 = vunpack.c.l.b16 %v6015
        %v6251 = vpack.c.b16 %v6220, %v6219
        %v6252 = vpack.c.b16 %v6222, %v6221
        %v6253 = vpack.c.b16 %v6224, %v6223
        %v6254 = vpack.c.b16 %v6226, %v6225
        %v6255 = vpack.c.b16 %v6228, %v6227
        %v6256 = vpack.c.b16 %v6230, %v6229
        %v6257 = vpack.c.b16 %v6232, %v6231
        %v6258 = vpack.c.b16 %v6234, %v6233
        %v6259 = vpack.c.b16 %v6236, %v6235
        %v6260 = vpack.c.b16 %v6238, %v6237
        %v6261 = vpack.c.b16 %v6240, %v6239
        %v6262 = vpack.c.b16 %v6242, %v6241
        %v6263 = vpack.c.b16 %v6244, %v6243
        %v6264 = vpack.c.b16 %v6246, %v6245
        %v6265 = vpack.c.b16 %v6248, %v6247
        %v6266 = vpack.c.b16 %v6250, %v6249
        %6283 = vmatprep.subr.bf16.mxu0 0
        %6284 = vmatpush1.bf16.msra.mxu0 %v6251
        %6285 = vmatprep.subr.bf16.mxu0 0
        %6286 = vmatpush1.bf16.msra.mxu0 %v6252
        %6287 = vmatprep.subr.bf16.mxu0 0
        %6288 = vmatpush1.bf16.msra.mxu0 %v6253
        %6289 = vmatprep.subr.bf16.mxu0 0
        %6290 = vmatpush1.bf16.msra.mxu0 %v6254
        %6291 = vmatprep.subr.bf16.mxu0 0
        %6292 = vmatpush1.bf16.msra.mxu0 %v6255
        %6293 = vmatprep.subr.bf16.mxu0 0
        %6294 = vmatpush1.bf16.msra.mxu0 %v6256
        %6295 = vmatprep.subr.bf16.mxu0 0
        %6296 = vmatpush1.bf16.msra.mxu0 %v6257
        %6297 = vmatprep.subr.bf16.mxu0 0
        %6298 = vmatpush1.bf16.msra.mxu0 %v6258
        %6299 = vmatprep.subr.bf16.mxu0 0
        %6300 = vmatpush1.bf16.msra.mxu0 %v6259
        %6301 = vmatprep.subr.bf16.mxu0 0
        %6302 = vmatpush1.bf16.msra.mxu0 %v6260
        %6303 = vmatprep.subr.bf16.mxu0 0
        %6304 = vmatpush1.bf16.msra.mxu0 %v6261
        %6305 = vmatprep.subr.bf16.mxu0 0
        %6306 = vmatpush1.bf16.msra.mxu0 %v6262
        %6307 = vmatprep.subr.bf16.mxu0 0
        %6308 = vmatpush1.bf16.msra.mxu0 %v6263
        %6309 = vmatprep.subr.bf16.mxu0 0
        %6310 = vmatpush1.bf16.msra.mxu0 %v6264
        %6311 = vmatprep.subr.bf16.mxu0 0
        %6312 = vmatpush1.bf16.msra.mxu0 %v6265
        %6313 = vmatprep.subr.bf16.mxu0 0
        %6314 = vmatpush1.bf16.msra.mxu0 %v6266
        %6315 = vmatprep.mubr.bf16.mxu0 %v5983
        %6316 = vmatmul.mubr.bf16.gmra.mrb[0].mxu0 %v5982
        %v6317 = vpop.f32.mrb[0].mxu0
        %v6318 = vadd.f32 %v6182, %v6317
        %v6319 = vpop.f32.mrb[0].mxu0
        %v6320 = vpop.f32.mrb[0].mxu0
        %v6321 = vpop.f32.mrb[0].mxu0
        %6322 = vdwg.mxu0
        %v6323 = vpack.c.bf16 %v5978, %v5978
        %v6324 = vpack.c.bf16 %v5979, %v5979
        %s6325 = scalar_lea.vmem [#allocation10], 256
        %v6326 = vld [vmem:[%s6325] sm:$0xf]
        %v6327 = vld [vmem:[%s6325 + $0x4] sm:$0xf]
        %v6328 = vld [vmem:[%s6325 + $0x8] sm:$0xf]
        %v6329 = vld [vmem:[%s6325 + $0xc] sm:$0xf]
        %v6330 = vld [vmem:[%s6325 + $0x10] sm:$0xf]
        %v6331 = vld [vmem:[%s6325 + $0x14] sm:$0xf]
        %v6332 = vld [vmem:[%s6325 + $0x18] sm:$0xf]
        %v6333 = vld [vmem:[%s6325 + $0x1c] sm:$0xf]
        %v6334 = vld [vmem:[%s6325 + $0x20] sm:$0xf]
        %v6335 = vld [vmem:[%s6325 + $0x24] sm:$0xf]
        %v6336 = vld [vmem:[%s6325 + $0x28] sm:$0xf]
        %v6337 = vld [vmem:[%s6325 + $0x2c] sm:$0xf]
        %v6338 = vld [vmem:[%s6325 + $0x30] sm:$0xf]
        %v6339 = vld [vmem:[%s6325 + $0x34] sm:$0xf]
        %v6340 = vld [vmem:[%s6325 + $0x38] sm:$0xf]
        %v6341 = vld [vmem:[%s6325 + $0x3c] sm:$0xf]
        %v6342 = vld [vmem:[%s6325 + $0x40] sm:$0xf]
        %v6343 = vld [vmem:[%s6325 + $0x44] sm:$0xf]
        %v6344 = vld [vmem:[%s6325 + $0x48] sm:$0xf]
        %v6345 = vld [vmem:[%s6325 + $0x4c] sm:$0xf]
        %v6346 = vld [vmem:[%s6325 + $0x50] sm:$0xf]
        %v6347 = vld [vmem:[%s6325 + $0x54] sm:$0xf]
        %v6348 = vld [vmem:[%s6325 + $0x58] sm:$0xf]
        %v6349 = vld [vmem:[%s6325 + $0x5c] sm:$0xf]
        %v6350 = vld [vmem:[%s6325 + $0x60] sm:$0xf]
        %v6351 = vld [vmem:[%s6325 + $0x64] sm:$0xf]
        %v6352 = vld [vmem:[%s6325 + $0x68] sm:$0xf]
        %v6353 = vld [vmem:[%s6325 + $0x6c] sm:$0xf]
        %v6354 = vld [vmem:[%s6325 + $0x70] sm:$0xf]
        %v6355 = vld [vmem:[%s6325 + $0x74] sm:$0xf]
        %v6356 = vld [vmem:[%s6325 + $0x78] sm:$0xf]
        %v6357 = vld [vmem:[%s6325 + $0x7c] sm:$0xf]
        %v6390 = vunpack.c.l.b16 %v6326
        %v6391 = vunpack.c.l.b16 %v6327
        %v6392 = vunpack.c.l.b16 %v6328
        %v6393 = vunpack.c.l.b16 %v6329
        %v6394 = vunpack.c.l.b16 %v6330
        %v6395 = vunpack.c.l.b16 %v6331
        %v6396 = vunpack.c.l.b16 %v6332
        %v6397 = vunpack.c.l.b16 %v6333
        %v6398 = vunpack.c.l.b16 %v6334
        %v6399 = vunpack.c.l.b16 %v6335
        %v6400 = vunpack.c.l.b16 %v6336
        %v6401 = vunpack.c.l.b16 %v6337
        %v6402 = vunpack.c.l.b16 %v6338
        %v6403 = vunpack.c.l.b16 %v6339
        %v6404 = vunpack.c.l.b16 %v6340
        %v6405 = vunpack.c.l.b16 %v6341
        %v6406 = vunpack.c.l.b16 %v6342
        %v6407 = vunpack.c.l.b16 %v6343
        %v6408 = vunpack.c.l.b16 %v6344
        %v6409 = vunpack.c.l.b16 %v6345
        %v6410 = vunpack.c.l.b16 %v6346
        %v6411 = vunpack.c.l.b16 %v6347
        %v6412 = vunpack.c.l.b16 %v6348
        %v6413 = vunpack.c.l.b16 %v6349
        %v6414 = vunpack.c.l.b16 %v6350
        %v6415 = vunpack.c.l.b16 %v6351
        %v6416 = vunpack.c.l.b16 %v6352
        %v6417 = vunpack.c.l.b16 %v6353
        %v6418 = vunpack.c.l.b16 %v6354
        %v6419 = vunpack.c.l.b16 %v6355
        %v6420 = vunpack.c.l.b16 %v6356
        %v6421 = vunpack.c.l.b16 %v6357
        %v6422 = vpack.c.b16 %v6391, %v6390
        %v6423 = vpack.c.b16 %v6393, %v6392
        %v6424 = vpack.c.b16 %v6395, %v6394
        %v6425 = vpack.c.b16 %v6397, %v6396
        %v6426 = vpack.c.b16 %v6399, %v6398
        %v6427 = vpack.c.b16 %v6401, %v6400
        %v6428 = vpack.c.b16 %v6403, %v6402
        %v6429 = vpack.c.b16 %v6405, %v6404
        %v6430 = vpack.c.b16 %v6407, %v6406
        %v6431 = vpack.c.b16 %v6409, %v6408
        %v6432 = vpack.c.b16 %v6411, %v6410
        %v6433 = vpack.c.b16 %v6413, %v6412
        %v6434 = vpack.c.b16 %v6415, %v6414
        %v6435 = vpack.c.b16 %v6417, %v6416
        %v6436 = vpack.c.b16 %v6419, %v6418
        %v6437 = vpack.c.b16 %v6421, %v6420
        %6454 = vmatprep.subr.bf16.mxu0 0
        %6455 = vmatpush1.bf16.msra.mxu0 %v6422
        %6456 = vmatprep.subr.bf16.mxu0 0
        %6457 = vmatpush1.bf16.msra.mxu0 %v6423
        %6458 = vmatprep.subr.bf16.mxu0 0
        %6459 = vmatpush1.bf16.msra.mxu0 %v6424
        %6460 = vmatprep.subr.bf16.mxu0 0
        %6461 = vmatpush1.bf16.msra.mxu0 %v6425
        %6462 = vmatprep.subr.bf16.mxu0 0
        %6463 = vmatpush1.bf16.msra.mxu0 %v6426
        %6464 = vmatprep.subr.bf16.mxu0 0
        %6465 = vmatpush1.bf16.msra.mxu0 %v6427
        %6466 = vmatprep.subr.bf16.mxu0 0
        %6467 = vmatpush1.bf16.msra.mxu0 %v6428
        %6468 = vmatprep.subr.bf16.mxu0 0
        %6469 = vmatpush1.bf16.msra.mxu0 %v6429
        %6470 = vmatprep.subr.bf16.mxu0 0
        %6471 = vmatpush1.bf16.msra.mxu0 %v6430
        %6472 = vmatprep.subr.bf16.mxu0 0
        %6473 = vmatpush1.bf16.msra.mxu0 %v6431
        %6474 = vmatprep.subr.bf16.mxu0 0
        %6475 = vmatpush1.bf16.msra.mxu0 %v6432
        %6476 = vmatprep.subr.bf16.mxu0 0
        %6477 = vmatpush1.bf16.msra.mxu0 %v6433
        %6478 = vmatprep.subr.bf16.mxu0 0
        %6479 = vmatpush1.bf16.msra.mxu0 %v6434
        %6480 = vmatprep.subr.bf16.mxu0 0
        %6481 = vmatpush1.bf16.msra.mxu0 %v6435
        %6482 = vmatprep.subr.bf16.mxu0 0
        %6483 = vmatpush1.bf16.msra.mxu0 %v6436
        %6484 = vmatprep.subr.bf16.mxu0 0
        %6485 = vmatpush1.bf16.msra.mxu0 %v6437
        %6486 = vmatprep.mubr.bf16.mxu0 %v6324
        %6487 = vmatmul.mubr.bf16.gmra.mrb[0].mxu0 %v6323
        %v6488 = vpop.f32.mrb[0].mxu0
        %v6489 = vadd.f32 0.0, %v6488
        %v6490 = vpop.f32.mrb[0].mxu0
        %v6491 = vpop.f32.mrb[0].mxu0
        %v6492 = vpop.f32.mrb[0].mxu0
        %6493 = vdwg.mxu0
        %v6494 = vadd.f32 %v6318, %v6489
        %v6495 = vpack.c.bf16 %v5980, %v5980
        %v6496 = vpack.c.bf16 %v5981, %v5981
        %s6497 = scalar_lea.vmem [#allocation10], 384
        %v6498 = vld [vmem:[%s6497] sm:$0xf]
        %v6499 = vld [vmem:[%s6497 + $0x4] sm:$0xf]
        %v6500 = vld [vmem:[%s6497 + $0x8] sm:$0xf]
        %v6501 = vld [vmem:[%s6497 + $0xc] sm:$0xf]
        %v6502 = vld [vmem:[%s6497 + $0x10] sm:$0xf]
        %v6503 = vld [vmem:[%s6497 + $0x14] sm:$0xf]
        %v6504 = vld [vmem:[%s6497 + $0x18] sm:$0xf]
        %v6505 = vld [vmem:[%s6497 + $0x1c] sm:$0xf]
        %v6506 = vld [vmem:[%s6497 + $0x20] sm:$0xf]
        %v6507 = vld [vmem:[%s6497 + $0x24] sm:$0xf]
        %v6508 = vld [vmem:[%s6497 + $0x28] sm:$0xf]
        %v6509 = vld [vmem:[%s6497 + $0x2c] sm:$0xf]
        %v6510 = vld [vmem:[%s6497 + $0x30] sm:$0xf]
        %v6511 = vld [vmem:[%s6497 + $0x34] sm:$0xf]
        %v6512 = vld [vmem:[%s6497 + $0x38] sm:$0xf]
        %v6513 = vld [vmem:[%s6497 + $0x3c] sm:$0xf]
        %v6514 = vld [vmem:[%s6497 + $0x40] sm:$0xf]
        %v6515 = vld [vmem:[%s6497 + $0x44] sm:$0xf]
        %v6516 = vld [vmem:[%s6497 + $0x48] sm:$0xf]
        %v6517 = vld [vmem:[%s6497 + $0x4c] sm:$0xf]
        %v6518 = vld [vmem:[%s6497 + $0x50] sm:$0xf]
        %v6519 = vld [vmem:[%s6497 + $0x54] sm:$0xf]
        %v6520 = vld [vmem:[%s6497 + $0x58] sm:$0xf]
        %v6521 = vld [vmem:[%s6497 + $0x5c] sm:$0xf]
        %v6522 = vld [vmem:[%s6497 + $0x60] sm:$0xf]
        %v6523 = vld [vmem:[%s6497 + $0x64] sm:$0xf]
        %v6524 = vld [vmem:[%s6497 + $0x68] sm:$0xf]
        %v6525 = vld [vmem:[%s6497 + $0x6c] sm:$0xf]
        %v6526 = vld [vmem:[%s6497 + $0x70] sm:$0xf]
        %v6527 = vld [vmem:[%s6497 + $0x74] sm:$0xf]
        %v6528 = vld [vmem:[%s6497 + $0x78] sm:$0xf]
        %v6529 = vld [vmem:[%s6497 + $0x7c] sm:$0xf]
        %v6562 = vunpack.c.l.b16 %v6498
        %v6563 = vunpack.c.l.b16 %v6499
        %v6564 = vunpack.c.l.b16 %v6500
        %v6565 = vunpack.c.l.b16 %v6501
        %v6566 = vunpack.c.l.b16 %v6502
        %v6567 = vunpack.c.l.b16 %v6503
        %v6568 = vunpack.c.l.b16 %v6504
        %v6569 = vunpack.c.l.b16 %v6505
        %v6570 = vunpack.c.l.b16 %v6506
        %v6571 = vunpack.c.l.b16 %v6507
        %v6572 = vunpack.c.l.b16 %v6508
        %v6573 = vunpack.c.l.b16 %v6509
        %v6574 = vunpack.c.l.b16 %v6510
        %v6575 = vunpack.c.l.b16 %v6511
        %v6576 = vunpack.c.l.b16 %v6512
        %v6577 = vunpack.c.l.b16 %v6513
        %v6578 = vunpack.c.l.b16 %v6514
        %v6579 = vunpack.c.l.b16 %v6515
        %v6580 = vunpack.c.l.b16 %v6516
        %v6581 = vunpack.c.l.b16 %v6517
        %v6582 = vunpack.c.l.b16 %v6518
        %v6583 = vunpack.c.l.b16 %v6519
        %v6584 = vunpack.c.l.b16 %v6520
        %v6585 = vunpack.c.l.b16 %v6521
        %v6586 = vunpack.c.l.b16 %v6522
        %v6587 = vunpack.c.l.b16 %v6523
        %v6588 = vunpack.c.l.b16 %v6524
        %v6589 = vunpack.c.l.b16 %v6525
        %v6590 = vunpack.c.l.b16 %v6526
        %v6591 = vunpack.c.l.b16 %v6527
        %v6592 = vunpack.c.l.b16 %v6528
        %v6593 = vunpack.c.l.b16 %v6529
        %v6594 = vpack.c.b16 %v6563, %v6562
        %v6595 = vpack.c.b16 %v6565, %v6564
        %v6596 = vpack.c.b16 %v6567, %v6566
        %v6597 = vpack.c.b16 %v6569, %v6568
        %v6598 = vpack.c.b16 %v6571, %v6570
        %v6599 = vpack.c.b16 %v6573, %v6572
        %v6600 = vpack.c.b16 %v6575, %v6574
        %v6601 = vpack.c.b16 %v6577, %v6576
        %v6602 = vpack.c.b16 %v6579, %v6578
        %v6603 = vpack.c.b16 %v6581, %v6580
        %v6604 = vpack.c.b16 %v6583, %v6582
        %v6605 = vpack.c.b16 %v6585, %v6584
        %v6606 = vpack.c.b16 %v6587, %v6586
        %v6607 = vpack.c.b16 %v6589, %v6588
        %v6608 = vpack.c.b16 %v6591, %v6590
        %v6609 = vpack.c.b16 %v6593, %v6592
        %6626 = vmatprep.subr.bf16.mxu0 0
        %6627 = vmatpush1.bf16.msra.mxu0 %v6594
        %6628 = vmatprep.subr.bf16.mxu0 0
        %6629 = vmatpush1.bf16.msra.mxu0 %v6595
        %6630 = vmatprep.subr.bf16.mxu0 0
        %6631 = vmatpush1.bf16.msra.mxu0 %v6596
        %6632 = vmatprep.subr.bf16.mxu0 0
        %6633 = vmatpush1.bf16.msra.mxu0 %v6597
        %6634 = vmatprep.subr.bf16.mxu0 0
        %6635 = vmatpush1.bf16.msra.mxu0 %v6598
        %6636 = vmatprep.subr.bf16.mxu0 0
        %6637 = vmatpush1.bf16.msra.mxu0 %v6599
        %6638 = vmatprep.subr.bf16.mxu0 0
        %6639 = vmatpush1.bf16.msra.mxu0 %v6600
        %6640 = vmatprep.subr.bf16.mxu0 0
        %6641 = vmatpush1.bf16.msra.mxu0 %v6601
        %6642 = vmatprep.subr.bf16.mxu0 0
        %6643 = vmatpush1.bf16.msra.mxu0 %v6602
        %6644 = vmatprep.subr.bf16.mxu0 0
        %6645 = vmatpush1.bf16.msra.mxu0 %v6603
        %6646 = vmatprep.subr.bf16.mxu0 0
        %6647 = vmatpush1.bf16.msra.mxu0 %v6604
        %6648 = vmatprep.subr.bf16.mxu0 0
        %6649 = vmatpush1.bf16.msra.mxu0 %v6605
        %6650 = vmatprep.subr.bf16.mxu0 0
        %6651 = vmatpush1.bf16.msra.mxu0 %v6606
        %6652 = vmatprep.subr.bf16.mxu0 0
        %6653 = vmatpush1.bf16.msra.mxu0 %v6607
        %6654 = vmatprep.subr.bf16.mxu0 0
        %6655 = vmatpush1.bf16.msra.mxu0 %v6608
        %6656 = vmatprep.subr.bf16.mxu0 0
        %6657 = vmatpush1.bf16.msra.mxu0 %v6609
        %6658 = vmatprep.mubr.bf16.mxu0 %v6496
        %6659 = vmatmul.mubr.bf16.gmra.mrb[0].mxu0 %v6495
        %v6660 = vpop.f32.mrb[0].mxu0
        %v6661 = vadd.f32 0.0, %v6660
        %v6662 = vpop.f32.mrb[0].mxu0
        %v6663 = vpop.f32.mrb[0].mxu0
        %v6664 = vpop.f32.mrb[0].mxu0
        %6665 = vdwg.mxu0
        %v6666 = vadd.f32 %v6494, %v6661
        %v6667 = vld [vmem:[%s9] sm:$0x1]
        %v6668 = vadd.f32 %v6666, %v6667
        %v6669 = vmax.f32 %v6668, 0.0
        %v6670 = vpack.c.bf16 %v6669, %v6669
        %v6671 = vld [vmem:[%s5] sm:$0xf]
        %v6672 = vld [vmem:[%s5 + $0x4] sm:$0xf]
        %v6673 = vld [vmem:[%s5 + $0x8] sm:$0xf]
        %v6674 = vld [vmem:[%s5 + $0xc] sm:$0xf]
        %v6675 = vld [vmem:[%s5 + $0x10] sm:$0xf]
        %v6676 = vld [vmem:[%s5 + $0x14] sm:$0xf]
        %v6677 = vld [vmem:[%s5 + $0x18] sm:$0xf]
        %v6678 = vld [vmem:[%s5 + $0x1c] sm:$0xf]
        %v6679 = vld [vmem:[%s5 + $0x20] sm:$0xf]
        %v6680 = vld [vmem:[%s5 + $0x24] sm:$0xf]
        %v6681 = vld [vmem:[%s5 + $0x28] sm:$0xf]
        %v6682 = vld [vmem:[%s5 + $0x2c] sm:$0xf]
        %v6683 = vld [vmem:[%s5 + $0x30] sm:$0xf]
        %v6684 = vld [vmem:[%s5 + $0x34] sm:$0xf]
        %v6685 = vld [vmem:[%s5 + $0x38] sm:$0xf]
        %v6686 = vld [vmem:[%s5 + $0x3c] sm:$0xf]
        %v6687 = vld [vmem:[%s10] sm:$0x1]
        %v6704 = vunpack.c.l.b16 %v6671
        %v6705 = vunpack.c.l.b16 %v6672
        %v6706 = vunpack.c.l.b16 %v6673
        %v6707 = vunpack.c.l.b16 %v6674
        %v6708 = vunpack.c.l.b16 %v6675
        %v6709 = vunpack.c.l.b16 %v6676
        %v6710 = vunpack.c.l.b16 %v6677
        %v6711 = vunpack.c.l.b16 %v6678
        %v6712 = vunpack.c.l.b16 %v6679
        %v6713 = vunpack.c.l.b16 %v6680
        %v6714 = vunpack.c.l.b16 %v6681
        %v6715 = vunpack.c.l.b16 %v6682
        %v6716 = vunpack.c.l.b16 %v6683
        %v6717 = vunpack.c.l.b16 %v6684
        %v6718 = vunpack.c.l.b16 %v6685
        %v6719 = vunpack.c.l.b16 %v6686
        %v6720 = vpack.c.b16 %v6705, %v6704
        %v6721 = vpack.c.b16 %v6707, %v6706
        %v6722 = vpack.c.b16 %v6709, %v6708
        %v6723 = vpack.c.b16 %v6711, %v6710
        %v6724 = vpack.c.b16 %v6713, %v6712
        %v6725 = vpack.c.b16 %v6715, %v6714
        %v6726 = vpack.c.b16 %v6717, %v6716
        %v6727 = vpack.c.b16 %v6719, %v6718
        %6736 = vmatprep.subr.bf16.mxu0 0
        %6737 = vmatpush1.bf16.msra.mxu0 %v6720
        %6738 = vmatprep.subr.bf16.mxu0 0
        %6739 = vmatpush1.bf16.msra.mxu0 %v6721
        %6740 = vmatprep.subr.bf16.mxu0 0
        %6741 = vmatpush1.bf16.msra.mxu0 %v6722
        %6742 = vmatprep.subr.bf16.mxu0 0
        %6743 = vmatpush1.bf16.msra.mxu0 %v6723
        %6744 = vmatprep.subr.bf16.mxu0 0
        %6745 = vmatpush1.bf16.msra.mxu0 %v6724
        %6746 = vmatprep.subr.bf16.mxu0 0
        %6747 = vmatpush1.bf16.msra.mxu0 %v6725
        %6748 = vmatprep.subr.bf16.mxu0 0
        %6749 = vmatpush1.bf16.msra.mxu0 %v6726
        %6750 = vmatprep.subr.bf16.mxu0 0
        %6751 = vmatpush1.bf16.msra.mxu0 %v6727
        %6752 = vmatprep.subr.bf16.mxu0 0
        %6753 = vmatpush1.bf16.msra.mxu0 0
        %6754 = vmatprep.subr.bf16.mxu0 0
        %6755 = vmatpush1.bf16.msra.mxu0 0
        %6756 = vmatprep.subr.bf16.mxu0 0
        %6757 = vmatpush1.bf16.msra.mxu0 0
        %6758 = vmatprep.subr.bf16.mxu0 0
        %6759 = vmatpush1.bf16.msra.mxu0 0
        %6760 = vmatprep.subr.bf16.mxu0 0
        %6761 = vmatpush1.bf16.msra.mxu0 0
        %6762 = vmatprep.subr.bf16.mxu0 0
        %6763 = vmatpush1.bf16.msra.mxu0 0
        %6764 = vmatprep.subr.bf16.mxu0 0
        %6765 = vmatpush1.bf16.msra.mxu0 0
        %6766 = vmatprep.subr.bf16.mxu0 0
        %6767 = vmatpush1.bf16.msra.mxu0 0
        %6768 = vmatprep.mubr.bf16.mxu0 0
        %6769 = vmatmul.mubr.bf16.gmra.mrb[0].mxu0 %v6670
        %v6770 = vpop.f32.mrb[0].mxu0
        %v6771 = vadd.f32 %v6687, %v6770
        %v6772 = vpop.f32.mrb[0].mxu0
        %v6773 = vpop.f32.mrb[0].mxu0
        %v6774 = vpop.f32.mrb[0].mxu0
        %6775 = vdwg.mxu0
        %vm6776 = vcmask 122880
        %6777 = vst.msk [vmem:[%s422] sm:$0x1] %vm6776, %v6771
        %s6778 = sand.u32 %s271, 1
        %s6779 = scalar_lea.sflag [#allocation7], %s6778
        %s6780 = sand.u32 %s271, 1
        %s6781 = scalar_lea.vmem [#allocation11], %s6780
        // Predicated region
        $region77: #{tpu_custom_call.1} parent=63 // pred_check
          %p6782 = pneg %p281
        $region78: #{tpu_custom_call.1} parent=63 // pred_check_branch
          %6784 = sbr.rel (%p6782) target = $region80
        $region79: #{tpu_custom_call.1} parent=63 // pred_region
          %s6786 = ssub.s32 16, 16
          %6787 = vsyncadd %s6779, %s6786
          %s6788 = smul.addr %s27, 16
          %s6789 = scalar_lea.hbm %s11, %s6788
          %s6791 = sshll.u32 %s6781, 4
          %s6792 = int_to_ptr.vmem [resolvable:$true] %s6791
          %6794 = dma.vmem_to_hbm [thread:$0]  %s6792, 16, %s6789, %s6779
        $region80: #{tpu_custom_call.1} parent=63 // pred_fallthru
          _
      $region64: #{tpu_custom_call.1} parent=5 // pred_fallthru
        _
      %p6795 = scmp.le.s32.totalorder 2, %s22
      // Predicated region
      $region81: #{tpu_custom_call.1} parent=5 // pred_check
        %p6796 = pneg %p6795
      $region82: #{tpu_custom_call.1} parent=5 // pred_check_branch
        %6798 = sbr.rel (%p6796) target = $region84
      $region83: #{tpu_custom_call.1} parent=5 // pred_region
        %s6799 = ssub.s32 %s22, 2
        // Predicated region
        $region85: #{tpu_custom_call.1} parent=83 // pred_check
          %p6800 = pneg %p287
        $region86: #{tpu_custom_call.1} parent=83 // pred_check_branch
          %6802 = sbr.rel (%p6800) target = $region88
        $region87: #{tpu_custom_call.1} parent=83 // pred_region
          %s6803 = sand.u32 %s272, 1
          %s6804 = scalar_lea.sflag [#allocation7], %s6803
          %s6805 = sand.u32 %s272, 1
          %s6806 = scalar_lea.vmem [#allocation11], %s6805
          %6807 = dma.done %s6804, 16
        $region88: #{tpu_custom_call.1} parent=83 // pred_fallthru
          _
      $region84: #{tpu_custom_call.1} parent=5 // pred_fallthru
        _
    $region6: #{tpu_custom_call.1} parent=1 // loop_footer
      %s26 = sadd.s32 1, %s22
    $region7: #{tpu_custom_call.1} parent=1 // loop_footer_branch
      %21 = sbr.rel target = $region3
    $region8: #{tpu_custom_call.1} parent=1 // loop_exit
      _
    %6808 = vsyncpa [#allocation6], 1
    %s6809 = scalar_lea.sflag [#allocation6], 1
    %6810 = vsyncpa %s6809, 1
    %6811 = vsyncpa [#allocation9], 1
    %6812 = vsyncpa [#allocation7], 1
    %s6813 = scalar_lea.sflag [#allocation7], 1
    %6814 = vsyncpa %s6813, 1

</llo_original>
